<compile_context>
chip_gen: v7x
topology: tpu7x:2x2x1
jax: 0.10.0
libtpu: 0.0.40
codegen_flags: <defaults>
</compile_context>

<pallas_src>
import functools
import math

import jax
import jax.numpy as jnp
from jax.experimental import pallas as pl
from jax.experimental.pallas import tpu as pltpu

MM_DTYPE = jnp.bfloat16   # MXU operand dtype (accumulation stays f32)
LN_EPS = 1e-6             # speechbrain LayerNorm(d_model, eps=1e-06) per the module spec


# -----------------------------------------------------------------------------
# In-kernel helpers
# -----------------------------------------------------------------------------
def _layernorm(x, g, b):
    mu = jnp.mean(x, axis=-1, keepdims=True)
    var = jnp.mean(jnp.square(x - mu), axis=-1, keepdims=True)
    return (x - mu) * jax.lax.rsqrt(var + LN_EPS) * g + b


def _mha_block(xq, xkv, wq, bq, wk, bk, wv, bv, wo, bo):
    """Head-batched multi-head attention on one (T, D) tile.

    Weights are pre-split per head by the wrapper:
      wq/wk/wv: (H, D, dh) bf16     bq/bk/bv: (H, 1, dh) f32
      wo:       (H, dh, D) bf16     bo:       (1, D)     f32
    All contractions are leading-batch dot_generals (no transposes / concats).
    """
    f32 = jnp.float32
    nh, d, dh = wq.shape
    tq = xq.shape[0]
    tk = xkv.shape[0]
    scale = 1.0 / math.sqrt(dh)

    # Broadcast activations over the head axis so the projections are batched matmuls.
    xq_b = jnp.broadcast_to(xq.astype(MM_DTYPE)[None], (nh, tq, d))
    xkv_b = jnp.broadcast_to(xkv.astype(MM_DTYPE)[None], (nh, tk, d))

    q = jnp.einsum("htd,hde->hte", xq_b, wq, preferred_element_type=f32) + bq     # (H,Tq,dh)
    k = jnp.einsum("htd,hde->hte", xkv_b, wk, preferred_element_type=f32) + bk    # (H,Tk,dh)
    v = jnp.einsum("htd,hde->hte", xkv_b, wv, preferred_element_type=f32) + bv    # (H,Tk,dh)

    s = jnp.einsum("hqd,hkd->hqk", q.astype(MM_DTYPE), k.astype(MM_DTYPE),
                   preferred_element_type=f32) * scale                            # (H,Tq,Tk)
    s = s - jnp.max(s, axis=-1, keepdims=True)
    e = jnp.exp(s)
    p = e * pl.reciprocal(jnp.sum(e, axis=-1, keepdims=True))                     # EUP recip

    o = jnp.einsum("hqk,hkd->hqd", p.astype(MM_DTYPE), v.astype(MM_DTYPE),
                   preferred_element_type=f32)                                    # (H,Tq,dh)
    # Per-head output projection summed over heads == concat(heads) @ Wo (no concat).
    proj = jnp.einsum("hqd,hde->hqe", o.astype(MM_DTYPE), wo,
                      preferred_element_type=f32)                                 # (H,Tq,D)
    return jnp.sum(proj, axis=0) + bo                                             # (Tq,D)


# -----------------------------------------------------------------------------
# Fused RCA-layer kernel: one grid step == one (layer, batch) element
# -----------------------------------------------------------------------------
def _rca_layer_kernel(kv_ref, q_ref, pe_ref,
                      swq, sbq, swk, sbk, swv, sbv, swo, sbo,      # self-attention
                      cwq, cbq, cwk, cbk, cwv, cbv, cwo, cbo,      # cross-attention
                      ln1g, ln1b, w1, b1, w2, b2, ln2g, ln2b,      # norm1 / FFN / norm2
                      out_ref):
    f32 = jnp.float32
    pe = pe_ref[...]                   # (T, D)
    x_kv = kv_ref[0, 0] + pe           # query=key=value of self-attn, key/value of cross
    x_q = q_ref[0, 0] + pe             # query of cross-attn

    self_out = _mha_block(x_kv, x_kv, swq[0], sbq[0], swk[0], sbk[0],
                          swv[0], sbv[0], swo[0], sbo[0])
    cross_out = _mha_block(x_q, x_kv, cwq[0], cbq[0], cwk[0], cbk[0],
                           cwv[0], cbv[0], cwo[0], cbo[0])

    # post-norm residual block (dropout p=0.0 -> identity)
    src = _layernorm(x_kv + self_out + cross_out, ln1g[0], ln1b[0])

    h = jnp.dot(src.astype(MM_DTYPE), w1[0], preferred_element_type=f32) + b1[0]
    h = jnp.maximum(h, 0.0)
    ffn = jnp.dot(h.astype(MM_DTYPE), w2[0], preferred_element_type=f32) + b2[0]

    out_ref[0, 0] = _layernorm(src + ffn, ln2g[0], ln2b[0]).astype(out_ref.dtype)


# -----------------------------------------------------------------------------
# Wrapper: weight prep (head split, bf16 cast, layer stacking) + pallas_call
# -----------------------------------------------------------------------------
def _split_heads(att, nhead):
    D = att["wq"].shape[0]
    dh = D // nhead

    def w(m):   # (D, D) -> (H, D, dh), bf16 (halves weight DMA bytes)
        return m.reshape(D, nhead, dh).transpose(1, 0, 2).astype(MM_DTYPE)

    def b(v):   # (1, D) -> (H, 1, dh), stays f32 (added to the f32 accumulator)
        return v.reshape(nhead, dh)[:, None, :]

    return [w(att["wq"]), b(att["bq"]),
            w(att["wk"]), b(att["bk"]),
            w(att["wv"]), b(att["bv"]),
            att["wo"].reshape(nhead, dh, D).astype(MM_DTYPE), att["bo"]]


def _layer_weight_list(p, nhead):
    return (_split_heads(p["self_att"], nhead)
            + _split_heads(p["cross_att"], nhead)
            + [p["ln1_g"], p["ln1_b"],
               p["w1"].astype(MM_DTYPE), p["b1"],
               p["w2"].astype(MM_DTYPE), p["b2"],
               p["ln2_g"], p["ln2_b"]])


def positional_encoding(T, D):
    """Sinusoidal PE, shape [1, T, D] (speechbrain PositionalEncoding)."""
    pos = jnp.arange(T, dtype=jnp.float32)[:, None]
    div = jnp.exp(jnp.arange(0, D, 2, dtype=jnp.float32) * (-math.log(10000.0) / D))
    pe = jnp.zeros((T, D), dtype=jnp.float32)
    pe = pe.at[:, 0::2].set(jnp.sin(pos * div))
    pe = pe.at[:, 1::2].set(jnp.cos(pos * div))
    return pe[None]


def rcanet_forward(src1, src2, params, nhead):
    assert src1.shape == src2.shape, "fused kernel assumes matching (B, T, D) inputs"
    B, T, D = src1.shape
    pe = positional_encoding(T, D)[0]              # (T, D); added inside the kernel
    srcs = jnp.stack([src1, src2], axis=0)         # (2, B, T, D)

    weights = [jnp.stack(ab, axis=0) for ab in zip(
        _layer_weight_list(params["layer1"], nhead),
        _layer_weight_list(params["layer2"], nhead))]

    def act_spec(index_map):
        return pl.BlockSpec((1, 1, T, D), index_map)

    def w_spec(arr):
        nd = arr.ndim
        return pl.BlockSpec((1,) + arr.shape[1:],
                            lambda l, b, _nd=nd: (l,) + (0,) * (_nd - 1))

    out = pl.pallas_call(
        _rca_layer_kernel,
        out_shape=jax.ShapeDtypeStruct((2, B, T, D), jnp.float32),
        grid=(2, B),
        in_specs=[act_spec(lambda l, b: (l, b, 0, 0)),        # src_kv of layer l
                  act_spec(lambda l, b: (1 - l, b, 0, 0)),    # src_q  of layer l
                  pl.BlockSpec((T, D), lambda l, b: (0, 0))]  # shared PE table
                 + [w_spec(a) for a in weights],
        out_specs=act_spec(lambda l, b: (l, b, 0, 0)),
        compiler_params=pltpu.CompilerParams(
            dimension_semantics=("parallel", "parallel")),
    )(srcs, srcs, pe, *weights)
    return out[0], out[1]


# -----------------------------------------------------------------------------
# Pure-JAX references (f32, and matmul-dtype-matched) for correctness checks
# -----------------------------------------------------------------------------
def _ref_ln(x, g, b):
    mu = jnp.mean(x, axis=-1, keepdims=True)
    var = jnp.mean(jnp.square(x - mu), axis=-1, keepdims=True)
    return (x - mu) * jax.lax.rsqrt(var + LN_EPS) * g + b


def _ref_mha(xq, xkv, p, nhead, mm):
    def dot(a, b):
        return jnp.dot(a.astype(mm), b.astype(mm), preferred_element_type=jnp.float32)
    q = dot(xq, p["wq"]) + p["bq"]
    k = dot(xkv, p["wk"]) + p["bk"]
    v = dot(xkv, p["wv"]) + p["bv"]
    B, Tq, D = q.shape
    Tk = k.shape[1]
    dh = D // nhead
    q = q.reshape(B, Tq, nhead, dh).transpose(0, 2, 1, 3)
    k = k.reshape(B, Tk, nhead, dh).transpose(0, 2, 1, 3)
    v = v.reshape(B, Tk, nhead, dh).transpose(0, 2, 1, 3)
    s = jnp.einsum("bhqd,bhkd->bhqk", q.astype(mm), k.astype(mm),
                   preferred_element_type=jnp.float32) / math.sqrt(dh)
    a = jax.nn.softmax(s, axis=-1)
    o = jnp.einsum("bhqk,bhkd->bhqd", a.astype(mm), v.astype(mm),
                   preferred_element_type=jnp.float32)
    o = o.transpose(0, 2, 1, 3).reshape(B, Tq, D)
    return dot(o, p["wo"]) + p["bo"]


def _ref_layer(src_kv, src_q, p, nhead, mm):
    def dot(a, b):
        return jnp.dot(a.astype(mm), b.astype(mm), preferred_element_type=jnp.float32)
    self_out = _ref_mha(src_kv, src_kv, p["self_att"], nhead, mm)
    cross_out = _ref_mha(src_q, src_kv, p["cross_att"], nhead, mm)
    src = _ref_ln(src_kv + self_out + cross_out, p["ln1_g"], p["ln1_b"])
    h = jnp.maximum(dot(src, p["w1"]) + p["b1"], 0.0)
    ffn = dot(h, p["w2"]) + p["b2"]
    return _ref_ln(src + ffn, p["ln2_g"], p["ln2_b"])


def _ref_forward(src1, src2, params, nhead, mm=jnp.float32):
    src1 = src1 + positional_encoding(src1.shape[1], src1.shape[2])
    src2 = src2 + positional_encoding(src2.shape[1], src2.shape[2])
    return (_ref_layer(src1, src2, params["layer1"], nhead, mm),
            _ref_layer(src2, src1, params["layer2"], nhead, mm))


# -----------------------------------------------------------------------------
# Deterministic parameter init
# -----------------------------------------------------------------------------
def init_params(key, d_model, d_ffn):
    def mha_params(k):
        ks = jax.random.split(k, 8)
        return {
            "wq": 0.1 * jax.random.normal(ks[0], (d_model, d_model), jnp.float32),
            "bq": 0.01 * jax.random.normal(ks[1], (1, d_model), jnp.float32),
            "wk": 0.1 * jax.random.normal(ks[2], (d_model, d_model), jnp.float32),
            "bk": 0.01 * jax.random.normal(ks[3], (1, d_model), jnp.float32),
            "wv": 0.1 * jax.random.normal(ks[4], (d_model, d_model), jnp.float32),
            "bv": 0.01 * jax.random.normal(ks[5], (1, d_model), jnp.float32),
            "wo": 0.1 * jax.random.normal(ks[6], (d_model, d_model), jnp.float32),
            "bo": 0.01 * jax.random.normal(ks[7], (1, d_model), jnp.float32),
        }

    def layer_params(k):
        ks = jax.random.split(k, 6)
        return {
            "self_att": mha_params(ks[0]),
            "cross_att": mha_params(ks[1]),
            "ln1_g": jnp.ones((1, d_model), jnp.float32),
            "ln1_b": jnp.zeros((1, d_model), jnp.float32),
            "w1": 0.1 * jax.random.normal(ks[2], (d_model, d_ffn), jnp.float32),
            "b1": 0.01 * jax.random.normal(ks[3], (1, d_ffn), jnp.float32),
            "w2": 0.1 * jax.random.normal(ks[4], (d_ffn, d_model), jnp.float32),
            "b2": 0.01 * jax.random.normal(ks[5], (1, d_model), jnp.float32),
            "ln2_g": jnp.ones((1, d_model), jnp.float32),
            "ln2_b": jnp.zeros((1, d_model), jnp.float32),
        }

    k1, k2 = jax.random.split(key)
    return {"layer1": layer_params(k1), "layer2": layer_params(k2)}


# -----------------------------------------------------------------------------
if __name__ == "__main__":
    B, T, D, NHEAD, D_FFN = 2, 8, 32, 4, 64

    root = jax.random.PRNGKey(0)
    k_p, k_x1, k_x2 = jax.random.split(root, 3)
    params = init_params(k_p, D, D_FFN)
    src1 = jax.random.normal(k_x1, (B, T, D), jnp.float32)
    src2 = jax.random.normal(k_x2, (B, T, D), jnp.float32)

    fwd = jax.jit(functools.partial(rcanet_forward, nhead=NHEAD))
    out1, out2 = fwd(src1, src2, params)
    out1 = jax.block_until_ready(out1)
    out2 = jax.block_until_ready(out2)

    # (a) tight check vs. a reference using the same bf16 MXU operands / f32 accumulation
    ref1m, ref2m = _ref_forward(src1, src2, params, NHEAD, mm=MM_DTYPE)
    assert jnp.allclose(out1, ref1m, atol=2e-3, rtol=2e-3), "layer1 mismatch (matched ref)"
    assert jnp.allclose(out2, ref2m, atol=2e-3, rtol=2e-3), "layer2 mismatch (matched ref)"

    # (b) loose check vs. the pure-f32 reference (tolerance = bf16 operand quantization)
    ref1, ref2 = _ref_forward(src1, src2, params, NHEAD, mm=jnp.float32)
    assert jnp.allclose(out1, ref1, atol=5e-2, rtol=5e-2), "layer1 mismatch (f32 ref)"
    assert jnp.allclose(out2, ref2, atol=5e-2, rtol=5e-2), "layer2 mismatch (f32 ref)"

    # TODO(synk): dropout layers (p=0.0) and optional attn/key-padding masks are
    # identity/None in this forward configuration and are therefore omitted.
    print("KERNEL_OK")
</pallas_src>

<mosaic_0001>
module attributes {stable_mosaic.version = 11 : i64} {
  func.func @_rca_layer_kernel(%arg0: i32, %arg1: i32, %arg2: memref<1x1x8x32xf32, #tpu.memory_space<vmem>>, %arg3: memref<1x1x8x32xf32, #tpu.memory_space<vmem>>, %arg4: memref<8x32xf32, #tpu.memory_space<vmem>>, %arg5: memref<1x4x32x8xbf16, #tpu.memory_space<vmem>>, %arg6: memref<1x4x1x8xf32, #tpu.memory_space<vmem>>, %arg7: memref<1x4x32x8xbf16, #tpu.memory_space<vmem>>, %arg8: memref<1x4x1x8xf32, #tpu.memory_space<vmem>>, %arg9: memref<1x4x32x8xbf16, #tpu.memory_space<vmem>>, %arg10: memref<1x4x1x8xf32, #tpu.memory_space<vmem>>, %arg11: memref<1x4x8x32xbf16, #tpu.memory_space<vmem>>, %arg12: memref<1x1x32xf32, #tpu.memory_space<vmem>>, %arg13: memref<1x4x32x8xbf16, #tpu.memory_space<vmem>>, %arg14: memref<1x4x1x8xf32, #tpu.memory_space<vmem>>, %arg15: memref<1x4x32x8xbf16, #tpu.memory_space<vmem>>, %arg16: memref<1x4x1x8xf32, #tpu.memory_space<vmem>>, %arg17: memref<1x4x32x8xbf16, #tpu.memory_space<vmem>>, %arg18: memref<1x4x1x8xf32, #tpu.memory_space<vmem>>, %arg19: memref<1x4x8x32xbf16, #tpu.memory_space<vmem>>, %arg20: memref<1x1x32xf32, #tpu.memory_space<vmem>>, %arg21: memref<1x1x32xf32, #tpu.memory_space<vmem>>, %arg22: memref<1x1x32xf32, #tpu.memory_space<vmem>>, %arg23: memref<1x32x64xbf16, #tpu.memory_space<vmem>>, %arg24: memref<1x1x64xf32, #tpu.memory_space<vmem>>, %arg25: memref<1x64x32xbf16, #tpu.memory_space<vmem>>, %arg26: memref<1x1x32xf32, #tpu.memory_space<vmem>>, %arg27: memref<1x1x32xf32, #tpu.memory_space<vmem>>, %arg28: memref<1x1x32xf32, #tpu.memory_space<vmem>>, %arg29: memref<1x1x8x32xf32, #tpu.memory_space<vmem>>) attributes {dimension_semantics = [#tpu.dimension_semantics<parallel>, #tpu.dimension_semantics<parallel>], iteration_bounds = array<i64: 2, 2>, scalar_prefetch = 0 : i64, scratch_operands = 0 : i64, tpu.core_type = #tpu.core_type<tc>, window_params = [{transform_indices = @transform_0, window_bounds = array<i64: 1, 1, 8, 32>}, {transform_indices = @transform_1, window_bounds = array<i64: 1, 1, 8, 32>}, {pipeline_mode = #tpu.pipeline_mode<synchronous>, transform_indices = @transform_2, window_bounds = array<i64: 8, 32>}, {transform_indices = @transform_3, window_bounds = array<i64: 1, 4, 32, 8>}, {transform_indices = @transform_4, window_bounds = array<i64: 1, 4, 1, 8>}, {transform_indices = @transform_5, window_bounds = array<i64: 1, 4, 32, 8>}, {transform_indices = @transform_6, window_bounds = array<i64: 1, 4, 1, 8>}, {transform_indices = @transform_7, window_bounds = array<i64: 1, 4, 32, 8>}, {transform_indices = @transform_8, window_bounds = array<i64: 1, 4, 1, 8>}, {transform_indices = @transform_9, window_bounds = array<i64: 1, 4, 8, 32>}, {transform_indices = @transform_10, window_bounds = array<i64: 1, 1, 32>}, {transform_indices = @transform_11, window_bounds = array<i64: 1, 4, 32, 8>}, {transform_indices = @transform_12, window_bounds = array<i64: 1, 4, 1, 8>}, {transform_indices = @transform_13, window_bounds = array<i64: 1, 4, 32, 8>}, {transform_indices = @transform_14, window_bounds = array<i64: 1, 4, 1, 8>}, {transform_indices = @transform_15, window_bounds = array<i64: 1, 4, 32, 8>}, {transform_indices = @transform_16, window_bounds = array<i64: 1, 4, 1, 8>}, {transform_indices = @transform_17, window_bounds = array<i64: 1, 4, 8, 32>}, {transform_indices = @transform_18, window_bounds = array<i64: 1, 1, 32>}, {transform_indices = @transform_19, window_bounds = array<i64: 1, 1, 32>}, {transform_indices = @transform_20, window_bounds = array<i64: 1, 1, 32>}, {transform_indices = @transform_21, window_bounds = array<i64: 1, 32, 64>}, {transform_indices = @transform_22, window_bounds = array<i64: 1, 1, 64>}, {transform_indices = @transform_23, window_bounds = array<i64: 1, 64, 32>}, {transform_indices = @transform_24, window_bounds = array<i64: 1, 1, 32>}, {transform_indices = @transform_25, window_bounds = array<i64: 1, 1, 32>}, {transform_indices = @transform_26, window_bounds = array<i64: 1, 1, 32>}, {transform_indices = @transform_27, window_bounds = array<i64: 1, 1, 8, 32>}]} {
    %c0 = arith.constant 0 : index
    %c0_0 = arith.constant 0 : index
    %0 = vector.load %arg4[%c0, %c0_0] : memref<8x32xf32, #tpu.memory_space<vmem>>, vector<8x32xf32>
    %c0_1 = arith.constant 0 : index
    %c0_2 = arith.constant 0 : index
    %c0_3 = arith.constant 0 : index
    %c0_4 = arith.constant 0 : index
    %1 = vector.load %arg2[%c0_1, %c0_2, %c0_3, %c0_4] : memref<1x1x8x32xf32, #tpu.memory_space<vmem>>, vector<1x1x8x32xf32>
    %2 = vector.shape_cast %1 : vector<1x1x8x32xf32> to vector<8x32xf32>
    %3 = arith.addf %2, %0 : vector<8x32xf32>
    %c0_5 = arith.constant 0 : index
    %c0_6 = arith.constant 0 : index
    %c0_7 = arith.constant 0 : index
    %c0_8 = arith.constant 0 : index
    %4 = vector.load %arg3[%c0_5, %c0_6, %c0_7, %c0_8] : memref<1x1x8x32xf32, #tpu.memory_space<vmem>>, vector<1x1x8x32xf32>
    %5 = vector.shape_cast %4 : vector<1x1x8x32xf32> to vector<8x32xf32>
    %6 = arith.addf %5, %0 : vector<8x32xf32>
    %c0_9 = arith.constant 0 : index
    %c0_10 = arith.constant 0 : index
    %c0_11 = arith.constant 0 : index
    %c0_12 = arith.constant 0 : index
    %7 = vector.load %arg5[%c0_9, %c0_10, %c0_11, %c0_12] : memref<1x4x32x8xbf16, #tpu.memory_space<vmem>>, vector<1x4x32x8xbf16>
    %8 = vector.shape_cast %7 : vector<1x4x32x8xbf16> to vector<4x32x8xbf16>
    %c0_13 = arith.constant 0 : index
    %c0_14 = arith.constant 0 : index
    %c0_15 = arith.constant 0 : index
    %c0_16 = arith.constant 0 : index
    %9 = vector.load %arg6[%c0_13, %c0_14, %c0_15, %c0_16] : memref<1x4x1x8xf32, #tpu.memory_space<vmem>>, vector<1x4x1x8xf32>
    %10 = vector.shape_cast %9 : vector<1x4x1x8xf32> to vector<4x1x8xf32>
    %c0_17 = arith.constant 0 : index
    %c0_18 = arith.constant 0 : index
    %c0_19 = arith.constant 0 : index
    %c0_20 = arith.constant 0 : index
    %11 = vector.load %arg7[%c0_17, %c0_18, %c0_19, %c0_20] : memref<1x4x32x8xbf16, #tpu.memory_space<vmem>>, vector<1x4x32x8xbf16>
    %12 = vector.shape_cast %11 : vector<1x4x32x8xbf16> to vector<4x32x8xbf16>
    %c0_21 = arith.constant 0 : index
    %c0_22 = arith.constant 0 : index
    %c0_23 = arith.constant 0 : index
    %c0_24 = arith.constant 0 : index
    %13 = vector.load %arg8[%c0_21, %c0_22, %c0_23, %c0_24] : memref<1x4x1x8xf32, #tpu.memory_space<vmem>>, vector<1x4x1x8xf32>
    %14 = vector.shape_cast %13 : vector<1x4x1x8xf32> to vector<4x1x8xf32>
    %c0_25 = arith.constant 0 : index
    %c0_26 = arith.constant 0 : index
    %c0_27 = arith.constant 0 : index
    %c0_28 = arith.constant 0 : index
    %15 = vector.load %arg9[%c0_25, %c0_26, %c0_27, %c0_28] : memref<1x4x32x8xbf16, #tpu.memory_space<vmem>>, vector<1x4x32x8xbf16>
    %16 = vector.shape_cast %15 : vector<1x4x32x8xbf16> to vector<4x32x8xbf16>
    %c0_29 = arith.constant 0 : index
    %c0_30 = arith.constant 0 : index
    %c0_31 = arith.constant 0 : index
    %c0_32 = arith.constant 0 : index
    %17 = vector.load %arg10[%c0_29, %c0_30, %c0_31, %c0_32] : memref<1x4x1x8xf32, #tpu.memory_space<vmem>>, vector<1x4x1x8xf32>
    %18 = vector.shape_cast %17 : vector<1x4x1x8xf32> to vector<4x1x8xf32>
    %c0_33 = arith.constant 0 : index
    %c0_34 = arith.constant 0 : index
    %c0_35 = arith.constant 0 : index
    %c0_36 = arith.constant 0 : index
    %19 = vector.load %arg11[%c0_33, %c0_34, %c0_35, %c0_36] : memref<1x4x8x32xbf16, #tpu.memory_space<vmem>>, vector<1x4x8x32xbf16>
    %20 = vector.shape_cast %19 : vector<1x4x8x32xbf16> to vector<4x8x32xbf16>
    %c0_37 = arith.constant 0 : index
    %c0_38 = arith.constant 0 : index
    %c0_39 = arith.constant 0 : index
    %21 = vector.load %arg12[%c0_37, %c0_38, %c0_39] : memref<1x1x32xf32, #tpu.memory_space<vmem>>, vector<1x1x32xf32>
    %22 = vector.shape_cast %21 : vector<1x1x32xf32> to vector<1x32xf32>
    %23 = arith.truncf %3 : vector<8x32xf32> to vector<8x32xbf16>
    %24 = vector.shape_cast %23 : vector<8x32xbf16> to vector<1x8x32xbf16>
    %25 = vector.shape_cast %24 : vector<1x8x32xbf16> to vector<1x8x32xbf16>
    %26 = vector.broadcast %25 : vector<1x8x32xbf16> to vector<4x8x32xbf16>
    %27 = arith.truncf %3 : vector<8x32xf32> to vector<8x32xbf16>
    %28 = vector.shape_cast %27 : vector<8x32xbf16> to vector<1x8x32xbf16>
    %29 = vector.shape_cast %28 : vector<1x8x32xbf16> to vector<1x8x32xbf16>
    %30 = vector.broadcast %29 : vector<1x8x32xbf16> to vector<4x8x32xbf16>
    "tpu.trace_start"() <{level = 10 : i32, message = "htd,hde->hte"}> : () -> ()
    %cst = arith.constant dense<0.000000e+00> : vector<4x8x8xf32>
    %31 = tpu.matmul %26, %8, %cst {dimension_numbers = #tpu.dot_dimension_numbers<[2], [1], [1], [2], [0, 0, 0, 1, 1, 2], [0], [0]>} : vector<4x8x32xbf16>, vector<4x32x8xbf16>, vector<4x8x8xf32> -> vector<4x8x8xf32>
    "tpu.trace_stop"() : () -> ()
    %32 = vector.broadcast %10 : vector<4x1x8xf32> to vector<4x8x8xf32>
    %33 = arith.addf %31, %32 : vector<4x8x8xf32>
    "tpu.trace_start"() <{level = 10 : i32, message = "htd,hde->hte"}> : () -> ()
    %cst_40 = arith.constant dense<0.000000e+00> : vector<4x8x8xf32>
    %34 = tpu.matmul %30, %12, %cst_40 {dimension_numbers = #tpu.dot_dimension_numbers<[2], [1], [1], [2], [0, 0, 0, 1, 1, 2], [0], [0]>} : vector<4x8x32xbf16>, vector<4x32x8xbf16>, vector<4x8x8xf32> -> vector<4x8x8xf32>
    "tpu.trace_stop"() : () -> ()
    %35 = vector.broadcast %14 : vector<4x1x8xf32> to vector<4x8x8xf32>
    %36 = arith.addf %34, %35 : vector<4x8x8xf32>
    "tpu.trace_start"() <{level = 10 : i32, message = "htd,hde->hte"}> : () -> ()
    %cst_41 = arith.constant dense<0.000000e+00> : vector<4x8x8xf32>
    %37 = tpu.matmul %30, %16, %cst_41 {dimension_numbers = #tpu.dot_dimension_numbers<[2], [1], [1], [2], [0, 0, 0, 1, 1, 2], [0], [0]>} : vector<4x8x32xbf16>, vector<4x32x8xbf16>, vector<4x8x8xf32> -> vector<4x8x8xf32>
    "tpu.trace_stop"() : () -> ()
    %38 = vector.broadcast %18 : vector<4x1x8xf32> to vector<4x8x8xf32>
    %39 = arith.addf %37, %38 : vector<4x8x8xf32>
    %40 = arith.truncf %33 : vector<4x8x8xf32> to vector<4x8x8xbf16>
    %41 = arith.truncf %36 : vector<4x8x8xf32> to vector<4x8x8xbf16>
    "tpu.trace_start"() <{level = 10 : i32, message = "hqd,hkd->hqk"}> : () -> ()
    %cst_42 = arith.constant dense<0.000000e+00> : vector<4x8x8xf32>
    %42 = tpu.matmul %40, %41, %cst_42 {dimension_numbers = #tpu.dot_dimension_numbers<[2], [2], [1], [1], [0, 0, 0, 1, 1, 1], [0], [0]>} : vector<4x8x8xbf16>, vector<4x8x8xbf16>, vector<4x8x8xf32> -> vector<4x8x8xf32>
    "tpu.trace_stop"() : () -> ()
    %cst_43 = arith.constant 0.353553385 : f32
    %43 = vector.broadcast %cst_43 : f32 to vector<4x8x8xf32>
    %44 = arith.mulf %42, %43 : vector<4x8x8xf32>
    %cst_44 = arith.constant dense<0xFF800000> : vector<4x8xf32>
    %45 = vector.multi_reduction <maximumf>, %44, %cst_44 [2] : vector<4x8x8xf32> to vector<4x8xf32>
    %46 = vector.shape_cast %45 : vector<4x8xf32> to vector<4x8x1xf32>
    %47 = vector.broadcast %46 : vector<4x8x1xf32> to vector<4x8x8xf32>
    %48 = arith.subf %44, %47 : vector<4x8x8xf32>
    %49 = math.exp %48 : vector<4x8x8xf32>
    %cst_45 = arith.constant dense<0.000000e+00> : vector<4x8xf32>
    %50 = vector.multi_reduction <add>, %49, %cst_45 [2] : vector<4x8x8xf32> to vector<4x8xf32>
    %51 = vector.shape_cast %50 : vector<4x8xf32> to vector<4x8x1xf32>
    %52 = tpu.reciprocal %51 : vector<4x8x1xf32> -> vector<4x8x1xf32>
    %53 = vector.broadcast %52 : vector<4x8x1xf32> to vector<4x8x8xf32>
    %54 = arith.mulf %49, %53 : vector<4x8x8xf32>
    %55 = arith.truncf %54 : vector<4x8x8xf32> to vector<4x8x8xbf16>
    %56 = arith.truncf %39 : vector<4x8x8xf32> to vector<4x8x8xbf16>
    "tpu.trace_start"() <{level = 10 : i32, message = "hqk,hkd->hqd"}> : () -> ()
    %cst_46 = arith.constant dense<0.000000e+00> : vector<4x8x8xf32>
    %57 = tpu.matmul %55, %56, %cst_46 {dimension_numbers = #tpu.dot_dimension_numbers<[2], [1], [1], [2], [0, 0, 0, 1, 1, 2], [0], [0]>} : vector<4x8x8xbf16>, vector<4x8x8xbf16>, vector<4x8x8xf32> -> vector<4x8x8xf32>
    "tpu.trace_stop"() : () -> ()
    %58 = arith.truncf %57 : vector<4x8x8xf32> to vector<4x8x8xbf16>
    "tpu.trace_start"() <{level = 10 : i32, message = "hqd,hde->hqe"}> : () -> ()
    %cst_47 = arith.constant dense<0.000000e+00> : vector<4x8x32xf32>
    %59 = tpu.matmul %58, %20, %cst_47 {dimension_numbers = #tpu.dot_dimension_numbers<[2], [1], [1], [2], [0, 0, 0, 1, 1, 2], [0], [0]>} : vector<4x8x8xbf16>, vector<4x8x32xbf16>, vector<4x8x32xf32> -> vector<4x8x32xf32>
    "tpu.trace_stop"() : () -> ()
    %cst_48 = arith.constant dense<0.000000e+00> : vector<8x32xf32>
    %60 = vector.multi_reduction <add>, %59, %cst_48 [0] : vector<4x8x32xf32> to vector<8x32xf32>
    %61 = vector.broadcast %22 : vector<1x32xf32> to vector<8x32xf32>
    %62 = arith.addf %60, %61 : vector<8x32xf32>
    %c0_49 = arith.constant 0 : index
    %c0_50 = arith.constant 0 : index
    %c0_51 = arith.constant 0 : index
    %c0_52 = arith.constant 0 : index
    %63 = vector.load %arg13[%c0_49, %c0_50, %c0_51, %c0_52] : memref<1x4x32x8xbf16, #tpu.memory_space<vmem>>, vector<1x4x32x8xbf16>
    %64 = vector.shape_cast %63 : vector<1x4x32x8xbf16> to vector<4x32x8xbf16>
    %c0_53 = arith.constant 0 : index
    %c0_54 = arith.constant 0 : index
    %c0_55 = arith.constant 0 : index
    %c0_56 = arith.constant 0 : index
    %65 = vector.load %arg14[%c0_53, %c0_54, %c0_55, %c0_56] : memref<1x4x1x8xf32, #tpu.memory_space<vmem>>, vector<1x4x1x8xf32>
    %66 = vector.shape_cast %65 : vector<1x4x1x8xf32> to vector<4x1x8xf32>
    %c0_57 = arith.constant 0 : index
    %c0_58 = arith.constant 0 : index
    %c0_59 = arith.constant 0 : index
    %c0_60 = arith.constant 0 : index
    %67 = vector.load %arg15[%c0_57, %c0_58, %c0_59, %c0_60] : memref<1x4x32x8xbf16, #tpu.memory_space<vmem>>, vector<1x4x32x8xbf16>
    %68 = vector.shape_cast %67 : vector<1x4x32x8xbf16> to vector<4x32x8xbf16>
    %c0_61 = arith.constant 0 : index
    %c0_62 = arith.constant 0 : index
    %c0_63 = arith.constant 0 : index
    %c0_64 = arith.constant 0 : index
    %69 = vector.load %arg16[%c0_61, %c0_62, %c0_63, %c0_64] : memref<1x4x1x8xf32, #tpu.memory_space<vmem>>, vector<1x4x1x8xf32>
    %70 = vector.shape_cast %69 : vector<1x4x1x8xf32> to vector<4x1x8xf32>
    %c0_65 = arith.constant 0 : index
    %c0_66 = arith.constant 0 : index
    %c0_67 = arith.constant 0 : index
    %c0_68 = arith.constant 0 : index
    %71 = vector.load %arg17[%c0_65, %c0_66, %c0_67, %c0_68] : memref<1x4x32x8xbf16, #tpu.memory_space<vmem>>, vector<1x4x32x8xbf16>
    %72 = vector.shape_cast %71 : vector<1x4x32x8xbf16> to vector<4x32x8xbf16>
    %c0_69 = arith.constant 0 : index
    %c0_70 = arith.constant 0 : index
    %c0_71 = arith.constant 0 : index
    %c0_72 = arith.constant 0 : index
    %73 = vector.load %arg18[%c0_69, %c0_70, %c0_71, %c0_72] : memref<1x4x1x8xf32, #tpu.memory_space<vmem>>, vector<1x4x1x8xf32>
    %74 = vector.shape_cast %73 : vector<1x4x1x8xf32> to vector<4x1x8xf32>
    %c0_73 = arith.constant 0 : index
    %c0_74 = arith.constant 0 : index
    %c0_75 = arith.constant 0 : index
    %c0_76 = arith.constant 0 : index
    %75 = vector.load %arg19[%c0_73, %c0_74, %c0_75, %c0_76] : memref<1x4x8x32xbf16, #tpu.memory_space<vmem>>, vector<1x4x8x32xbf16>
    %76 = vector.shape_cast %75 : vector<1x4x8x32xbf16> to vector<4x8x32xbf16>
    %c0_77 = arith.constant 0 : index
    %c0_78 = arith.constant 0 : index
    %c0_79 = arith.constant 0 : index
    %77 = vector.load %arg20[%c0_77, %c0_78, %c0_79] : memref<1x1x32xf32, #tpu.memory_space<vmem>>, vector<1x1x32xf32>
    %78 = vector.shape_cast %77 : vector<1x1x32xf32> to vector<1x32xf32>
    %79 = arith.truncf %6 : vector<8x32xf32> to vector<8x32xbf16>
    %80 = vector.shape_cast %79 : vector<8x32xbf16> to vector<1x8x32xbf16>
    %81 = vector.shape_cast %80 : vector<1x8x32xbf16> to vector<1x8x32xbf16>
    %82 = vector.broadcast %81 : vector<1x8x32xbf16> to vector<4x8x32xbf16>
    %83 = arith.truncf %3 : vector<8x32xf32> to vector<8x32xbf16>
    %84 = vector.shape_cast %83 : vector<8x32xbf16> to vector<1x8x32xbf16>
    %85 = vector.shape_cast %84 : vector<1x8x32xbf16> to vector<1x8x32xbf16>
    %86 = vector.broadcast %85 : vector<1x8x32xbf16> to vector<4x8x32xbf16>
    "tpu.trace_start"() <{level = 10 : i32, message = "htd,hde->hte"}> : () -> ()
    %cst_80 = arith.constant dense<0.000000e+00> : vector<4x8x8xf32>
    %87 = tpu.matmul %82, %64, %cst_80 {dimension_numbers = #tpu.dot_dimension_numbers<[2], [1], [1], [2], [0, 0, 0, 1, 1, 2], [0], [0]>} : vector<4x8x32xbf16>, vector<4x32x8xbf16>, vector<4x8x8xf32> -> vector<4x8x8xf32>
    "tpu.trace_stop"() : () -> ()
    %88 = vector.broadcast %66 : vector<4x1x8xf32> to vector<4x8x8xf32>
    %89 = arith.addf %87, %88 : vector<4x8x8xf32>
    "tpu.trace_start"() <{level = 10 : i32, message = "htd,hde->hte"}> : () -> ()
    %cst_81 = arith.constant dense<0.000000e+00> : vector<4x8x8xf32>
    %90 = tpu.matmul %86, %68, %cst_81 {dimension_numbers = #tpu.dot_dimension_numbers<[2], [1], [1], [2], [0, 0, 0, 1, 1, 2], [0], [0]>} : vector<4x8x32xbf16>, vector<4x32x8xbf16>, vector<4x8x8xf32> -> vector<4x8x8xf32>
    "tpu.trace_stop"() : () -> ()
    %91 = vector.broadcast %70 : vector<4x1x8xf32> to vector<4x8x8xf32>
    %92 = arith.addf %90, %91 : vector<4x8x8xf32>
    "tpu.trace_start"() <{level = 10 : i32, message = "htd,hde->hte"}> : () -> ()
    %cst_82 = arith.constant dense<0.000000e+00> : vector<4x8x8xf32>
    %93 = tpu.matmul %86, %72, %cst_82 {dimension_numbers = #tpu.dot_dimension_numbers<[2], [1], [1], [2], [0, 0, 0, 1, 1, 2], [0], [0]>} : vector<4x8x32xbf16>, vector<4x32x8xbf16>, vector<4x8x8xf32> -> vector<4x8x8xf32>
    "tpu.trace_stop"() : () -> ()
    %94 = vector.broadcast %74 : vector<4x1x8xf32> to vector<4x8x8xf32>
    %95 = arith.addf %93, %94 : vector<4x8x8xf32>
    %96 = arith.truncf %89 : vector<4x8x8xf32> to vector<4x8x8xbf16>
    %97 = arith.truncf %92 : vector<4x8x8xf32> to vector<4x8x8xbf16>
    "tpu.trace_start"() <{level = 10 : i32, message = "hqd,hkd->hqk"}> : () -> ()
    %cst_83 = arith.constant dense<0.000000e+00> : vector<4x8x8xf32>
    %98 = tpu.matmul %96, %97, %cst_83 {dimension_numbers = #tpu.dot_dimension_numbers<[2], [2], [1], [1], [0, 0, 0, 1, 1, 1], [0], [0]>} : vector<4x8x8xbf16>, vector<4x8x8xbf16>, vector<4x8x8xf32> -> vector<4x8x8xf32>
    "tpu.trace_stop"() : () -> ()
    %cst_84 = arith.constant 0.353553385 : f32
    %99 = vector.broadcast %cst_84 : f32 to vector<4x8x8xf32>
    %100 = arith.mulf %98, %99 : vector<4x8x8xf32>
    %cst_85 = arith.constant dense<0xFF800000> : vector<4x8xf32>
    %101 = vector.multi_reduction <maximumf>, %100, %cst_85 [2] : vector<4x8x8xf32> to vector<4x8xf32>
    %102 = vector.shape_cast %101 : vector<4x8xf32> to vector<4x8x1xf32>
    %103 = vector.broadcast %102 : vector<4x8x1xf32> to vector<4x8x8xf32>
    %104 = arith.subf %100, %103 : vector<4x8x8xf32>
    %105 = math.exp %104 : vector<4x8x8xf32>
    %cst_86 = arith.constant dense<0.000000e+00> : vector<4x8xf32>
    %106 = vector.multi_reduction <add>, %105, %cst_86 [2] : vector<4x8x8xf32> to vector<4x8xf32>
    %107 = vector.shape_cast %106 : vector<4x8xf32> to vector<4x8x1xf32>
    %108 = tpu.reciprocal %107 : vector<4x8x1xf32> -> vector<4x8x1xf32>
    %109 = vector.broadcast %108 : vector<4x8x1xf32> to vector<4x8x8xf32>
    %110 = arith.mulf %105, %109 : vector<4x8x8xf32>
    %111 = arith.truncf %110 : vector<4x8x8xf32> to vector<4x8x8xbf16>
    %112 = arith.truncf %95 : vector<4x8x8xf32> to vector<4x8x8xbf16>
    "tpu.trace_start"() <{level = 10 : i32, message = "hqk,hkd->hqd"}> : () -> ()
    %cst_87 = arith.constant dense<0.000000e+00> : vector<4x8x8xf32>
    %113 = tpu.matmul %111, %112, %cst_87 {dimension_numbers = #tpu.dot_dimension_numbers<[2], [1], [1], [2], [0, 0, 0, 1, 1, 2], [0], [0]>} : vector<4x8x8xbf16>, vector<4x8x8xbf16>, vector<4x8x8xf32> -> vector<4x8x8xf32>
    "tpu.trace_stop"() : () -> ()
    %114 = arith.truncf %113 : vector<4x8x8xf32> to vector<4x8x8xbf16>
    "tpu.trace_start"() <{level = 10 : i32, message = "hqd,hde->hqe"}> : () -> ()
    %cst_88 = arith.constant dense<0.000000e+00> : vector<4x8x32xf32>
    %115 = tpu.matmul %114, %76, %cst_88 {dimension_numbers = #tpu.dot_dimension_numbers<[2], [1], [1], [2], [0, 0, 0, 1, 1, 2], [0], [0]>} : vector<4x8x8xbf16>, vector<4x8x32xbf16>, vector<4x8x32xf32> -> vector<4x8x32xf32>
    "tpu.trace_stop"() : () -> ()
    %cst_89 = arith.constant dense<0.000000e+00> : vector<8x32xf32>
    %116 = vector.multi_reduction <add>, %115, %cst_89 [0] : vector<4x8x32xf32> to vector<8x32xf32>
    %117 = vector.broadcast %78 : vector<1x32xf32> to vector<8x32xf32>
    %118 = arith.addf %116, %117 : vector<8x32xf32>
    %119 = arith.addf %3, %62 : vector<8x32xf32>
    %120 = arith.addf %119, %118 : vector<8x32xf32>
    %c0_90 = arith.constant 0 : index
    %c0_91 = arith.constant 0 : index
    %c0_92 = arith.constant 0 : index
    %121 = vector.load %arg21[%c0_90, %c0_91, %c0_92] : memref<1x1x32xf32, #tpu.memory_space<vmem>>, vector<1x1x32xf32>
    %122 = vector.shape_cast %121 : vector<1x1x32xf32> to vector<1x32xf32>
    %c0_93 = arith.constant 0 : index
    %c0_94 = arith.constant 0 : index
    %c0_95 = arith.constant 0 : index
    %123 = vector.load %arg22[%c0_93, %c0_94, %c0_95] : memref<1x1x32xf32, #tpu.memory_space<vmem>>, vector<1x1x32xf32>
    %124 = vector.shape_cast %123 : vector<1x1x32xf32> to vector<1x32xf32>
    %cst_96 = arith.constant dense<0.000000e+00> : vector<8xf32>
    %125 = vector.multi_reduction <add>, %120, %cst_96 [1] : vector<8x32xf32> to vector<8xf32>
    %126 = vector.shape_cast %125 : vector<8xf32> to vector<8x1xf32>
    %cst_97 = arith.constant 3.200000e+01 : f32
    %127 = vector.broadcast %cst_97 : f32 to vector<8x1xf32>
    %128 = arith.divf %126, %127 : vector<8x1xf32>
    %129 = vector.broadcast %128 : vector<8x1xf32> to vector<8x32xf32>
    %130 = arith.subf %120, %129 : vector<8x32xf32>
    %131 = arith.mulf %130, %130 : vector<8x32xf32>
    %cst_98 = arith.constant dense<0.000000e+00> : vector<8xf32>
    %132 = vector.multi_reduction <add>, %131, %cst_98 [1] : vector<8x32xf32> to vector<8xf32>
    %133 = vector.shape_cast %132 : vector<8xf32> to vector<8x1xf32>
    %cst_99 = arith.constant 3.200000e+01 : f32
    %134 = vector.broadcast %cst_99 : f32 to vector<8x1xf32>
    %135 = arith.divf %133, %134 : vector<8x1xf32>
    %136 = vector.broadcast %128 : vector<8x1xf32> to vector<8x32xf32>
    %137 = arith.subf %120, %136 : vector<8x32xf32>
    %cst_100 = arith.constant 9.99999997E-7 : f32
    %138 = vector.broadcast %cst_100 : f32 to vector<8x1xf32>
    %139 = arith.addf %135, %138 : vector<8x1xf32>
    %140 = math.rsqrt %139 : vector<8x1xf32>
    %141 = vector.broadcast %140 : vector<8x1xf32> to vector<8x32xf32>
    %142 = arith.mulf %137, %141 : vector<8x32xf32>
    %143 = vector.broadcast %122 : vector<1x32xf32> to vector<8x32xf32>
    %144 = arith.mulf %142, %143 : vector<8x32xf32>
    %145 = vector.broadcast %124 : vector<1x32xf32> to vector<8x32xf32>
    %146 = arith.addf %144, %145 : vector<8x32xf32>
    %147 = arith.truncf %146 : vector<8x32xf32> to vector<8x32xbf16>
    %c0_101 = arith.constant 0 : index
    %c0_102 = arith.constant 0 : index
    %c0_103 = arith.constant 0 : index
    %148 = vector.load %arg23[%c0_101, %c0_102, %c0_103] : memref<1x32x64xbf16, #tpu.memory_space<vmem>>, vector<1x32x64xbf16>
    %149 = vector.shape_cast %148 : vector<1x32x64xbf16> to vector<32x64xbf16>
    %cst_104 = arith.constant dense<0.000000e+00> : vector<8x64xf32>
    %150 = tpu.matmul %147, %149, %cst_104 {dimension_numbers = #tpu.dot_dimension_numbers<[1], [0], [0], [1], [0, 0, 1, 1], [], []>} : vector<8x32xbf16>, vector<32x64xbf16>, vector<8x64xf32> -> vector<8x64xf32>
    %c0_105 = arith.constant 0 : index
    %c0_106 = arith.constant 0 : index
    %c0_107 = arith.constant 0 : index
    %151 = vector.load %arg24[%c0_105, %c0_106, %c0_107] : memref<1x1x64xf32, #tpu.memory_space<vmem>>, vector<1x1x64xf32>
    %152 = vector.shape_cast %151 : vector<1x1x64xf32> to vector<1x64xf32>
    %153 = vector.broadcast %152 : vector<1x64xf32> to vector<8x64xf32>
    %154 = arith.addf %150, %153 : vector<8x64xf32>
    %cst_108 = arith.constant 0.000000e+00 : f32
    %155 = vector.broadcast %cst_108 : f32 to vector<8x64xf32>
    %156 = arith.maximumf %154, %155 : vector<8x64xf32>
    %157 = arith.truncf %156 : vector<8x64xf32> to vector<8x64xbf16>
    %c0_109 = arith.constant 0 : index
    %c0_110 = arith.constant 0 : index
    %c0_111 = arith.constant 0 : index
    %158 = vector.load %arg25[%c0_109, %c0_110, %c0_111] : memref<1x64x32xbf16, #tpu.memory_space<vmem>>, vector<1x64x32xbf16>
    %159 = vector.shape_cast %158 : vector<1x64x32xbf16> to vector<64x32xbf16>
    %cst_112 = arith.constant dense<0.000000e+00> : vector<8x32xf32>
    %160 = tpu.matmul %157, %159, %cst_112 {dimension_numbers = #tpu.dot_dimension_numbers<[1], [0], [0], [1], [0, 0, 1, 1], [], []>} : vector<8x64xbf16>, vector<64x32xbf16>, vector<8x32xf32> -> vector<8x32xf32>
    %c0_113 = arith.constant 0 : index
    %c0_114 = arith.constant 0 : index
    %c0_115 = arith.constant 0 : index
    %161 = vector.load %arg26[%c0_113, %c0_114, %c0_115] : memref<1x1x32xf32, #tpu.memory_space<vmem>>, vector<1x1x32xf32>
    %162 = vector.shape_cast %161 : vector<1x1x32xf32> to vector<1x32xf32>
    %163 = vector.broadcast %162 : vector<1x32xf32> to vector<8x32xf32>
    %164 = arith.addf %160, %163 : vector<8x32xf32>
    %165 = arith.addf %146, %164 : vector<8x32xf32>
    %c0_116 = arith.constant 0 : index
    %c0_117 = arith.constant 0 : index
    %c0_118 = arith.constant 0 : index
    %166 = vector.load %arg27[%c0_116, %c0_117, %c0_118] : memref<1x1x32xf32, #tpu.memory_space<vmem>>, vector<1x1x32xf32>
    %167 = vector.shape_cast %166 : vector<1x1x32xf32> to vector<1x32xf32>
    %c0_119 = arith.constant 0 : index
    %c0_120 = arith.constant 0 : index
    %c0_121 = arith.constant 0 : index
    %168 = vector.load %arg28[%c0_119, %c0_120, %c0_121] : memref<1x1x32xf32, #tpu.memory_space<vmem>>, vector<1x1x32xf32>
    %169 = vector.shape_cast %168 : vector<1x1x32xf32> to vector<1x32xf32>
    %cst_122 = arith.constant dense<0.000000e+00> : vector<8xf32>
    %170 = vector.multi_reduction <add>, %165, %cst_122 [1] : vector<8x32xf32> to vector<8xf32>
    %171 = vector.shape_cast %170 : vector<8xf32> to vector<8x1xf32>
    %cst_123 = arith.constant 3.200000e+01 : f32
    %172 = vector.broadcast %cst_123 : f32 to vector<8x1xf32>
    %173 = arith.divf %171, %172 : vector<8x1xf32>
    %174 = vector.broadcast %173 : vector<8x1xf32> to vector<8x32xf32>
    %175 = arith.subf %165, %174 : vector<8x32xf32>
    %176 = arith.mulf %175, %175 : vector<8x32xf32>
    %cst_124 = arith.constant dense<0.000000e+00> : vector<8xf32>
    %177 = vector.multi_reduction <add>, %176, %cst_124 [1] : vector<8x32xf32> to vector<8xf32>
    %178 = vector.shape_cast %177 : vector<8xf32> to vector<8x1xf32>
    %cst_125 = arith.constant 3.200000e+01 : f32
    %179 = vector.broadcast %cst_125 : f32 to vector<8x1xf32>
    %180 = arith.divf %178, %179 : vector<8x1xf32>
    %181 = vector.broadcast %173 : vector<8x1xf32> to vector<8x32xf32>
    %182 = arith.subf %165, %181 : vector<8x32xf32>
    %cst_126 = arith.constant 9.99999997E-7 : f32
    %183 = vector.broadcast %cst_126 : f32 to vector<8x1xf32>
    %184 = arith.addf %180, %183 : vector<8x1xf32>
    %185 = math.rsqrt %184 : vector<8x1xf32>
    %186 = vector.broadcast %185 : vector<8x1xf32> to vector<8x32xf32>
    %187 = arith.mulf %182, %186 : vector<8x32xf32>
    %188 = vector.broadcast %167 : vector<1x32xf32> to vector<8x32xf32>
    %189 = arith.mulf %187, %188 : vector<8x32xf32>
    %190 = vector.broadcast %169 : vector<1x32xf32> to vector<8x32xf32>
    %191 = arith.addf %189, %190 : vector<8x32xf32>
    %c0_127 = arith.constant 0 : index
    %c0_128 = arith.constant 0 : index
    %c0_129 = arith.constant 0 : index
    %c0_130 = arith.constant 0 : index
    %192 = vector.load %arg29[%c0_127, %c0_128, %c0_129, %c0_130] : memref<1x1x8x32xf32, #tpu.memory_space<vmem>>, vector<1x1x8x32xf32>
    %193 = vector.shape_cast %192 : vector<1x1x8x32xf32> to vector<8x32xf32>
    %194 = vector.shape_cast %191 : vector<8x32xf32> to vector<1x1x8x32xf32>
    tpu.vector_store %arg29[%c0_127, %c0_128, %c0_129, %c0_130], %194 {strides = array<i32>} : memref<1x1x8x32xf32, #tpu.memory_space<vmem>>, vector<1x1x8x32xf32>,
    return
  }
  func.func @transform_0(%arg0: i32, %arg1: i32) -> (i32, i32, i32, i32) {
    %c0_i32 = arith.constant 0 : i32
    %c0_i32_0 = arith.constant 0 : i32
    %c0_i32_1 = arith.constant 0 : i32
    return %arg0, %arg1, %c0_i32, %c0_i32_0 : i32, i32, i32, i32
  }
  func.func @transform_1(%arg0: i32, %arg1: i32) -> (i32, i32, i32, i32) {
    %c1_i32 = arith.constant 1 : i32
    %0 = arith.subi %c1_i32, %arg0 : i32
    %c0_i32 = arith.constant 0 : i32
    %c0_i32_0 = arith.constant 0 : i32
    %c0_i32_1 = arith.constant 0 : i32
    return %0, %arg1, %c0_i32, %c0_i32_0 : i32, i32, i32, i32
  }
  func.func @transform_2(%arg0: i32, %arg1: i32) -> (i32, i32) {
    %c0_i32 = arith.constant 0 : i32
    %c0_i32_0 = arith.constant 0 : i32
    %c0_i32_1 = arith.constant 0 : i32
    return %c0_i32, %c0_i32_0 : i32, i32
  }
  func.func @transform_3(%arg0: i32, %arg1: i32) -> (i32, i32, i32, i32) {
    %c0_i32 = arith.constant 0 : i32
    %c0_i32_0 = arith.constant 0 : i32
    %c0_i32_1 = arith.constant 0 : i32
    %c0_i32_2 = arith.constant 0 : i32
    return %arg0, %c0_i32, %c0_i32_0, %c0_i32_1 : i32, i32, i32, i32
  }
  func.func @transform_4(%arg0: i32, %arg1: i32) -> (i32, i32, i32, i32) {
    %c0_i32 = arith.constant 0 : i32
    %c0_i32_0 = arith.constant 0 : i32
    %c0_i32_1 = arith.constant 0 : i32
    %c0_i32_2 = arith.constant 0 : i32
    return %arg0, %c0_i32, %c0_i32_0, %c0_i32_1 : i32, i32, i32, i32
  }
  func.func @transform_5(%arg0: i32, %arg1: i32) -> (i32, i32, i32, i32) {
    %c0_i32 = arith.constant 0 : i32
    %c0_i32_0 = arith.constant 0 : i32
    %c0_i32_1 = arith.constant 0 : i32
    %c0_i32_2 = arith.constant 0 : i32
    return %arg0, %c0_i32, %c0_i32_0, %c0_i32_1 : i32, i32, i32, i32
  }
  func.func @transform_6(%arg0: i32, %arg1: i32) -> (i32, i32, i32, i32) {
    %c0_i32 = arith.constant 0 : i32
    %c0_i32_0 = arith.constant 0 : i32
    %c0_i32_1 = arith.constant 0 : i32
    %c0_i32_2 = arith.constant 0 : i32
    return %arg0, %c0_i32, %c0_i32_0, %c0_i32_1 : i32, i32, i32, i32
  }
  func.func @transform_7(%arg0: i32, %arg1: i32) -> (i32, i32, i32, i32) {
    %c0_i32 = arith.constant 0 : i32
    %c0_i32_0 = arith.constant 0 : i32
    %c0_i32_1 = arith.constant 0 : i32
    %c0_i32_2 = arith.constant 0 : i32
    return %arg0, %c0_i32, %c0_i32_0, %c0_i32_1 : i32, i32, i32, i32
  }
  func.func @transform_8(%arg0: i32, %arg1: i32) -> (i32, i32, i32, i32) {
    %c0_i32 = arith.constant 0 : i32
    %c0_i32_0 = arith.constant 0 : i32
    %c0_i32_1 = arith.constant 0 : i32
    %c0_i32_2 = arith.constant 0 : i32
    return %arg0, %c0_i32, %c0_i32_0, %c0_i32_1 : i32, i32, i32, i32
  }
  func.func @transform_9(%arg0: i32, %arg1: i32) -> (i32, i32, i32, i32) {
    %c0_i32 = arith.constant 0 : i32
    %c0_i32_0 = arith.constant 0 : i32
    %c0_i32_1 = arith.constant 0 : i32
    %c0_i32_2 = arith.constant 0 : i32
    return %arg0, %c0_i32, %c0_i32_0, %c0_i32_1 : i32, i32, i32, i32
  }
  func.func @transform_10(%arg0: i32, %arg1: i32) -> (i32, i32, i32) {
    %c0_i32 = arith.constant 0 : i32
    %c0_i32_0 = arith.constant 0 : i32
    %c0_i32_1 = arith.constant 0 : i32
    return %arg0, %c0_i32, %c0_i32_0 : i32, i32, i32
  }
  func.func @transform_11(%arg0: i32, %arg1: i32) -> (i32, i32, i32, i32) {
    %c0_i32 = arith.constant 0 : i32
    %c0_i32_0 = arith.constant 0 : i32
    %c0_i32_1 = arith.constant 0 : i32
    %c0_i32_2 = arith.constant 0 : i32
    return %arg0, %c0_i32, %c0_i32_0, %c0_i32_1 : i32, i32, i32, i32
  }
  func.func @transform_12(%arg0: i32, %arg1: i32) -> (i32, i32, i32, i32) {
    %c0_i32 = arith.constant 0 : i32
    %c0_i32_0 = arith.constant 0 : i32
    %c0_i32_1 = arith.constant 0 : i32
    %c0_i32_2 = arith.constant 0 : i32
    return %arg0, %c0_i32, %c0_i32_0, %c0_i32_1 : i32, i32, i32, i32
  }
  func.func @transform_13(%arg0: i32, %arg1: i32) -> (i32, i32, i32, i32) {
    %c0_i32 = arith.constant 0 : i32
    %c0_i32_0 = arith.constant 0 : i32
    %c0_i32_1 = arith.constant 0 : i32
    %c0_i32_2 = arith.constant 0 : i32
    return %arg0, %c0_i32, %c0_i32_0, %c0_i32_1 : i32, i32, i32, i32
  }
  func.func @transform_14(%arg0: i32, %arg1: i32) -> (i32, i32, i32, i32) {
    %c0_i32 = arith.constant 0 : i32
    %c0_i32_0 = arith.constant 0 : i32
    %c0_i32_1 = arith.constant 0 : i32
    %c0_i32_2 = arith.constant 0 : i32
    return %arg0, %c0_i32, %c0_i32_0, %c0_i32_1 : i32, i32, i32, i32
  }
  func.func @transform_15(%arg0: i32, %arg1: i32) -> (i32, i32, i32, i32) {
    %c0_i32 = arith.constant 0 : i32
    %c0_i32_0 = arith.constant 0 : i32
    %c0_i32_1 = arith.constant 0 : i32
    %c0_i32_2 = arith.constant 0 : i32
    return %arg0, %c0_i32, %c0_i32_0, %c0_i32_1 : i32, i32, i32, i32
  }
  func.func @transform_16(%arg0: i32, %arg1: i32) -> (i32, i32, i32, i32) {
    %c0_i32 = arith.constant 0 : i32
    %c0_i32_0 = arith.constant 0 : i32
    %c0_i32_1 = arith.constant 0 : i32
    %c0_i32_2 = arith.constant 0 : i32
    return %arg0, %c0_i32, %c0_i32_0, %c0_i32_1 : i32, i32, i32, i32
  }
  func.func @transform_17(%arg0: i32, %arg1: i32) -> (i32, i32, i32, i32) {
    %c0_i32 = arith.constant 0 : i32
    %c0_i32_0 = arith.constant 0 : i32
    %c0_i32_1 = arith.constant 0 : i32
    %c0_i32_2 = arith.constant 0 : i32
    return %arg0, %c0_i32, %c0_i32_0, %c0_i32_1 : i32, i32, i32, i32
  }
  func.func @transform_18(%arg0: i32, %arg1: i32) -> (i32, i32, i32) {
    %c0_i32 = arith.constant 0 : i32
    %c0_i32_0 = arith.constant 0 : i32
    %c0_i32_1 = arith.constant 0 : i32
    return %arg0, %c0_i32, %c0_i32_0 : i32, i32, i32
  }
  func.func @transform_19(%arg0: i32, %arg1: i32) -> (i32, i32, i32) {
    %c0_i32 = arith.constant 0 : i32
    %c0_i32_0 = arith.constant 0 : i32
    %c0_i32_1 = arith.constant 0 : i32
    return %arg0, %c0_i32, %c0_i32_0 : i32, i32, i32
  }
  func.func @transform_20(%arg0: i32, %arg1: i32) -> (i32, i32, i32) {
    %c0_i32 = arith.constant 0 : i32
    %c0_i32_0 = arith.constant 0 : i32
    %c0_i32_1 = arith.constant 0 : i32
    return %arg0, %c0_i32, %c0_i32_0 : i32, i32, i32
  }
  func.func @transform_21(%arg0: i32, %arg1: i32) -> (i32, i32, i32) {
    %c0_i32 = arith.constant 0 : i32
    %c0_i32_0 = arith.constant 0 : i32
    %c0_i32_1 = arith.constant 0 : i32
    return %arg0, %c0_i32, %c0_i32_0 : i32, i32, i32
  }
  func.func @transform_22(%arg0: i32, %arg1: i32) -> (i32, i32, i32) {
    %c0_i32 = arith.constant 0 : i32
    %c0_i32_0 = arith.constant 0 : i32
    %c0_i32_1 = arith.constant 0 : i32
    return %arg0, %c0_i32, %c0_i32_0 : i32, i32, i32
  }
  func.func @transform_23(%arg0: i32, %arg1: i32) -> (i32, i32, i32) {
    %c0_i32 = arith.constant 0 : i32
    %c0_i32_0 = arith.constant 0 : i32
    %c0_i32_1 = arith.constant 0 : i32
    return %arg0, %c0_i32, %c0_i32_0 : i32, i32, i32
  }
  func.func @transform_24(%arg0: i32, %arg1: i32) -> (i32, i32, i32) {
    %c0_i32 = arith.constant 0 : i32
    %c0_i32_0 = arith.constant 0 : i32
    %c0_i32_1 = arith.constant 0 : i32
    return %arg0, %c0_i32, %c0_i32_0 : i32, i32, i32
  }
  func.func @transform_25(%arg0: i32, %arg1: i32) -> (i32, i32, i32) {
    %c0_i32 = arith.constant 0 : i32
    %c0_i32_0 = arith.constant 0 : i32
    %c0_i32_1 = arith.constant 0 : i32
    return %arg0, %c0_i32, %c0_i32_0 : i32, i32, i32
  }
  func.func @transform_26(%arg0: i32, %arg1: i32) -> (i32, i32, i32) {
    %c0_i32 = arith.constant 0 : i32
    %c0_i32_0 = arith.constant 0 : i32
    %c0_i32_1 = arith.constant 0 : i32
    return %arg0, %c0_i32, %c0_i32_0 : i32, i32, i32
  }
  func.func @transform_27(%arg0: i32, %arg1: i32) -> (i32, i32, i32, i32) {
    %c0_i32 = arith.constant 0 : i32
    %c0_i32_0 = arith.constant 0 : i32
    %c0_i32_1 = arith.constant 0 : i32
    return %arg0, %arg1, %c0_i32, %c0_i32_0 : i32, i32, i32, i32
  }
}

</mosaic_0001>

<llo_original>
// kernel: rcanet_forward.1
$region0: #{rcanet_forward.1}
  #allocation0 [shape = 'u32[]', space=smem, size = 0x4, offset = 0x4, fixed_abs, tag = 'smem constant byte address 0x4 - core index']
  #allocation1 [shape = 'u32[144,128]{1,0:T(1,128)}', space=vmem, size = 0x12000, scoped, tag = 'internal scratch']
  %s0 = inlined_call_operand.vmem [shape: f32[2,2,8,32], index: 0, kind: input, shape index: {}, may-alias: {0,1}]
  %s1 = inlined_call_operand.vmem [shape: f32[2,2,8,32], index: 1, kind: input, shape index: {}, may-alias: {0,1}]
  %s2 = inlined_call_operand.vmem [shape: f32[8,32], index: 2, kind: input, shape index: {}]
  %s3 = inlined_call_operand.vmem [shape: bf16[2,4,32,8], index: 3, kind: input, shape index: {}]
  %s4 = inlined_call_operand.vmem [shape: f32[2,4,1,8], index: 4, kind: input, shape index: {}]
  %s5 = inlined_call_operand.vmem [shape: bf16[2,4,32,8], index: 5, kind: input, shape index: {}]
  %s6 = inlined_call_operand.vmem [shape: f32[2,4,1,8], index: 6, kind: input, shape index: {}]
  %s7 = inlined_call_operand.vmem [shape: bf16[2,4,32,8], index: 7, kind: input, shape index: {}]
  %s8 = inlined_call_operand.vmem [shape: f32[2,4,1,8], index: 8, kind: input, shape index: {}]
  %s9 = inlined_call_operand.vmem [shape: bf16[2,4,8,32], index: 9, kind: input, shape index: {}]
  %s10 = inlined_call_operand.vmem [shape: f32[2,1,32], index: 10, kind: input, shape index: {}]
  %s11 = inlined_call_operand.vmem [shape: bf16[2,4,32,8], index: 11, kind: input, shape index: {}]
  %s12 = inlined_call_operand.vmem [shape: f32[2,4,1,8], index: 12, kind: input, shape index: {}]
  %s13 = inlined_call_operand.vmem [shape: bf16[2,4,32,8], index: 13, kind: input, shape index: {}]
  %s14 = inlined_call_operand.vmem [shape: f32[2,4,1,8], index: 14, kind: input, shape index: {}]
  %s15 = inlined_call_operand.vmem [shape: bf16[2,4,32,8], index: 15, kind: input, shape index: {}]
  %s16 = inlined_call_operand.vmem [shape: f32[2,4,1,8], index: 16, kind: input, shape index: {}]
  %s17 = inlined_call_operand.vmem [shape: bf16[2,4,8,32], index: 17, kind: input, shape index: {}]
  %s18 = inlined_call_operand.vmem [shape: f32[2,1,32], index: 18, kind: input, shape index: {}]
  %s19 = inlined_call_operand.vmem [shape: f32[2,1,32], index: 19, kind: input, shape index: {}]
  %s20 = inlined_call_operand.vmem [shape: f32[2,1,32], index: 20, kind: input, shape index: {}]
  %s21 = inlined_call_operand.vmem [shape: bf16[2,32,64], index: 21, kind: input, shape index: {}]
  %s22 = inlined_call_operand.vmem [shape: f32[2,1,64], index: 22, kind: input, shape index: {}]
  %s23 = inlined_call_operand.vmem [shape: bf16[2,64,32], index: 23, kind: input, shape index: {}]
  %s24 = inlined_call_operand.vmem [shape: f32[2,1,32], index: 24, kind: input, shape index: {}]
  %s25 = inlined_call_operand.vmem [shape: f32[2,1,32], index: 25, kind: input, shape index: {}]
  %s26 = inlined_call_operand.vmem [shape: f32[2,1,32], index: 26, kind: input, shape index: {}]
  %s27 = inlined_call_operand.vmem [shape: f32[2,2,8,32], index: 27, kind: output, shape index: {}]
  %s28 = sld [smem:[#allocation0]]
  $region141: #{rcanet_forward.1} parent=0
    _
  %s30 = ssub.s32 1, %s28
  %s31 = scalar_select 0, %s30, %s28
  loop: start=0, step=1, limit=6
  $region2: #{rcanet_forward.1} parent=0 // loop_pre_header
    _
  $region3: #{rcanet_forward.1} parent=0 // loop_header
    %s33 = sphi 0, %s37
    %p34 = scmp.ge.s32.totalorder %s33, 6
    %s40 = sphi 0, %s52
    %s41 = sphi 0, %s48
    %s42 = sphi 0, %s40
    %s43 = sphi 0, %s41
    %s44 = sphi 0, %s42
    %s45 = sphi 0, %s43
    %s57 = sphi 0, %s59
    %s60 = sphi 0, %s57
    %s61 = sphi 0, %s60
    %s77 = sphi 0, %s61
    %s87 = sphi 0, %s89
    %s90 = sphi 0, %s87
    %s91 = sphi 0, %s90
    %s107 = sphi 0, %s91
    %s111 = sphi 0, %s111
    %s113 = sphi 0, %s111
    %s114 = sphi 0, %s113
    %s128 = sphi 0, %s114
    %s134 = sphi 0, %s136
    %s137 = sphi 0, %s134
    %s138 = sphi 0, %s137
    %s154 = sphi 0, %s138
    %s160 = sphi 0, %s162
    %s163 = sphi 0, %s160
    %s164 = sphi 0, %s163
    %s180 = sphi 0, %s164
    %s186 = sphi 0, %s188
    %s189 = sphi 0, %s186
    %s190 = sphi 0, %s189
    %s206 = sphi 0, %s190
    %s212 = sphi 0, %s214
    %s215 = sphi 0, %s212
    %s216 = sphi 0, %s215
    %s232 = sphi 0, %s216
    %s238 = sphi 0, %s240
    %s241 = sphi 0, %s238
    %s242 = sphi 0, %s241
    %s258 = sphi 0, %s242
    %s264 = sphi 0, %s266
    %s267 = sphi 0, %s264
    %s268 = sphi 0, %s267
    %s284 = sphi 0, %s268
    %s290 = sphi 0, %s292
    %s293 = sphi 0, %s290
    %s294 = sphi 0, %s293
    %s310 = sphi 0, %s294
    %s316 = sphi 0, %s318
    %s319 = sphi 0, %s316
    %s320 = sphi 0, %s319
    %s336 = sphi 0, %s320
    %s342 = sphi 0, %s344
    %s345 = sphi 0, %s342
    %s346 = sphi 0, %s345
    %s362 = sphi 0, %s346
    %s368 = sphi 0, %s370
    %s371 = sphi 0, %s368
    %s372 = sphi 0, %s371
    %s388 = sphi 0, %s372
    %s394 = sphi 0, %s396
    %s397 = sphi 0, %s394
    %s398 = sphi 0, %s397
    %s414 = sphi 0, %s398
    %s420 = sphi 0, %s422
    %s423 = sphi 0, %s420
    %s424 = sphi 0, %s423
    %s440 = sphi 0, %s424
    %s446 = sphi 0, %s448
    %s449 = sphi 0, %s446
    %s450 = sphi 0, %s449
    %s466 = sphi 0, %s450
    %s472 = sphi 0, %s474
    %s475 = sphi 0, %s472
    %s476 = sphi 0, %s475
    %s492 = sphi 0, %s476
    %s498 = sphi 0, %s500
    %s501 = sphi 0, %s498
    %s502 = sphi 0, %s501
    %s518 = sphi 0, %s502
    %s524 = sphi 0, %s526
    %s527 = sphi 0, %s524
    %s528 = sphi 0, %s527
    %s544 = sphi 0, %s528
    %s550 = sphi 0, %s552
    %s553 = sphi 0, %s550
    %s554 = sphi 0, %s553
    %s570 = sphi 0, %s554
    %s576 = sphi 0, %s578
    %s579 = sphi 0, %s576
    %s580 = sphi 0, %s579
    %s596 = sphi 0, %s580
    %s602 = sphi 0, %s604
    %s605 = sphi 0, %s602
    %s606 = sphi 0, %s605
    %s622 = sphi 0, %s606
    %s628 = sphi 0, %s630
    %s631 = sphi 0, %s628
    %s632 = sphi 0, %s631
    %s648 = sphi 0, %s632
    %s654 = sphi 0, %s656
    %s657 = sphi 0, %s654
    %s658 = sphi 0, %s657
    %s674 = sphi 0, %s658
    %s680 = sphi 0, %s682
    %s683 = sphi 0, %s680
    %s684 = sphi 0, %s683
    %s700 = sphi 0, %s684
    %s706 = sphi 0, %s708
    %s709 = sphi 0, %s706
    %s710 = sphi 0, %s709
    %s726 = sphi 0, %s710
    %s732 = sphi 0, %s734
    %s735 = sphi 0, %s732
    %s736 = sphi 0, %s735
    %s752 = sphi 0, %s736
    %s760 = sphi 0, %s762
    %s763 = sphi 0, %s760
    %s764 = sphi 0, %s763
    %s780 = sphi 0, %s764
  $region4: #{rcanet_forward.1} parent=0 // loop_header_branch
    %36 = sbr.rel (%p34) target = $region8
  $region5: #{rcanet_forward.1} parent=0 // loop_body
    %s38 = ssub.s32 %s33, 1
    %s39 = ssub.s32 %s33, 2
    %s46 = sadd.s32 1, %s41
    %p47 = scmp.ge.s32.totalorder %s46, 2
    %s48 = scalar_select %p47, 0, %s46
    %s49 = sadd.s32 1, %s40
    %s50 = scalar_select %p47, %s49, %s40
    %p51 = scmp.ge.s32.totalorder %s50, 2
    %s52 = scalar_select %p51, 0, %s50
    %s53 = ssub.s32 %s40, %s52
    %s54 = ssub.s32 %s41, %s48
    %s55 = sor.u32 %s53, %s54
    %p56 = scmp.eq.s32.totalorder %s55, 0
    %s58 = sadd.s32 %s57, 1
    %s59 = scalar_select %p56, %s57, %s58
    %p62 = pneg %p56
    %p63 = scmp.eq.s32.totalorder %s33, 3
    %p64 = por %p62, %p63
    %p65 = scmp.ne.s32.totalorder %s57, %s60
    %p66 = scmp.eq.s32.totalorder %s33, 0
    %p67 = por %p65, %p66
    %p68 = scmp.ne.s32.totalorder %s57, %s60
    %p69 = scmp.eq.s32.totalorder %s38, 3
    %p70 = por %p68, %p69
    %p71 = scmp.ne.s32.totalorder %s60, %s61
    %p72 = scmp.eq.s32.totalorder %s38, 0
    %p73 = por %p71, %p72
    %p74 = scmp.ne.s32.totalorder %s60, %s61
    %p75 = scmp.eq.s32.totalorder %s39, 3
    %p76 = por %p74, %p75
    %p78 = scmp.ne.s32.totalorder %s61, %s77
    %p79 = scmp.eq.s32.totalorder %s39, 0
    %p80 = por %p78, %p79
    %s81 = ssub.s32 1, %s40
    %s82 = ssub.s32 1, %s52
    %s83 = ssub.s32 %s81, %s82
    %s84 = ssub.s32 %s41, %s48
    %s85 = sor.u32 %s83, %s84
    %p86 = scmp.eq.s32.totalorder %s85, 0
    %s88 = sadd.s32 %s87, 1
    %s89 = scalar_select %p86, %s87, %s88
    %p92 = pneg %p86
    %p93 = scmp.eq.s32.totalorder %s33, 3
    %p94 = por %p92, %p93
    %p95 = scmp.ne.s32.totalorder %s87, %s90
    %p96 = scmp.eq.s32.totalorder %s33, 0
    %p97 = por %p95, %p96
    %p98 = scmp.ne.s32.totalorder %s87, %s90
    %p99 = scmp.eq.s32.totalorder %s38, 3
    %p100 = por %p98, %p99
    %p101 = scmp.ne.s32.totalorder %s90, %s91
    %p102 = scmp.eq.s32.totalorder %s38, 0
    %p103 = por %p101, %p102
    %p104 = scmp.ne.s32.totalorder %s90, %s91
    %p105 = scmp.eq.s32.totalorder %s39, 3
    %p106 = por %p104, %p105
    %p108 = scmp.ne.s32.totalorder %s91, %s107
    %p109 = scmp.eq.s32.totalorder %s39, 0
    %p110 = por %p108, %p109
    %s112 = sadd.s32 %s111, 1
    %p115 = scmp.eq.s32.totalorder %s33, 3
    %p116 = scmp.ne.s32.totalorder %s111, %s113
    %p117 = scmp.eq.s32.totalorder %s33, 0
    %p118 = por %p116, %p117
    %p119 = scmp.ne.s32.totalorder %s111, %s113
    %p120 = scmp.eq.s32.totalorder %s38, 3
    %p121 = por %p119, %p120
    %p122 = scmp.ne.s32.totalorder %s113, %s114
    %p123 = scmp.eq.s32.totalorder %s38, 0
    %p124 = por %p122, %p123
    %p125 = scmp.ne.s32.totalorder %s113, %s114
    %p126 = scmp.eq.s32.totalorder %s39, 3
    %p127 = por %p125, %p126
    %p129 = scmp.ne.s32.totalorder %s114, %s128
    %p130 = scmp.eq.s32.totalorder %s39, 0
    %p131 = por %p129, %p130
    %s132 = ssub.s32 %s40, %s52
    %p133 = scmp.eq.s32.totalorder %s132, 0
    %s135 = sadd.s32 %s134, 1
    %s136 = scalar_select %p133, %s134, %s135
    %p139 = pneg %p133
    %p140 = scmp.eq.s32.totalorder %s33, 3
    %p141 = por %p139, %p140
    %p142 = scmp.ne.s32.totalorder %s134, %s137
    %p143 = scmp.eq.s32.totalorder %s33, 0
    %p144 = por %p142, %p143
    %p145 = scmp.ne.s32.totalorder %s134, %s137
    %p146 = scmp.eq.s32.totalorder %s38, 3
    %p147 = por %p145, %p146
    %p148 = scmp.ne.s32.totalorder %s137, %s138
    %p149 = scmp.eq.s32.totalorder %s38, 0
    %p150 = por %p148, %p149
    %p151 = scmp.ne.s32.totalorder %s137, %s138
    %p152 = scmp.eq.s32.totalorder %s39, 3
    %p153 = por %p151, %p152
    %p155 = scmp.ne.s32.totalorder %s138, %s154
    %p156 = scmp.eq.s32.totalorder %s39, 0
    %p157 = por %p155, %p156
    %s158 = ssub.s32 %s40, %s52
    %p159 = scmp.eq.s32.totalorder %s158, 0
    %s161 = sadd.s32 %s160, 1
    %s162 = scalar_select %p159, %s160, %s161
    %p165 = pneg %p159
    %p166 = scmp.eq.s32.totalorder %s33, 3
    %p167 = por %p165, %p166
    %p168 = scmp.ne.s32.totalorder %s160, %s163
    %p169 = scmp.eq.s32.totalorder %s33, 0
    %p170 = por %p168, %p169
    %p171 = scmp.ne.s32.totalorder %s160, %s163
    %p172 = scmp.eq.s32.totalorder %s38, 3
    %p173 = por %p171, %p172
    %p174 = scmp.ne.s32.totalorder %s163, %s164
    %p175 = scmp.eq.s32.totalorder %s38, 0
    %p176 = por %p174, %p175
    %p177 = scmp.ne.s32.totalorder %s163, %s164
    %p178 = scmp.eq.s32.totalorder %s39, 3
    %p179 = por %p177, %p178
    %p181 = scmp.ne.s32.totalorder %s164, %s180
    %p182 = scmp.eq.s32.totalorder %s39, 0
    %p183 = por %p181, %p182
    %s184 = ssub.s32 %s40, %s52
    %p185 = scmp.eq.s32.totalorder %s184, 0
    %s187 = sadd.s32 %s186, 1
    %s188 = scalar_select %p185, %s186, %s187
    %p191 = pneg %p185
    %p192 = scmp.eq.s32.totalorder %s33, 3
    %p193 = por %p191, %p192
    %p194 = scmp.ne.s32.totalorder %s186, %s189
    %p195 = scmp.eq.s32.totalorder %s33, 0
    %p196 = por %p194, %p195
    %p197 = scmp.ne.s32.totalorder %s186, %s189
    %p198 = scmp.eq.s32.totalorder %s38, 3
    %p199 = por %p197, %p198
    %p200 = scmp.ne.s32.totalorder %s189, %s190
    %p201 = scmp.eq.s32.totalorder %s38, 0
    %p202 = por %p200, %p201
    %p203 = scmp.ne.s32.totalorder %s189, %s190
    %p204 = scmp.eq.s32.totalorder %s39, 3
    %p205 = por %p203, %p204
    %p207 = scmp.ne.s32.totalorder %s190, %s206
    %p208 = scmp.eq.s32.totalorder %s39, 0
    %p209 = por %p207, %p208
    %s210 = ssub.s32 %s40, %s52
    %p211 = scmp.eq.s32.totalorder %s210, 0
    %s213 = sadd.s32 %s212, 1
    %s214 = scalar_select %p211, %s212, %s213
    %p217 = pneg %p211
    %p218 = scmp.eq.s32.totalorder %s33, 3
    %p219 = por %p217, %p218
    %p220 = scmp.ne.s32.totalorder %s212, %s215
    %p221 = scmp.eq.s32.totalorder %s33, 0
    %p222 = por %p220, %p221
    %p223 = scmp.ne.s32.totalorder %s212, %s215
    %p224 = scmp.eq.s32.totalorder %s38, 3
    %p225 = por %p223, %p224
    %p226 = scmp.ne.s32.totalorder %s215, %s216
    %p227 = scmp.eq.s32.totalorder %s38, 0
    %p228 = por %p226, %p227
    %p229 = scmp.ne.s32.totalorder %s215, %s216
    %p230 = scmp.eq.s32.totalorder %s39, 3
    %p231 = por %p229, %p230
    %p233 = scmp.ne.s32.totalorder %s216, %s232
    %p234 = scmp.eq.s32.totalorder %s39, 0
    %p235 = por %p233, %p234
    %s236 = ssub.s32 %s40, %s52
    %p237 = scmp.eq.s32.totalorder %s236, 0
    %s239 = sadd.s32 %s238, 1
    %s240 = scalar_select %p237, %s238, %s239
    %p243 = pneg %p237
    %p244 = scmp.eq.s32.totalorder %s33, 3
    %p245 = por %p243, %p244
    %p246 = scmp.ne.s32.totalorder %s238, %s241
    %p247 = scmp.eq.s32.totalorder %s33, 0
    %p248 = por %p246, %p247
    %p249 = scmp.ne.s32.totalorder %s238, %s241
    %p250 = scmp.eq.s32.totalorder %s38, 3
    %p251 = por %p249, %p250
    %p252 = scmp.ne.s32.totalorder %s241, %s242
    %p253 = scmp.eq.s32.totalorder %s38, 0
    %p254 = por %p252, %p253
    %p255 = scmp.ne.s32.totalorder %s241, %s242
    %p256 = scmp.eq.s32.totalorder %s39, 3
    %p257 = por %p255, %p256
    %p259 = scmp.ne.s32.totalorder %s242, %s258
    %p260 = scmp.eq.s32.totalorder %s39, 0
    %p261 = por %p259, %p260
    %s262 = ssub.s32 %s40, %s52
    %p263 = scmp.eq.s32.totalorder %s262, 0
    %s265 = sadd.s32 %s264, 1
    %s266 = scalar_select %p263, %s264, %s265
    %p269 = pneg %p263
    %p270 = scmp.eq.s32.totalorder %s33, 3
    %p271 = por %p269, %p270
    %p272 = scmp.ne.s32.totalorder %s264, %s267
    %p273 = scmp.eq.s32.totalorder %s33, 0
    %p274 = por %p272, %p273
    %p275 = scmp.ne.s32.totalorder %s264, %s267
    %p276 = scmp.eq.s32.totalorder %s38, 3
    %p277 = por %p275, %p276
    %p278 = scmp.ne.s32.totalorder %s267, %s268
    %p279 = scmp.eq.s32.totalorder %s38, 0
    %p280 = por %p278, %p279
    %p281 = scmp.ne.s32.totalorder %s267, %s268
    %p282 = scmp.eq.s32.totalorder %s39, 3
    %p283 = por %p281, %p282
    %p285 = scmp.ne.s32.totalorder %s268, %s284
    %p286 = scmp.eq.s32.totalorder %s39, 0
    %p287 = por %p285, %p286
    %s288 = ssub.s32 %s40, %s52
    %p289 = scmp.eq.s32.totalorder %s288, 0
    %s291 = sadd.s32 %s290, 1
    %s292 = scalar_select %p289, %s290, %s291
    %p295 = pneg %p289
    %p296 = scmp.eq.s32.totalorder %s33, 3
    %p297 = por %p295, %p296
    %p298 = scmp.ne.s32.totalorder %s290, %s293
    %p299 = scmp.eq.s32.totalorder %s33, 0
    %p300 = por %p298, %p299
    %p301 = scmp.ne.s32.totalorder %s290, %s293
    %p302 = scmp.eq.s32.totalorder %s38, 3
    %p303 = por %p301, %p302
    %p304 = scmp.ne.s32.totalorder %s293, %s294
    %p305 = scmp.eq.s32.totalorder %s38, 0
    %p306 = por %p304, %p305
    %p307 = scmp.ne.s32.totalorder %s293, %s294
    %p308 = scmp.eq.s32.totalorder %s39, 3
    %p309 = por %p307, %p308
    %p311 = scmp.ne.s32.totalorder %s294, %s310
    %p312 = scmp.eq.s32.totalorder %s39, 0
    %p313 = por %p311, %p312
    %s314 = ssub.s32 %s40, %s52
    %p315 = scmp.eq.s32.totalorder %s314, 0
    %s317 = sadd.s32 %s316, 1
    %s318 = scalar_select %p315, %s316, %s317
    %p321 = pneg %p315
    %p322 = scmp.eq.s32.totalorder %s33, 3
    %p323 = por %p321, %p322
    %p324 = scmp.ne.s32.totalorder %s316, %s319
    %p325 = scmp.eq.s32.totalorder %s33, 0
    %p326 = por %p324, %p325
    %p327 = scmp.ne.s32.totalorder %s316, %s319
    %p328 = scmp.eq.s32.totalorder %s38, 3
    %p329 = por %p327, %p328
    %p330 = scmp.ne.s32.totalorder %s319, %s320
    %p331 = scmp.eq.s32.totalorder %s38, 0
    %p332 = por %p330, %p331
    %p333 = scmp.ne.s32.totalorder %s319, %s320
    %p334 = scmp.eq.s32.totalorder %s39, 3
    %p335 = por %p333, %p334
    %p337 = scmp.ne.s32.totalorder %s320, %s336
    %p338 = scmp.eq.s32.totalorder %s39, 0
    %p339 = por %p337, %p338
    %s340 = ssub.s32 %s40, %s52
    %p341 = scmp.eq.s32.totalorder %s340, 0
    %s343 = sadd.s32 %s342, 1
    %s344 = scalar_select %p341, %s342, %s343
    %p347 = pneg %p341
    %p348 = scmp.eq.s32.totalorder %s33, 3
    %p349 = por %p347, %p348
    %p350 = scmp.ne.s32.totalorder %s342, %s345
    %p351 = scmp.eq.s32.totalorder %s33, 0
    %p352 = por %p350, %p351
    %p353 = scmp.ne.s32.totalorder %s342, %s345
    %p354 = scmp.eq.s32.totalorder %s38, 3
    %p355 = por %p353, %p354
    %p356 = scmp.ne.s32.totalorder %s345, %s346
    %p357 = scmp.eq.s32.totalorder %s38, 0
    %p358 = por %p356, %p357
    %p359 = scmp.ne.s32.totalorder %s345, %s346
    %p360 = scmp.eq.s32.totalorder %s39, 3
    %p361 = por %p359, %p360
    %p363 = scmp.ne.s32.totalorder %s346, %s362
    %p364 = scmp.eq.s32.totalorder %s39, 0
    %p365 = por %p363, %p364
    %s366 = ssub.s32 %s40, %s52
    %p367 = scmp.eq.s32.totalorder %s366, 0
    %s369 = sadd.s32 %s368, 1
    %s370 = scalar_select %p367, %s368, %s369
    %p373 = pneg %p367
    %p374 = scmp.eq.s32.totalorder %s33, 3
    %p375 = por %p373, %p374
    %p376 = scmp.ne.s32.totalorder %s368, %s371
    %p377 = scmp.eq.s32.totalorder %s33, 0
    %p378 = por %p376, %p377
    %p379 = scmp.ne.s32.totalorder %s368, %s371
    %p380 = scmp.eq.s32.totalorder %s38, 3
    %p381 = por %p379, %p380
    %p382 = scmp.ne.s32.totalorder %s371, %s372
    %p383 = scmp.eq.s32.totalorder %s38, 0
    %p384 = por %p382, %p383
    %p385 = scmp.ne.s32.totalorder %s371, %s372
    %p386 = scmp.eq.s32.totalorder %s39, 3
    %p387 = por %p385, %p386
    %p389 = scmp.ne.s32.totalorder %s372, %s388
    %p390 = scmp.eq.s32.totalorder %s39, 0
    %p391 = por %p389, %p390
    %s392 = ssub.s32 %s40, %s52
    %p393 = scmp.eq.s32.totalorder %s392, 0
    %s395 = sadd.s32 %s394, 1
    %s396 = scalar_select %p393, %s394, %s395
    %p399 = pneg %p393
    %p400 = scmp.eq.s32.totalorder %s33, 3
    %p401 = por %p399, %p400
    %p402 = scmp.ne.s32.totalorder %s394, %s397
    %p403 = scmp.eq.s32.totalorder %s33, 0
    %p404 = por %p402, %p403
    %p405 = scmp.ne.s32.totalorder %s394, %s397
    %p406 = scmp.eq.s32.totalorder %s38, 3
    %p407 = por %p405, %p406
    %p408 = scmp.ne.s32.totalorder %s397, %s398
    %p409 = scmp.eq.s32.totalorder %s38, 0
    %p410 = por %p408, %p409
    %p411 = scmp.ne.s32.totalorder %s397, %s398
    %p412 = scmp.eq.s32.totalorder %s39, 3
    %p413 = por %p411, %p412
    %p415 = scmp.ne.s32.totalorder %s398, %s414
    %p416 = scmp.eq.s32.totalorder %s39, 0
    %p417 = por %p415, %p416
    %s418 = ssub.s32 %s40, %s52
    %p419 = scmp.eq.s32.totalorder %s418, 0
    %s421 = sadd.s32 %s420, 1
    %s422 = scalar_select %p419, %s420, %s421
    %p425 = pneg %p419
    %p426 = scmp.eq.s32.totalorder %s33, 3
    %p427 = por %p425, %p426
    %p428 = scmp.ne.s32.totalorder %s420, %s423
    %p429 = scmp.eq.s32.totalorder %s33, 0
    %p430 = por %p428, %p429
    %p431 = scmp.ne.s32.totalorder %s420, %s423
    %p432 = scmp.eq.s32.totalorder %s38, 3
    %p433 = por %p431, %p432
    %p434 = scmp.ne.s32.totalorder %s423, %s424
    %p435 = scmp.eq.s32.totalorder %s38, 0
    %p436 = por %p434, %p435
    %p437 = scmp.ne.s32.totalorder %s423, %s424
    %p438 = scmp.eq.s32.totalorder %s39, 3
    %p439 = por %p437, %p438
    %p441 = scmp.ne.s32.totalorder %s424, %s440
    %p442 = scmp.eq.s32.totalorder %s39, 0
    %p443 = por %p441, %p442
    %s444 = ssub.s32 %s40, %s52
    %p445 = scmp.eq.s32.totalorder %s444, 0
    %s447 = sadd.s32 %s446, 1
    %s448 = scalar_select %p445, %s446, %s447
    %p451 = pneg %p445
    %p452 = scmp.eq.s32.totalorder %s33, 3
    %p453 = por %p451, %p452
    %p454 = scmp.ne.s32.totalorder %s446, %s449
    %p455 = scmp.eq.s32.totalorder %s33, 0
    %p456 = por %p454, %p455
    %p457 = scmp.ne.s32.totalorder %s446, %s449
    %p458 = scmp.eq.s32.totalorder %s38, 3
    %p459 = por %p457, %p458
    %p460 = scmp.ne.s32.totalorder %s449, %s450
    %p461 = scmp.eq.s32.totalorder %s38, 0
    %p462 = por %p460, %p461
    %p463 = scmp.ne.s32.totalorder %s449, %s450
    %p464 = scmp.eq.s32.totalorder %s39, 3
    %p465 = por %p463, %p464
    %p467 = scmp.ne.s32.totalorder %s450, %s466
    %p468 = scmp.eq.s32.totalorder %s39, 0
    %p469 = por %p467, %p468
    %s470 = ssub.s32 %s40, %s52
    %p471 = scmp.eq.s32.totalorder %s470, 0
    %s473 = sadd.s32 %s472, 1
    %s474 = scalar_select %p471, %s472, %s473
    %p477 = pneg %p471
    %p478 = scmp.eq.s32.totalorder %s33, 3
    %p479 = por %p477, %p478
    %p480 = scmp.ne.s32.totalorder %s472, %s475
    %p481 = scmp.eq.s32.totalorder %s33, 0
    %p482 = por %p480, %p481
    %p483 = scmp.ne.s32.totalorder %s472, %s475
    %p484 = scmp.eq.s32.totalorder %s38, 3
    %p485 = por %p483, %p484
    %p486 = scmp.ne.s32.totalorder %s475, %s476
    %p487 = scmp.eq.s32.totalorder %s38, 0
    %p488 = por %p486, %p487
    %p489 = scmp.ne.s32.totalorder %s475, %s476
    %p490 = scmp.eq.s32.totalorder %s39, 3
    %p491 = por %p489, %p490
    %p493 = scmp.ne.s32.totalorder %s476, %s492
    %p494 = scmp.eq.s32.totalorder %s39, 0
    %p495 = por %p493, %p494
    %s496 = ssub.s32 %s40, %s52
    %p497 = scmp.eq.s32.totalorder %s496, 0
    %s499 = sadd.s32 %s498, 1
    %s500 = scalar_select %p497, %s498, %s499
    %p503 = pneg %p497
    %p504 = scmp.eq.s32.totalorder %s33, 3
    %p505 = por %p503, %p504
    %p506 = scmp.ne.s32.totalorder %s498, %s501
    %p507 = scmp.eq.s32.totalorder %s33, 0
    %p508 = por %p506, %p507
    %p509 = scmp.ne.s32.totalorder %s498, %s501
    %p510 = scmp.eq.s32.totalorder %s38, 3
    %p511 = por %p509, %p510
    %p512 = scmp.ne.s32.totalorder %s501, %s502
    %p513 = scmp.eq.s32.totalorder %s38, 0
    %p514 = por %p512, %p513
    %p515 = scmp.ne.s32.totalorder %s501, %s502
    %p516 = scmp.eq.s32.totalorder %s39, 3
    %p517 = por %p515, %p516
    %p519 = scmp.ne.s32.totalorder %s502, %s518
    %p520 = scmp.eq.s32.totalorder %s39, 0
    %p521 = por %p519, %p520
    %s522 = ssub.s32 %s40, %s52
    %p523 = scmp.eq.s32.totalorder %s522, 0
    %s525 = sadd.s32 %s524, 1
    %s526 = scalar_select %p523, %s524, %s525
    %p529 = pneg %p523
    %p530 = scmp.eq.s32.totalorder %s33, 3
    %p531 = por %p529, %p530
    %p532 = scmp.ne.s32.totalorder %s524, %s527
    %p533 = scmp.eq.s32.totalorder %s33, 0
    %p534 = por %p532, %p533
    %p535 = scmp.ne.s32.totalorder %s524, %s527
    %p536 = scmp.eq.s32.totalorder %s38, 3
    %p537 = por %p535, %p536
    %p538 = scmp.ne.s32.totalorder %s527, %s528
    %p539 = scmp.eq.s32.totalorder %s38, 0
    %p540 = por %p538, %p539
    %p541 = scmp.ne.s32.totalorder %s527, %s528
    %p542 = scmp.eq.s32.totalorder %s39, 3
    %p543 = por %p541, %p542
    %p545 = scmp.ne.s32.totalorder %s528, %s544
    %p546 = scmp.eq.s32.totalorder %s39, 0
    %p547 = por %p545, %p546
    %s548 = ssub.s32 %s40, %s52
    %p549 = scmp.eq.s32.totalorder %s548, 0
    %s551 = sadd.s32 %s550, 1
    %s552 = scalar_select %p549, %s550, %s551
    %p555 = pneg %p549
    %p556 = scmp.eq.s32.totalorder %s33, 3
    %p557 = por %p555, %p556
    %p558 = scmp.ne.s32.totalorder %s550, %s553
    %p559 = scmp.eq.s32.totalorder %s33, 0
    %p560 = por %p558, %p559
    %p561 = scmp.ne.s32.totalorder %s550, %s553
    %p562 = scmp.eq.s32.totalorder %s38, 3
    %p563 = por %p561, %p562
    %p564 = scmp.ne.s32.totalorder %s553, %s554
    %p565 = scmp.eq.s32.totalorder %s38, 0
    %p566 = por %p564, %p565
    %p567 = scmp.ne.s32.totalorder %s553, %s554
    %p568 = scmp.eq.s32.totalorder %s39, 3
    %p569 = por %p567, %p568
    %p571 = scmp.ne.s32.totalorder %s554, %s570
    %p572 = scmp.eq.s32.totalorder %s39, 0
    %p573 = por %p571, %p572
    %s574 = ssub.s32 %s40, %s52
    %p575 = scmp.eq.s32.totalorder %s574, 0
    %s577 = sadd.s32 %s576, 1
    %s578 = scalar_select %p575, %s576, %s577
    %p581 = pneg %p575
    %p582 = scmp.eq.s32.totalorder %s33, 3
    %p583 = por %p581, %p582
    %p584 = scmp.ne.s32.totalorder %s576, %s579
    %p585 = scmp.eq.s32.totalorder %s33, 0
    %p586 = por %p584, %p585
    %p587 = scmp.ne.s32.totalorder %s576, %s579
    %p588 = scmp.eq.s32.totalorder %s38, 3
    %p589 = por %p587, %p588
    %p590 = scmp.ne.s32.totalorder %s579, %s580
    %p591 = scmp.eq.s32.totalorder %s38, 0
    %p592 = por %p590, %p591
    %p593 = scmp.ne.s32.totalorder %s579, %s580
    %p594 = scmp.eq.s32.totalorder %s39, 3
    %p595 = por %p593, %p594
    %p597 = scmp.ne.s32.totalorder %s580, %s596
    %p598 = scmp.eq.s32.totalorder %s39, 0
    %p599 = por %p597, %p598
    %s600 = ssub.s32 %s40, %s52
    %p601 = scmp.eq.s32.totalorder %s600, 0
    %s603 = sadd.s32 %s602, 1
    %s604 = scalar_select %p601, %s602, %s603
    %p607 = pneg %p601
    %p608 = scmp.eq.s32.totalorder %s33, 3
    %p609 = por %p607, %p608
    %p610 = scmp.ne.s32.totalorder %s602, %s605
    %p611 = scmp.eq.s32.totalorder %s33, 0
    %p612 = por %p610, %p611
    %p613 = scmp.ne.s32.totalorder %s602, %s605
    %p614 = scmp.eq.s32.totalorder %s38, 3
    %p615 = por %p613, %p614
    %p616 = scmp.ne.s32.totalorder %s605, %s606
    %p617 = scmp.eq.s32.totalorder %s38, 0
    %p618 = por %p616, %p617
    %p619 = scmp.ne.s32.totalorder %s605, %s606
    %p620 = scmp.eq.s32.totalorder %s39, 3
    %p621 = por %p619, %p620
    %p623 = scmp.ne.s32.totalorder %s606, %s622
    %p624 = scmp.eq.s32.totalorder %s39, 0
    %p625 = por %p623, %p624
    %s626 = ssub.s32 %s40, %s52
    %p627 = scmp.eq.s32.totalorder %s626, 0
    %s629 = sadd.s32 %s628, 1
    %s630 = scalar_select %p627, %s628, %s629
    %p633 = pneg %p627
    %p634 = scmp.eq.s32.totalorder %s33, 3
    %p635 = por %p633, %p634
    %p636 = scmp.ne.s32.totalorder %s628, %s631
    %p637 = scmp.eq.s32.totalorder %s33, 0
    %p638 = por %p636, %p637
    %p639 = scmp.ne.s32.totalorder %s628, %s631
    %p640 = scmp.eq.s32.totalorder %s38, 3
    %p641 = por %p639, %p640
    %p642 = scmp.ne.s32.totalorder %s631, %s632
    %p643 = scmp.eq.s32.totalorder %s38, 0
    %p644 = por %p642, %p643
    %p645 = scmp.ne.s32.totalorder %s631, %s632
    %p646 = scmp.eq.s32.totalorder %s39, 3
    %p647 = por %p645, %p646
    %p649 = scmp.ne.s32.totalorder %s632, %s648
    %p650 = scmp.eq.s32.totalorder %s39, 0
    %p651 = por %p649, %p650
    %s652 = ssub.s32 %s40, %s52
    %p653 = scmp.eq.s32.totalorder %s652, 0
    %s655 = sadd.s32 %s654, 1
    %s656 = scalar_select %p653, %s654, %s655
    %p659 = pneg %p653
    %p660 = scmp.eq.s32.totalorder %s33, 3
    %p661 = por %p659, %p660
    %p662 = scmp.ne.s32.totalorder %s654, %s657
    %p663 = scmp.eq.s32.totalorder %s33, 0
    %p664 = por %p662, %p663
    %p665 = scmp.ne.s32.totalorder %s654, %s657
    %p666 = scmp.eq.s32.totalorder %s38, 3
    %p667 = por %p665, %p666
    %p668 = scmp.ne.s32.totalorder %s657, %s658
    %p669 = scmp.eq.s32.totalorder %s38, 0
    %p670 = por %p668, %p669
    %p671 = scmp.ne.s32.totalorder %s657, %s658
    %p672 = scmp.eq.s32.totalorder %s39, 3
    %p673 = por %p671, %p672
    %p675 = scmp.ne.s32.totalorder %s658, %s674
    %p676 = scmp.eq.s32.totalorder %s39, 0
    %p677 = por %p675, %p676
    %s678 = ssub.s32 %s40, %s52
    %p679 = scmp.eq.s32.totalorder %s678, 0
    %s681 = sadd.s32 %s680, 1
    %s682 = scalar_select %p679, %s680, %s681
    %p685 = pneg %p679
    %p686 = scmp.eq.s32.totalorder %s33, 3
    %p687 = por %p685, %p686
    %p688 = scmp.ne.s32.totalorder %s680, %s683
    %p689 = scmp.eq.s32.totalorder %s33, 0
    %p690 = por %p688, %p689
    %p691 = scmp.ne.s32.totalorder %s680, %s683
    %p692 = scmp.eq.s32.totalorder %s38, 3
    %p693 = por %p691, %p692
    %p694 = scmp.ne.s32.totalorder %s683, %s684
    %p695 = scmp.eq.s32.totalorder %s38, 0
    %p696 = por %p694, %p695
    %p697 = scmp.ne.s32.totalorder %s683, %s684
    %p698 = scmp.eq.s32.totalorder %s39, 3
    %p699 = por %p697, %p698
    %p701 = scmp.ne.s32.totalorder %s684, %s700
    %p702 = scmp.eq.s32.totalorder %s39, 0
    %p703 = por %p701, %p702
    %s704 = ssub.s32 %s40, %s52
    %p705 = scmp.eq.s32.totalorder %s704, 0
    %s707 = sadd.s32 %s706, 1
    %s708 = scalar_select %p705, %s706, %s707
    %p711 = pneg %p705
    %p712 = scmp.eq.s32.totalorder %s33, 3
    %p713 = por %p711, %p712
    %p714 = scmp.ne.s32.totalorder %s706, %s709
    %p715 = scmp.eq.s32.totalorder %s33, 0
    %p716 = por %p714, %p715
    %p717 = scmp.ne.s32.totalorder %s706, %s709
    %p718 = scmp.eq.s32.totalorder %s38, 3
    %p719 = por %p717, %p718
    %p720 = scmp.ne.s32.totalorder %s709, %s710
    %p721 = scmp.eq.s32.totalorder %s38, 0
    %p722 = por %p720, %p721
    %p723 = scmp.ne.s32.totalorder %s709, %s710
    %p724 = scmp.eq.s32.totalorder %s39, 3
    %p725 = por %p723, %p724
    %p727 = scmp.ne.s32.totalorder %s710, %s726
    %p728 = scmp.eq.s32.totalorder %s39, 0
    %p729 = por %p727, %p728
    %s730 = ssub.s32 %s40, %s52
    %p731 = scmp.eq.s32.totalorder %s730, 0
    %s733 = sadd.s32 %s732, 1
    %s734 = scalar_select %p731, %s732, %s733
    %p737 = pneg %p731
    %p738 = scmp.eq.s32.totalorder %s33, 3
    %p739 = por %p737, %p738
    %p740 = scmp.ne.s32.totalorder %s732, %s735
    %p741 = scmp.eq.s32.totalorder %s33, 0
    %p742 = por %p740, %p741
    %p743 = scmp.ne.s32.totalorder %s732, %s735
    %p744 = scmp.eq.s32.totalorder %s38, 3
    %p745 = por %p743, %p744
    %p746 = scmp.ne.s32.totalorder %s735, %s736
    %p747 = scmp.eq.s32.totalorder %s38, 0
    %p748 = por %p746, %p747
    %p749 = scmp.ne.s32.totalorder %s735, %s736
    %p750 = scmp.eq.s32.totalorder %s39, 3
    %p751 = por %p749, %p750
    %p753 = scmp.ne.s32.totalorder %s736, %s752
    %p754 = scmp.eq.s32.totalorder %s39, 0
    %p755 = por %p753, %p754
    %s756 = ssub.s32 %s40, %s52
    %s757 = ssub.s32 %s41, %s48
    %s758 = sor.u32 %s756, %s757
    %p759 = scmp.eq.s32.totalorder %s758, 0
    %s761 = sadd.s32 %s760, 1
    %s762 = scalar_select %p759, %s760, %s761
    %p765 = pneg %p759
    %p766 = scmp.eq.s32.totalorder %s33, 3
    %p767 = por %p765, %p766
    %p768 = scmp.ne.s32.totalorder %s760, %s763
    %p769 = scmp.eq.s32.totalorder %s33, 0
    %p770 = por %p768, %p769
    %p771 = scmp.ne.s32.totalorder %s760, %s763
    %p772 = scmp.eq.s32.totalorder %s38, 3
    %p773 = por %p771, %p772
    %p774 = scmp.ne.s32.totalorder %s763, %s764
    %p775 = scmp.eq.s32.totalorder %s38, 0
    %p776 = por %p774, %p775
    %p777 = scmp.ne.s32.totalorder %s763, %s764
    %p778 = scmp.eq.s32.totalorder %s39, 3
    %p779 = por %p777, %p778
    %p781 = scmp.ne.s32.totalorder %s764, %s780
    %p782 = scmp.eq.s32.totalorder %s39, 0
    %p783 = por %p781, %p782
    %p784 = scmp.le.s32.totalorder 1, %s33
    %p785 = scmp.lt.s32.totalorder %s33, 5
    %p786 = pnand %p784, %p785
    %p787 = pneg %p786
    // Predicated region
    $region9: #{rcanet_forward.1} parent=5 // pred_check
      _
    $region10: #{rcanet_forward.1} parent=5 // pred_check_branch
      %789 = sbr.rel (%p786) target = $region12
    $region11: #{rcanet_forward.1} parent=5 // pred_region
      %s790 = ssub.s32 %s33, 1
      // Predicated region
      $region13: #{rcanet_forward.1} parent=11 // pred_check
        %p791 = pneg %p124
      $region14: #{rcanet_forward.1} parent=11 // pred_check_branch
        %793 = sbr.rel (%p791) target = $region16
      $region15: #{rcanet_forward.1} parent=11 // pred_region
        _
      $region16: #{rcanet_forward.1} parent=11 // pred_fallthru
        _
    $region12: #{rcanet_forward.1} parent=5 // pred_fallthru
      _
    %p794 = scmp.lt.s32.totalorder %s33, 4
    // Predicated region
    $region17: #{rcanet_forward.1} parent=5 // pred_check
      %p795 = pneg %p794
    $region18: #{rcanet_forward.1} parent=5 // pred_check_branch
      %797 = sbr.rel (%p795) target = $region20
    $region19: #{rcanet_forward.1} parent=5 // pred_region
      // Predicated region
      $region21: #{rcanet_forward.1} parent=19 // pred_check
        %p798 = pneg %p67
      $region22: #{rcanet_forward.1} parent=19 // pred_check_branch
        %800 = sbr.rel (%p798) target = $region24
      $region23: #{rcanet_forward.1} parent=19 // pred_region
        %p801 = scmp.lt.s32.totalorder %s40, 1
        %s802 = scalar_select %p801, %s40, 1
        %p803 = scmp.lt.s32.totalorder %s41, 1
        %s804 = scalar_select %p803, %s41, 1
        %s805 = smul.addr %s802, 2
        %s806 = sadd.s32 %s804, %s805
        %s807 = smul.addr %s806, 8
        %s808 = scalar_lea.vmem %s0, %s807
      $region24: #{rcanet_forward.1} parent=19 // pred_fallthru
        _
      // Predicated region
      $region25: #{rcanet_forward.1} parent=19 // pred_check
        %p809 = pneg %p97
      $region26: #{rcanet_forward.1} parent=19 // pred_check_branch
        %811 = sbr.rel (%p809) target = $region28
      $region27: #{rcanet_forward.1} parent=19 // pred_region
        %s812 = ssub.s32 1, %s40
        %p813 = scmp.lt.s32.totalorder %s812, 1
        %s814 = scalar_select %p813, %s812, 1
        %p815 = scmp.lt.s32.totalorder %s41, 1
        %s816 = scalar_select %p815, %s41, 1
        %s817 = smul.addr %s814, 2
        %s818 = sadd.s32 %s816, %s817
        %s819 = smul.addr %s818, 8
        %s820 = scalar_lea.vmem %s1, %s819
        %s821 = ssub.s32 1, %s40
      $region28: #{rcanet_forward.1} parent=19 // pred_fallthru
        _
      // Predicated region
      $region29: #{rcanet_forward.1} parent=19 // pred_check
        %p822 = pneg %p144
      $region30: #{rcanet_forward.1} parent=19 // pred_check_branch
        %824 = sbr.rel (%p822) target = $region32
      $region31: #{rcanet_forward.1} parent=19 // pred_region
        %p825 = scmp.lt.s32.totalorder %s40, 1
        %s826 = scalar_select %p825, %s40, 1
        %s827 = smul.addr %s826, 16
        %s828 = smul.addr %s827, 4
        %s829 = scalar_lea.vmem %s3, %s828
      $region32: #{rcanet_forward.1} parent=19 // pred_fallthru
        _
      // Predicated region
      $region33: #{rcanet_forward.1} parent=19 // pred_check
        %p830 = pneg %p170
      $region34: #{rcanet_forward.1} parent=19 // pred_check_branch
        %832 = sbr.rel (%p830) target = $region36
      $region35: #{rcanet_forward.1} parent=19 // pred_region
        %p833 = scmp.lt.s32.totalorder %s40, 1
        %s834 = scalar_select %p833, %s40, 1
        %s835 = smul.addr %s834, 4
        %s836 = scalar_lea.vmem %s4, %s835
      $region36: #{rcanet_forward.1} parent=19 // pred_fallthru
        _
      // Predicated region
      $region37: #{rcanet_forward.1} parent=19 // pred_check
        %p837 = pneg %p196
      $region38: #{rcanet_forward.1} parent=19 // pred_check_branch
        %839 = sbr.rel (%p837) target = $region40
      $region39: #{rcanet_forward.1} parent=19 // pred_region
        %p840 = scmp.lt.s32.totalorder %s40, 1
        %s841 = scalar_select %p840, %s40, 1
        %s842 = smul.addr %s841, 16
        %s843 = smul.addr %s842, 4
        %s844 = scalar_lea.vmem %s5, %s843
      $region40: #{rcanet_forward.1} parent=19 // pred_fallthru
        _
      // Predicated region
      $region41: #{rcanet_forward.1} parent=19 // pred_check
        %p845 = pneg %p222
      $region42: #{rcanet_forward.1} parent=19 // pred_check_branch
        %847 = sbr.rel (%p845) target = $region44
      $region43: #{rcanet_forward.1} parent=19 // pred_region
        %p848 = scmp.lt.s32.totalorder %s40, 1
        %s849 = scalar_select %p848, %s40, 1
        %s850 = smul.addr %s849, 4
        %s851 = scalar_lea.vmem %s6, %s850
      $region44: #{rcanet_forward.1} parent=19 // pred_fallthru
        _
      // Predicated region
      $region45: #{rcanet_forward.1} parent=19 // pred_check
        %p852 = pneg %p248
      $region46: #{rcanet_forward.1} parent=19 // pred_check_branch
        %854 = sbr.rel (%p852) target = $region48
      $region47: #{rcanet_forward.1} parent=19 // pred_region
        %p855 = scmp.lt.s32.totalorder %s40, 1
        %s856 = scalar_select %p855, %s40, 1
        %s857 = smul.addr %s856, 16
        %s858 = smul.addr %s857, 4
        %s859 = scalar_lea.vmem %s7, %s858
      $region48: #{rcanet_forward.1} parent=19 // pred_fallthru
        _
      // Predicated region
      $region49: #{rcanet_forward.1} parent=19 // pred_check
        %p860 = pneg %p274
      $region50: #{rcanet_forward.1} parent=19 // pred_check_branch
        %862 = sbr.rel (%p860) target = $region52
      $region51: #{rcanet_forward.1} parent=19 // pred_region
        %p863 = scmp.lt.s32.totalorder %s40, 1
        %s864 = scalar_select %p863, %s40, 1
        %s865 = smul.addr %s864, 4
        %s866 = scalar_lea.vmem %s8, %s865
      $region52: #{rcanet_forward.1} parent=19 // pred_fallthru
        _
      // Predicated region
      $region53: #{rcanet_forward.1} parent=19 // pred_check
        %p867 = pneg %p300
      $region54: #{rcanet_forward.1} parent=19 // pred_check_branch
        %869 = sbr.rel (%p867) target = $region56
      $region55: #{rcanet_forward.1} parent=19 // pred_region
        %p870 = scmp.lt.s32.totalorder %s40, 1
        %s871 = scalar_select %p870, %s40, 1
        %s872 = smul.addr %s871, 4
        %s873 = smul.addr %s872, 4
        %s874 = scalar_lea.vmem %s9, %s873
      $region56: #{rcanet_forward.1} parent=19 // pred_fallthru
        _
      // Predicated region
      $region57: #{rcanet_forward.1} parent=19 // pred_check
        %p875 = pneg %p326
      $region58: #{rcanet_forward.1} parent=19 // pred_check_branch
        %877 = sbr.rel (%p875) target = $region60
      $region59: #{rcanet_forward.1} parent=19 // pred_region
        %p878 = scmp.lt.s32.totalorder %s40, 1
        %s879 = scalar_select %p878, %s40, 1
        %s880 = scalar_lea.vmem %s10, %s879
      $region60: #{rcanet_forward.1} parent=19 // pred_fallthru
        _
      // Predicated region
      $region61: #{rcanet_forward.1} parent=19 // pred_check
        %p881 = pneg %p352
      $region62: #{rcanet_forward.1} parent=19 // pred_check_branch
        %883 = sbr.rel (%p881) target = $region64
      $region63: #{rcanet_forward.1} parent=19 // pred_region
        %p884 = scmp.lt.s32.totalorder %s40, 1
        %s885 = scalar_select %p884, %s40, 1
        %s886 = smul.addr %s885, 16
        %s887 = smul.addr %s886, 4
        %s888 = scalar_lea.vmem %s11, %s887
      $region64: #{rcanet_forward.1} parent=19 // pred_fallthru
        _
      // Predicated region
      $region65: #{rcanet_forward.1} parent=19 // pred_check
        %p889 = pneg %p378
      $region66: #{rcanet_forward.1} parent=19 // pred_check_branch
        %891 = sbr.rel (%p889) target = $region68
      $region67: #{rcanet_forward.1} parent=19 // pred_region
        %p892 = scmp.lt.s32.totalorder %s40, 1
        %s893 = scalar_select %p892, %s40, 1
        %s894 = smul.addr %s893, 4
        %s895 = scalar_lea.vmem %s12, %s894
      $region68: #{rcanet_forward.1} parent=19 // pred_fallthru
        _
      // Predicated region
      $region69: #{rcanet_forward.1} parent=19 // pred_check
        %p896 = pneg %p404
      $region70: #{rcanet_forward.1} parent=19 // pred_check_branch
        %898 = sbr.rel (%p896) target = $region72
      $region71: #{rcanet_forward.1} parent=19 // pred_region
        %p899 = scmp.lt.s32.totalorder %s40, 1
        %s900 = scalar_select %p899, %s40, 1
        %s901 = smul.addr %s900, 16
        %s902 = smul.addr %s901, 4
        %s903 = scalar_lea.vmem %s13, %s902
      $region72: #{rcanet_forward.1} parent=19 // pred_fallthru
        _
      // Predicated region
      $region73: #{rcanet_forward.1} parent=19 // pred_check
        %p904 = pneg %p430
      $region74: #{rcanet_forward.1} parent=19 // pred_check_branch
        %906 = sbr.rel (%p904) target = $region76
      $region75: #{rcanet_forward.1} parent=19 // pred_region
        %p907 = scmp.lt.s32.totalorder %s40, 1
        %s908 = scalar_select %p907, %s40, 1
        %s909 = smul.addr %s908, 4
        %s910 = scalar_lea.vmem %s14, %s909
      $region76: #{rcanet_forward.1} parent=19 // pred_fallthru
        _
      // Predicated region
      $region77: #{rcanet_forward.1} parent=19 // pred_check
        %p911 = pneg %p456
      $region78: #{rcanet_forward.1} parent=19 // pred_check_branch
        %913 = sbr.rel (%p911) target = $region80
      $region79: #{rcanet_forward.1} parent=19 // pred_region
        %p914 = scmp.lt.s32.totalorder %s40, 1
        %s915 = scalar_select %p914, %s40, 1
        %s916 = smul.addr %s915, 16
        %s917 = smul.addr %s916, 4
        %s918 = scalar_lea.vmem %s15, %s917
      $region80: #{rcanet_forward.1} parent=19 // pred_fallthru
        _
      // Predicated region
      $region81: #{rcanet_forward.1} parent=19 // pred_check
        %p919 = pneg %p482
      $region82: #{rcanet_forward.1} parent=19 // pred_check_branch
        %921 = sbr.rel (%p919) target = $region84
      $region83: #{rcanet_forward.1} parent=19 // pred_region
        %p922 = scmp.lt.s32.totalorder %s40, 1
        %s923 = scalar_select %p922, %s40, 1
        %s924 = smul.addr %s923, 4
        %s925 = scalar_lea.vmem %s16, %s924
      $region84: #{rcanet_forward.1} parent=19 // pred_fallthru
        _
      // Predicated region
      $region85: #{rcanet_forward.1} parent=19 // pred_check
        %p926 = pneg %p508
      $region86: #{rcanet_forward.1} parent=19 // pred_check_branch
        %928 = sbr.rel (%p926) target = $region88
      $region87: #{rcanet_forward.1} parent=19 // pred_region
        %p929 = scmp.lt.s32.totalorder %s40, 1
        %s930 = scalar_select %p929, %s40, 1
        %s931 = smul.addr %s930, 4
        %s932 = smul.addr %s931, 4
        %s933 = scalar_lea.vmem %s17, %s932
      $region88: #{rcanet_forward.1} parent=19 // pred_fallthru
        _
      // Predicated region
      $region89: #{rcanet_forward.1} parent=19 // pred_check
        %p934 = pneg %p534
      $region90: #{rcanet_forward.1} parent=19 // pred_check_branch
        %936 = sbr.rel (%p934) target = $region92
      $region91: #{rcanet_forward.1} parent=19 // pred_region
        %p937 = scmp.lt.s32.totalorder %s40, 1
        %s938 = scalar_select %p937, %s40, 1
        %s939 = scalar_lea.vmem %s18, %s938
      $region92: #{rcanet_forward.1} parent=19 // pred_fallthru
        _
      // Predicated region
      $region93: #{rcanet_forward.1} parent=19 // pred_check
        %p940 = pneg %p560
      $region94: #{rcanet_forward.1} parent=19 // pred_check_branch
        %942 = sbr.rel (%p940) target = $region96
      $region95: #{rcanet_forward.1} parent=19 // pred_region
        %p943 = scmp.lt.s32.totalorder %s40, 1
        %s944 = scalar_select %p943, %s40, 1
        %s945 = scalar_lea.vmem %s19, %s944
      $region96: #{rcanet_forward.1} parent=19 // pred_fallthru
        _
      // Predicated region
      $region97: #{rcanet_forward.1} parent=19 // pred_check
        %p946 = pneg %p586
      $region98: #{rcanet_forward.1} parent=19 // pred_check_branch
        %948 = sbr.rel (%p946) target = $region100
      $region99: #{rcanet_forward.1} parent=19 // pred_region
        %p949 = scmp.lt.s32.totalorder %s40, 1
        %s950 = scalar_select %p949, %s40, 1
        %s951 = scalar_lea.vmem %s20, %s950
      $region100: #{rcanet_forward.1} parent=19 // pred_fallthru
        _
      // Predicated region
      $region101: #{rcanet_forward.1} parent=19 // pred_check
        %p952 = pneg %p612
      $region102: #{rcanet_forward.1} parent=19 // pred_check_branch
        %954 = sbr.rel (%p952) target = $region104
      $region103: #{rcanet_forward.1} parent=19 // pred_region
        %p955 = scmp.lt.s32.totalorder %s40, 1
        %s956 = scalar_select %p955, %s40, 1
        %s957 = smul.addr %s956, 4
        %s958 = smul.addr %s957, 4
        %s959 = scalar_lea.vmem %s21, %s958
      $region104: #{rcanet_forward.1} parent=19 // pred_fallthru
        _
      // Predicated region
      $region105: #{rcanet_forward.1} parent=19 // pred_check
        %p960 = pneg %p638
      $region106: #{rcanet_forward.1} parent=19 // pred_check_branch
        %962 = sbr.rel (%p960) target = $region108
      $region107: #{rcanet_forward.1} parent=19 // pred_region
        %p963 = scmp.lt.s32.totalorder %s40, 1
        %s964 = scalar_select %p963, %s40, 1
        %s965 = scalar_lea.vmem %s22, %s964
      $region108: #{rcanet_forward.1} parent=19 // pred_fallthru
        _
      // Predicated region
      $region109: #{rcanet_forward.1} parent=19 // pred_check
        %p966 = pneg %p664
      $region110: #{rcanet_forward.1} parent=19 // pred_check_branch
        %968 = sbr.rel (%p966) target = $region112
      $region111: #{rcanet_forward.1} parent=19 // pred_region
        %p969 = scmp.lt.s32.totalorder %s40, 1
        %s970 = scalar_select %p969, %s40, 1
        %s971 = smul.addr %s970, 8
        %s972 = smul.addr %s971, 4
        %s973 = scalar_lea.vmem %s23, %s972
      $region112: #{rcanet_forward.1} parent=19 // pred_fallthru
        _
      // Predicated region
      $region113: #{rcanet_forward.1} parent=19 // pred_check
        %p974 = pneg %p690
      $region114: #{rcanet_forward.1} parent=19 // pred_check_branch
        %976 = sbr.rel (%p974) target = $region116
      $region115: #{rcanet_forward.1} parent=19 // pred_region
        %p977 = scmp.lt.s32.totalorder %s40, 1
        %s978 = scalar_select %p977, %s40, 1
        %s979 = scalar_lea.vmem %s24, %s978
      $region116: #{rcanet_forward.1} parent=19 // pred_fallthru
        _
      // Predicated region
      $region117: #{rcanet_forward.1} parent=19 // pred_check
        %p980 = pneg %p716
      $region118: #{rcanet_forward.1} parent=19 // pred_check_branch
        %982 = sbr.rel (%p980) target = $region120
      $region119: #{rcanet_forward.1} parent=19 // pred_region
        %p983 = scmp.lt.s32.totalorder %s40, 1
        %s984 = scalar_select %p983, %s40, 1
        %s985 = scalar_lea.vmem %s25, %s984
      $region120: #{rcanet_forward.1} parent=19 // pred_fallthru
        _
      // Predicated region
      $region121: #{rcanet_forward.1} parent=19 // pred_check
        %p986 = pneg %p742
      $region122: #{rcanet_forward.1} parent=19 // pred_check_branch
        %988 = sbr.rel (%p986) target = $region124
      $region123: #{rcanet_forward.1} parent=19 // pred_region
        %p989 = scmp.lt.s32.totalorder %s40, 1
        %s990 = scalar_select %p989, %s40, 1
        %s991 = scalar_lea.vmem %s26, %s990
      $region124: #{rcanet_forward.1} parent=19 // pred_fallthru
        _
    $region20: #{rcanet_forward.1} parent=5 // pred_fallthru
      _
    %p992 = scmp.le.s32.totalorder 1, %s33
    %p993 = scmp.lt.s32.totalorder %s33, 5
    %p994 = pnand %p992, %p993
    %p995 = pneg %p994
    // Predicated region
    $region125: #{rcanet_forward.1} parent=5 // pred_check
      _
    $region126: #{rcanet_forward.1} parent=5 // pred_check_branch
      %997 = sbr.rel (%p994) target = $region128
    $region127: #{rcanet_forward.1} parent=5 // pred_region
      %s998 = ssub.s32 %s33, 1
      %p999 = scmp.lt.s32.totalorder %s42, 1
      %s1000 = scalar_select %p999, %s42, 1
      %p1001 = scmp.lt.s32.totalorder %s43, 1
      %s1002 = scalar_select %p1001, %s43, 1
      %s1003 = smul.addr %s1000, 2
      %s1004 = sadd.s32 %s1002, %s1003
      %s1005 = smul.addr %s1004, 8
      %s1006 = scalar_lea.vmem %s0, %s1005
      %p1007 = pneg %p73
      %p1008 = pneg %p70
      %s1009 = ssub.s32 1, %s42
      %p1010 = scmp.lt.s32.totalorder %s1009, 1
      %s1011 = scalar_select %p1010, %s1009, 1
      %p1012 = scmp.lt.s32.totalorder %s43, 1
      %s1013 = scalar_select %p1012, %s43, 1
      %s1014 = smul.addr %s1011, 2
      %s1015 = sadd.s32 %s1013, %s1014
      %s1016 = smul.addr %s1015, 8
      %s1017 = scalar_lea.vmem %s1, %s1016
      %p1018 = pneg %p103
      %p1019 = pneg %p100
      %p1020 = pneg %p124
      %p1021 = pneg %p121
      %p1022 = scmp.lt.s32.totalorder %s42, 1
      %s1023 = scalar_select %p1022, %s42, 1
      %s1024 = smul.addr %s1023, 16
      %s1025 = smul.addr %s1024, 4
      %s1026 = scalar_lea.vmem %s3, %s1025
      %p1027 = pneg %p150
      %p1028 = pneg %p147
      %p1029 = scmp.lt.s32.totalorder %s42, 1
      %s1030 = scalar_select %p1029, %s42, 1
      %s1031 = smul.addr %s1030, 4
      %s1032 = scalar_lea.vmem %s4, %s1031
      %p1033 = pneg %p176
      %p1034 = pneg %p173
      %p1035 = scmp.lt.s32.totalorder %s42, 1
      %s1036 = scalar_select %p1035, %s42, 1
      %s1037 = smul.addr %s1036, 16
      %s1038 = smul.addr %s1037, 4
      %s1039 = scalar_lea.vmem %s5, %s1038
      %p1040 = pneg %p202
      %p1041 = pneg %p199
      %p1042 = scmp.lt.s32.totalorder %s42, 1
      %s1043 = scalar_select %p1042, %s42, 1
      %s1044 = smul.addr %s1043, 4
      %s1045 = scalar_lea.vmem %s6, %s1044
      %p1046 = pneg %p228
      %p1047 = pneg %p225
      %p1048 = scmp.lt.s32.totalorder %s42, 1
      %s1049 = scalar_select %p1048, %s42, 1
      %s1050 = smul.addr %s1049, 16
      %s1051 = smul.addr %s1050, 4
      %s1052 = scalar_lea.vmem %s7, %s1051
      %p1053 = pneg %p254
      %p1054 = pneg %p251
      %p1055 = scmp.lt.s32.totalorder %s42, 1
      %s1056 = scalar_select %p1055, %s42, 1
      %s1057 = smul.addr %s1056, 4
      %s1058 = scalar_lea.vmem %s8, %s1057
      %p1059 = pneg %p280
      %p1060 = pneg %p277
      %p1061 = scmp.lt.s32.totalorder %s42, 1
      %s1062 = scalar_select %p1061, %s42, 1
      %s1063 = smul.addr %s1062, 4
      %s1064 = smul.addr %s1063, 4
      %s1065 = scalar_lea.vmem %s9, %s1064
      %p1066 = pneg %p306
      %p1067 = pneg %p303
      %p1068 = scmp.lt.s32.totalorder %s42, 1
      %s1069 = scalar_select %p1068, %s42, 1
      %s1070 = scalar_lea.vmem %s10, %s1069
      %p1071 = pneg %p332
      %p1072 = pneg %p329
      %p1073 = scmp.lt.s32.totalorder %s42, 1
      %s1074 = scalar_select %p1073, %s42, 1
      %s1075 = smul.addr %s1074, 16
      %s1076 = smul.addr %s1075, 4
      %s1077 = scalar_lea.vmem %s11, %s1076
      %p1078 = pneg %p358
      %p1079 = pneg %p355
      %p1080 = scmp.lt.s32.totalorder %s42, 1
      %s1081 = scalar_select %p1080, %s42, 1
      %s1082 = smul.addr %s1081, 4
      %s1083 = scalar_lea.vmem %s12, %s1082
      %p1084 = pneg %p384
      %p1085 = pneg %p381
      %p1086 = scmp.lt.s32.totalorder %s42, 1
      %s1087 = scalar_select %p1086, %s42, 1
      %s1088 = smul.addr %s1087, 16
      %s1089 = smul.addr %s1088, 4
      %s1090 = scalar_lea.vmem %s13, %s1089
      %p1091 = pneg %p410
      %p1092 = pneg %p407
      %p1093 = scmp.lt.s32.totalorder %s42, 1
      %s1094 = scalar_select %p1093, %s42, 1
      %s1095 = smul.addr %s1094, 4
      %s1096 = scalar_lea.vmem %s14, %s1095
      %p1097 = pneg %p436
      %p1098 = pneg %p433
      %p1099 = scmp.lt.s32.totalorder %s42, 1
      %s1100 = scalar_select %p1099, %s42, 1
      %s1101 = smul.addr %s1100, 16
      %s1102 = smul.addr %s1101, 4
      %s1103 = scalar_lea.vmem %s15, %s1102
      %p1104 = pneg %p462
      %p1105 = pneg %p459
      %p1106 = scmp.lt.s32.totalorder %s42, 1
      %s1107 = scalar_select %p1106, %s42, 1
      %s1108 = smul.addr %s1107, 4
      %s1109 = scalar_lea.vmem %s16, %s1108
      %p1110 = pneg %p488
      %p1111 = pneg %p485
      %p1112 = scmp.lt.s32.totalorder %s42, 1
      %s1113 = scalar_select %p1112, %s42, 1
      %s1114 = smul.addr %s1113, 4
      %s1115 = smul.addr %s1114, 4
      %s1116 = scalar_lea.vmem %s17, %s1115
      %p1117 = pneg %p514
      %p1118 = pneg %p511
      %p1119 = scmp.lt.s32.totalorder %s42, 1
      %s1120 = scalar_select %p1119, %s42, 1
      %s1121 = scalar_lea.vmem %s18, %s1120
      %p1122 = pneg %p540
      %p1123 = pneg %p537
      %p1124 = scmp.lt.s32.totalorder %s42, 1
      %s1125 = scalar_select %p1124, %s42, 1
      %s1126 = scalar_lea.vmem %s19, %s1125
      %p1127 = pneg %p566
      %p1128 = pneg %p563
      %p1129 = scmp.lt.s32.totalorder %s42, 1
      %s1130 = scalar_select %p1129, %s42, 1
      %s1131 = scalar_lea.vmem %s20, %s1130
      %p1132 = pneg %p592
      %p1133 = pneg %p589
      %p1134 = scmp.lt.s32.totalorder %s42, 1
      %s1135 = scalar_select %p1134, %s42, 1
      %s1136 = smul.addr %s1135, 4
      %s1137 = smul.addr %s1136, 4
      %s1138 = scalar_lea.vmem %s21, %s1137
      %p1139 = pneg %p618
      %p1140 = pneg %p615
      %p1141 = scmp.lt.s32.totalorder %s42, 1
      %s1142 = scalar_select %p1141, %s42, 1
      %s1143 = scalar_lea.vmem %s22, %s1142
      %p1144 = pneg %p644
      %p1145 = pneg %p641
      %p1146 = scmp.lt.s32.totalorder %s42, 1
      %s1147 = scalar_select %p1146, %s42, 1
      %s1148 = smul.addr %s1147, 8
      %s1149 = smul.addr %s1148, 4
      %s1150 = scalar_lea.vmem %s23, %s1149
      %p1151 = pneg %p670
      %p1152 = pneg %p667
      %p1153 = scmp.lt.s32.totalorder %s42, 1
      %s1154 = scalar_select %p1153, %s42, 1
      %s1155 = scalar_lea.vmem %s24, %s1154
      %p1156 = pneg %p696
      %p1157 = pneg %p693
      %p1158 = scmp.lt.s32.totalorder %s42, 1
      %s1159 = scalar_select %p1158, %s42, 1
      %s1160 = scalar_lea.vmem %s25, %s1159
      %p1161 = pneg %p722
      %p1162 = pneg %p719
      %p1163 = scmp.lt.s32.totalorder %s42, 1
      %s1164 = scalar_select %p1163, %s42, 1
      %s1165 = scalar_lea.vmem %s26, %s1164
      %p1166 = pneg %p748
      %p1167 = pneg %p745
      %p1168 = pneg %p776
      %p1169 = pneg %p773
      %p1170 = scmp.lt.s32.totalorder %s42, 1
      %s1171 = scalar_select %p1170, %s42, 1
      %p1172 = scmp.lt.s32.totalorder %s43, 1
      %s1173 = scalar_select %p1172, %s43, 1
      %s1174 = smul.addr %s1171, 2
      %s1175 = sadd.s32 %s1173, %s1174
      %s1176 = smul.addr %s1175, 8
      %s1177 = scalar_lea.vmem %s27, %s1176
      %p1178 = scmp.lt.s32.totalorder %s42, 1
      %s1179 = scalar_select %p1178, %s42, 1
      %p1180 = scmp.lt.s32.totalorder %s43, 1
      %s1181 = scalar_select %p1180, %s43, 1
      %s1182 = smul.addr %s1179, 2
      %s1183 = sadd.s32 %s1181, %s1182
      %s1184 = smul.addr %s1183, 8
      %s1185 = scalar_lea.vmem %s0, %s1184
      %s1186 = ssub.s32 1, %s42
      %p1187 = scmp.lt.s32.totalorder %s1186, 1
      %s1188 = scalar_select %p1187, %s1186, 1
      %p1189 = scmp.lt.s32.totalorder %s43, 1
      %s1190 = scalar_select %p1189, %s43, 1
      %s1191 = smul.addr %s1188, 2
      %s1192 = sadd.s32 %s1190, %s1191
      %s1193 = smul.addr %s1192, 8
      %s1194 = scalar_lea.vmem %s1, %s1193
      %s1195 = ssub.s32 1, %s42
      %p1196 = scmp.lt.s32.totalorder %s42, 1
      %s1197 = scalar_select %p1196, %s42, 1
      %s1198 = smul.addr %s1197, 16
      %s1199 = smul.addr %s1198, 4
      %s1200 = scalar_lea.vmem %s3, %s1199
      %p1201 = scmp.lt.s32.totalorder %s42, 1
      %s1202 = scalar_select %p1201, %s42, 1
      %s1203 = smul.addr %s1202, 4
      %s1204 = scalar_lea.vmem %s4, %s1203
      %p1205 = scmp.lt.s32.totalorder %s42, 1
      %s1206 = scalar_select %p1205, %s42, 1
      %s1207 = smul.addr %s1206, 16
      %s1208 = smul.addr %s1207, 4
      %s1209 = scalar_lea.vmem %s5, %s1208
      %p1210 = scmp.lt.s32.totalorder %s42, 1
      %s1211 = scalar_select %p1210, %s42, 1
      %s1212 = smul.addr %s1211, 4
      %s1213 = scalar_lea.vmem %s6, %s1212
      %p1214 = scmp.lt.s32.totalorder %s42, 1
      %s1215 = scalar_select %p1214, %s42, 1
      %s1216 = smul.addr %s1215, 16
      %s1217 = smul.addr %s1216, 4
      %s1218 = scalar_lea.vmem %s7, %s1217
      %p1219 = scmp.lt.s32.totalorder %s42, 1
      %s1220 = scalar_select %p1219, %s42, 1
      %s1221 = smul.addr %s1220, 4
      %s1222 = scalar_lea.vmem %s8, %s1221
      %p1223 = scmp.lt.s32.totalorder %s42, 1
      %s1224 = scalar_select %p1223, %s42, 1
      %s1225 = smul.addr %s1224, 4
      %s1226 = smul.addr %s1225, 4
      %s1227 = scalar_lea.vmem %s9, %s1226
      %p1228 = scmp.lt.s32.totalorder %s42, 1
      %s1229 = scalar_select %p1228, %s42, 1
      %s1230 = scalar_lea.vmem %s10, %s1229
      %p1231 = scmp.lt.s32.totalorder %s42, 1
      %s1232 = scalar_select %p1231, %s42, 1
      %s1233 = smul.addr %s1232, 16
      %s1234 = smul.addr %s1233, 4
      %s1235 = scalar_lea.vmem %s11, %s1234
      %p1236 = scmp.lt.s32.totalorder %s42, 1
      %s1237 = scalar_select %p1236, %s42, 1
      %s1238 = smul.addr %s1237, 4
      %s1239 = scalar_lea.vmem %s12, %s1238
      %p1240 = scmp.lt.s32.totalorder %s42, 1
      %s1241 = scalar_select %p1240, %s42, 1
      %s1242 = smul.addr %s1241, 16
      %s1243 = smul.addr %s1242, 4
      %s1244 = scalar_lea.vmem %s13, %s1243
      %p1245 = scmp.lt.s32.totalorder %s42, 1
      %s1246 = scalar_select %p1245, %s42, 1
      %s1247 = smul.addr %s1246, 4
      %s1248 = scalar_lea.vmem %s14, %s1247
      %p1249 = scmp.lt.s32.totalorder %s42, 1
      %s1250 = scalar_select %p1249, %s42, 1
      %s1251 = smul.addr %s1250, 16
      %s1252 = smul.addr %s1251, 4
      %s1253 = scalar_lea.vmem %s15, %s1252
      %p1254 = scmp.lt.s32.totalorder %s42, 1
      %s1255 = scalar_select %p1254, %s42, 1
      %s1256 = smul.addr %s1255, 4
      %s1257 = scalar_lea.vmem %s16, %s1256
      %p1258 = scmp.lt.s32.totalorder %s42, 1
      %s1259 = scalar_select %p1258, %s42, 1
      %s1260 = smul.addr %s1259, 4
      %s1261 = smul.addr %s1260, 4
      %s1262 = scalar_lea.vmem %s17, %s1261
      %p1263 = scmp.lt.s32.totalorder %s42, 1
      %s1264 = scalar_select %p1263, %s42, 1
      %s1265 = scalar_lea.vmem %s18, %s1264
      %p1266 = scmp.lt.s32.totalorder %s42, 1
      %s1267 = scalar_select %p1266, %s42, 1
      %s1268 = scalar_lea.vmem %s19, %s1267
      %p1269 = scmp.lt.s32.totalorder %s42, 1
      %s1270 = scalar_select %p1269, %s42, 1
      %s1271 = scalar_lea.vmem %s20, %s1270
      %p1272 = scmp.lt.s32.totalorder %s42, 1
      %s1273 = scalar_select %p1272, %s42, 1
      %s1274 = smul.addr %s1273, 4
      %s1275 = smul.addr %s1274, 4
      %s1276 = scalar_lea.vmem %s21, %s1275
      %p1277 = scmp.lt.s32.totalorder %s42, 1
      %s1278 = scalar_select %p1277, %s42, 1
      %s1279 = scalar_lea.vmem %s22, %s1278
      %p1280 = scmp.lt.s32.totalorder %s42, 1
      %s1281 = scalar_select %p1280, %s42, 1
      %s1282 = smul.addr %s1281, 8
      %s1283 = smul.addr %s1282, 4
      %s1284 = scalar_lea.vmem %s23, %s1283
      %p1285 = scmp.lt.s32.totalorder %s42, 1
      %s1286 = scalar_select %p1285, %s42, 1
      %s1287 = scalar_lea.vmem %s24, %s1286
      %p1288 = scmp.lt.s32.totalorder %s42, 1
      %s1289 = scalar_select %p1288, %s42, 1
      %s1290 = scalar_lea.vmem %s25, %s1289
      %p1291 = scmp.lt.s32.totalorder %s42, 1
      %s1292 = scalar_select %p1291, %s42, 1
      %s1293 = scalar_lea.vmem %s26, %s1292
      %p1294 = scmp.lt.s32.totalorder %s42, 1
      %s1295 = scalar_select %p1294, %s42, 1
      %p1296 = scmp.lt.s32.totalorder %s43, 1
      %s1297 = scalar_select %p1296, %s43, 1
      %s1298 = smul.addr %s1295, 2
      %s1299 = sadd.s32 %s1297, %s1298
      %s1300 = smul.addr %s1299, 8
      %s1301 = scalar_lea.vmem %s27, %s1300
      %v1303 = vld [vmem:[%s2] sm:$0xff]
      %v1304 = vld [vmem:[%s1185] sm:$0xff]
      %v1305 = vadd.f32 %v1304, %v1303
      %v1306 = vld [vmem:[%s1194] sm:$0xff]
      %v1307 = vadd.f32 %v1306, %v1303
      %v1308 = vld [vmem:[%s1200] sm:$0xf]
      %v1309 = vld [vmem:[%s1200 + $0x4] sm:$0xf]
      %v1310 = vld [vmem:[%s1200 + $0x8] sm:$0xf]
      %v1311 = vld [vmem:[%s1200 + $0xc] sm:$0xf]
      %v1312 = vld [vmem:[%s1200 + $0x10] sm:$0xf]
      %v1313 = vld [vmem:[%s1200 + $0x14] sm:$0xf]
      %v1314 = vld [vmem:[%s1200 + $0x18] sm:$0xf]
      %v1315 = vld [vmem:[%s1200 + $0x1c] sm:$0xf]
      %v1316 = vld [vmem:[%s1200 + $0x20] sm:$0xf]
      %v1317 = vld [vmem:[%s1200 + $0x24] sm:$0xf]
      %v1318 = vld [vmem:[%s1200 + $0x28] sm:$0xf]
      %v1319 = vld [vmem:[%s1200 + $0x2c] sm:$0xf]
      %v1320 = vld [vmem:[%s1200 + $0x30] sm:$0xf]
      %v1321 = vld [vmem:[%s1200 + $0x34] sm:$0xf]
      %v1322 = vld [vmem:[%s1200 + $0x38] sm:$0xf]
      %v1323 = vld [vmem:[%s1200 + $0x3c] sm:$0xf]
      %v1324 = vld [vmem:[%s1204] sm:$0x1]
      %v1325 = vld [vmem:[%s1204 + $0x1] sm:$0x1]
      %v1326 = vld [vmem:[%s1204 + $0x2] sm:$0x1]
      %v1327 = vld [vmem:[%s1204 + $0x3] sm:$0x1]
      %v1328 = vld [vmem:[%s1209] sm:$0xf]
      %v1329 = vld [vmem:[%s1209 + $0x4] sm:$0xf]
      %v1330 = vld [vmem:[%s1209 + $0x8] sm:$0xf]
      %v1331 = vld [vmem:[%s1209 + $0xc] sm:$0xf]
      %v1332 = vld [vmem:[%s1209 + $0x10] sm:$0xf]
      %v1333 = vld [vmem:[%s1209 + $0x14] sm:$0xf]
      %v1334 = vld [vmem:[%s1209 + $0x18] sm:$0xf]
      %v1335 = vld [vmem:[%s1209 + $0x1c] sm:$0xf]
      %v1336 = vld [vmem:[%s1209 + $0x20] sm:$0xf]
      %v1337 = vld [vmem:[%s1209 + $0x24] sm:$0xf]
      %v1338 = vld [vmem:[%s1209 + $0x28] sm:$0xf]
      %v1339 = vld [vmem:[%s1209 + $0x2c] sm:$0xf]
      %v1340 = vld [vmem:[%s1209 + $0x30] sm:$0xf]
      %v1341 = vld [vmem:[%s1209 + $0x34] sm:$0xf]
      %v1342 = vld [vmem:[%s1209 + $0x38] sm:$0xf]
      %v1343 = vld [vmem:[%s1209 + $0x3c] sm:$0xf]
      %v1344 = vld [vmem:[%s1213] sm:$0x1]
      %v1345 = vld [vmem:[%s1213 + $0x1] sm:$0x1]
      %v1346 = vld [vmem:[%s1213 + $0x2] sm:$0x1]
      %v1347 = vld [vmem:[%s1213 + $0x3] sm:$0x1]
      %v1348 = vld [vmem:[%s1218] sm:$0xf]
      %v1349 = vld [vmem:[%s1218 + $0x4] sm:$0xf]
      %v1350 = vld [vmem:[%s1218 + $0x8] sm:$0xf]
      %v1351 = vld [vmem:[%s1218 + $0xc] sm:$0xf]
      %v1352 = vld [vmem:[%s1218 + $0x10] sm:$0xf]
      %v1353 = vld [vmem:[%s1218 + $0x14] sm:$0xf]
      %v1354 = vld [vmem:[%s1218 + $0x18] sm:$0xf]
      %v1355 = vld [vmem:[%s1218 + $0x1c] sm:$0xf]
      %v1356 = vld [vmem:[%s1218 + $0x20] sm:$0xf]
      %v1357 = vld [vmem:[%s1218 + $0x24] sm:$0xf]
      %v1358 = vld [vmem:[%s1218 + $0x28] sm:$0xf]
      %v1359 = vld [vmem:[%s1218 + $0x2c] sm:$0xf]
      %v1360 = vld [vmem:[%s1218 + $0x30] sm:$0xf]
      %v1361 = vld [vmem:[%s1218 + $0x34] sm:$0xf]
      %v1362 = vld [vmem:[%s1218 + $0x38] sm:$0xf]
      %v1363 = vld [vmem:[%s1218 + $0x3c] sm:$0xf]
      %v1364 = vld [vmem:[%s1222] sm:$0x1]
      %v1365 = vld [vmem:[%s1222 + $0x1] sm:$0x1]
      %v1366 = vld [vmem:[%s1222 + $0x2] sm:$0x1]
      %v1367 = vld [vmem:[%s1222 + $0x3] sm:$0x1]
      %v1368 = vld [vmem:[%s1227] sm:$0xf]
      %v1369 = vld [vmem:[%s1227 + $0x4] sm:$0xf]
      %v1370 = vld [vmem:[%s1227 + $0x8] sm:$0xf]
      %v1371 = vld [vmem:[%s1227 + $0xc] sm:$0xf]
      %v1372 = vld [vmem:[%s1230] sm:$0x1]
      %v1373 = vpack.c.bf16 %v1305, %v1305
      %v1378 = vlaneseq
      %v1379 = vshrl.u32 %v1378, 7
      %v1380 = vsub.s32 0, %v1379
      %v1381 = vrot.slane %v1324, %v1380
      %v1382 = vlaneseq
      %v1383 = vshrl.u32 %v1382, 7
      %v1384 = vsub.s32 0, %v1383
      %v1385 = vrot.slane %v1325, %v1384
      %v1386 = vlaneseq
      %v1387 = vshrl.u32 %v1386, 7
      %v1388 = vsub.s32 0, %v1387
      %v1389 = vrot.slane %v1326, %v1388
      %v1390 = vlaneseq
      %v1391 = vshrl.u32 %v1390, 7
      %v1392 = vsub.s32 0, %v1391
      %v1393 = vrot.slane %v1327, %v1392
      %v1402 = vunpack.c.l.b16 %v1308
      %v1403 = vunpack.c.l.b16 %v1309
      %v1404 = vunpack.c.l.b16 %v1310
      %v1405 = vunpack.c.l.b16 %v1311
      %v1406 = vpack.c.b16 %v1403, %v1402
      %v1407 = vpack.c.b16 %v1405, %v1404
      %vm1410 = vcmask 261120
      %v1412 = vsel %vm1410, %v1373, 0
      %1414 = vmatprep.subr.bf16.mxu0 0
      %1415 = vmatpush1.bf16.msra.mxu0 %v1406
      %1416 = vmatprep.subr.bf16.mxu0 0
      %1417 = vmatpush1.bf16.msra.mxu0 %v1407
      %1418 = vmatprep.subr.bf16.mxu0 0
      %1419 = vmatpush1.bf16.msra.mxu0 0
      %1420 = vmatprep.subr.bf16.mxu0 0
      %1421 = vmatpush1.bf16.msra.mxu0 0
      %1422 = vmatprep.subr.bf16.mxu0 0
      %1423 = vmatpush1.bf16.msra.mxu0 0
      %1424 = vmatprep.subr.bf16.mxu0 0
      %1425 = vmatpush1.bf16.msra.mxu0 0
      %1426 = vmatprep.subr.bf16.mxu0 0
      %1427 = vmatpush1.bf16.msra.mxu0 0
      %1428 = vmatprep.subr.bf16.mxu0 0
      %1429 = vmatpush1.bf16.msra.mxu0 0
      %1430 = vmatprep.subr.bf16.mxu0 0
      %1431 = vmatpush1.bf16.msra.mxu0 0
      %1432 = vmatprep.subr.bf16.mxu0 0
      %1433 = vmatpush1.bf16.msra.mxu0 0
      %1434 = vmatprep.subr.bf16.mxu0 0
      %1435 = vmatpush1.bf16.msra.mxu0 0
      %1436 = vmatprep.subr.bf16.mxu0 0
      %1437 = vmatpush1.bf16.msra.mxu0 0
      %1438 = vmatprep.subr.bf16.mxu0 0
      %1439 = vmatpush1.bf16.msra.mxu0 0
      %1440 = vmatprep.subr.bf16.mxu0 0
      %1441 = vmatpush1.bf16.msra.mxu0 0
      %1442 = vmatprep.subr.bf16.mxu0 0
      %1443 = vmatpush1.bf16.msra.mxu0 0
      %1444 = vmatprep.subr.bf16.mxu0 0
      %1445 = vmatpush1.bf16.msra.mxu0 0
      %1446 = vmatprep.mubr.bf16.mxu0 0
      %1447 = vmatmul.mubr.bf16.gmra.mrb[0].mxu0 %v1412
      %v1448 = vpop.f32.mrb[0].mxu0
      %v1449 = vadd.f32 %v1381, %v1448
      %v1450 = vpop.f32.mrb[0].mxu0
      %v1451 = vpop.f32.mrb[0].mxu0
      %v1452 = vpop.f32.mrb[0].mxu0
      %1453 = vdwg.mxu0
      %v1458 = vunpack.c.l.b16 %v1312
      %v1459 = vunpack.c.l.b16 %v1313
      %v1460 = vunpack.c.l.b16 %v1314
      %v1461 = vunpack.c.l.b16 %v1315
      %v1462 = vpack.c.b16 %v1459, %v1458
      %v1463 = vpack.c.b16 %v1461, %v1460
      %1466 = vmatprep.subr.bf16.mxu0 0
      %1467 = vmatpush1.bf16.msra.mxu0 %v1462
      %1468 = vmatprep.subr.bf16.mxu0 0
      %1469 = vmatpush1.bf16.msra.mxu0 %v1463
      %1470 = vmatprep.subr.bf16.mxu0 0
      %1471 = vmatpush1.bf16.msra.mxu0 0
      %1472 = vmatprep.subr.bf16.mxu0 0
      %1473 = vmatpush1.bf16.msra.mxu0 0
      %1474 = vmatprep.subr.bf16.mxu0 0
      %1475 = vmatpush1.bf16.msra.mxu0 0
      %1476 = vmatprep.subr.bf16.mxu0 0
      %1477 = vmatpush1.bf16.msra.mxu0 0
      %1478 = vmatprep.subr.bf16.mxu0 0
      %1479 = vmatpush1.bf16.msra.mxu0 0
      %1480 = vmatprep.subr.bf16.mxu0 0
      %1481 = vmatpush1.bf16.msra.mxu0 0
      %1482 = vmatprep.subr.bf16.mxu0 0
      %1483 = vmatpush1.bf16.msra.mxu0 0
      %1484 = vmatprep.subr.bf16.mxu0 0
      %1485 = vmatpush1.bf16.msra.mxu0 0
      %1486 = vmatprep.subr.bf16.mxu0 0
      %1487 = vmatpush1.bf16.msra.mxu0 0
      %1488 = vmatprep.subr.bf16.mxu0 0
      %1489 = vmatpush1.bf16.msra.mxu0 0
      %1490 = vmatprep.subr.bf16.mxu0 0
      %1491 = vmatpush1.bf16.msra.mxu0 0
      %1492 = vmatprep.subr.bf16.mxu0 0
      %1493 = vmatpush1.bf16.msra.mxu0 0
      %1494 = vmatprep.subr.bf16.mxu0 0
      %1495 = vmatpush1.bf16.msra.mxu0 0
      %1496 = vmatprep.subr.bf16.mxu0 0
      %1497 = vmatpush1.bf16.msra.mxu0 0
      %1498 = vmatprep.mubr.bf16.mxu0 0
      %1499 = vmatmul.mubr.bf16.gmra.mrb[0].mxu0 %v1412
      %v1500 = vpop.f32.mrb[0].mxu0
      %v1501 = vadd.f32 %v1385, %v1500
      %v1502 = vpop.f32.mrb[0].mxu0
      %v1503 = vpop.f32.mrb[0].mxu0
      %v1504 = vpop.f32.mrb[0].mxu0
      %1505 = vdwg.mxu0
      %v1510 = vunpack.c.l.b16 %v1316
      %v1511 = vunpack.c.l.b16 %v1317
      %v1512 = vunpack.c.l.b16 %v1318
      %v1513 = vunpack.c.l.b16 %v1319
      %v1514 = vpack.c.b16 %v1511, %v1510
      %v1515 = vpack.c.b16 %v1513, %v1512
      %1518 = vmatprep.subr.bf16.mxu0 0
      %1519 = vmatpush1.bf16.msra.mxu0 %v1514
      %1520 = vmatprep.subr.bf16.mxu0 0
      %1521 = vmatpush1.bf16.msra.mxu0 %v1515
      %1522 = vmatprep.subr.bf16.mxu0 0
      %1523 = vmatpush1.bf16.msra.mxu0 0
      %1524 = vmatprep.subr.bf16.mxu0 0
      %1525 = vmatpush1.bf16.msra.mxu0 0
      %1526 = vmatprep.subr.bf16.mxu0 0
      %1527 = vmatpush1.bf16.msra.mxu0 0
      %1528 = vmatprep.subr.bf16.mxu0 0
      %1529 = vmatpush1.bf16.msra.mxu0 0
      %1530 = vmatprep.subr.bf16.mxu0 0
      %1531 = vmatpush1.bf16.msra.mxu0 0
      %1532 = vmatprep.subr.bf16.mxu0 0
      %1533 = vmatpush1.bf16.msra.mxu0 0
      %1534 = vmatprep.subr.bf16.mxu0 0
      %1535 = vmatpush1.bf16.msra.mxu0 0
      %1536 = vmatprep.subr.bf16.mxu0 0
      %1537 = vmatpush1.bf16.msra.mxu0 0
      %1538 = vmatprep.subr.bf16.mxu0 0
      %1539 = vmatpush1.bf16.msra.mxu0 0
      %1540 = vmatprep.subr.bf16.mxu0 0
      %1541 = vmatpush1.bf16.msra.mxu0 0
      %1542 = vmatprep.subr.bf16.mxu0 0
      %1543 = vmatpush1.bf16.msra.mxu0 0
      %1544 = vmatprep.subr.bf16.mxu0 0
      %1545 = vmatpush1.bf16.msra.mxu0 0
      %1546 = vmatprep.subr.bf16.mxu0 0
      %1547 = vmatpush1.bf16.msra.mxu0 0
      %1548 = vmatprep.subr.bf16.mxu0 0
      %1549 = vmatpush1.bf16.msra.mxu0 0
      %1550 = vmatprep.mubr.bf16.mxu0 0
      %1551 = vmatmul.mubr.bf16.gmra.mrb[0].mxu0 %v1412
      %v1552 = vpop.f32.mrb[0].mxu0
      %v1553 = vadd.f32 %v1389, %v1552
      %v1554 = vpop.f32.mrb[0].mxu0
      %v1555 = vpop.f32.mrb[0].mxu0
      %v1556 = vpop.f32.mrb[0].mxu0
      %1557 = vdwg.mxu0
      %v1562 = vunpack.c.l.b16 %v1320
      %v1563 = vunpack.c.l.b16 %v1321
      %v1564 = vunpack.c.l.b16 %v1322
      %v1565 = vunpack.c.l.b16 %v1323
      %v1566 = vpack.c.b16 %v1563, %v1562
      %v1567 = vpack.c.b16 %v1565, %v1564
      %1570 = vmatprep.subr.bf16.mxu0 0
      %1571 = vmatpush1.bf16.msra.mxu0 %v1566
      %1572 = vmatprep.subr.bf16.mxu0 0
      %1573 = vmatpush1.bf16.msra.mxu0 %v1567
      %1574 = vmatprep.subr.bf16.mxu0 0
      %1575 = vmatpush1.bf16.msra.mxu0 0
      %1576 = vmatprep.subr.bf16.mxu0 0
      %1577 = vmatpush1.bf16.msra.mxu0 0
      %1578 = vmatprep.subr.bf16.mxu0 0
      %1579 = vmatpush1.bf16.msra.mxu0 0
      %1580 = vmatprep.subr.bf16.mxu0 0
      %1581 = vmatpush1.bf16.msra.mxu0 0
      %1582 = vmatprep.subr.bf16.mxu0 0
      %1583 = vmatpush1.bf16.msra.mxu0 0
      %1584 = vmatprep.subr.bf16.mxu0 0
      %1585 = vmatpush1.bf16.msra.mxu0 0
      %1586 = vmatprep.subr.bf16.mxu0 0
      %1587 = vmatpush1.bf16.msra.mxu0 0
      %1588 = vmatprep.subr.bf16.mxu0 0
      %1589 = vmatpush1.bf16.msra.mxu0 0
      %1590 = vmatprep.subr.bf16.mxu0 0
      %1591 = vmatpush1.bf16.msra.mxu0 0
      %1592 = vmatprep.subr.bf16.mxu0 0
      %1593 = vmatpush1.bf16.msra.mxu0 0
      %1594 = vmatprep.subr.bf16.mxu0 0
      %1595 = vmatpush1.bf16.msra.mxu0 0
      %1596 = vmatprep.subr.bf16.mxu0 0
      %1597 = vmatpush1.bf16.msra.mxu0 0
      %1598 = vmatprep.subr.bf16.mxu0 0
      %1599 = vmatpush1.bf16.msra.mxu0 0
      %1600 = vmatprep.subr.bf16.mxu0 0
      %1601 = vmatpush1.bf16.msra.mxu0 0
      %1602 = vmatprep.mubr.bf16.mxu0 0
      %1603 = vmatmul.mubr.bf16.gmra.mrb[0].mxu0 %v1412
      %v1604 = vpop.f32.mrb[0].mxu0
      %v1605 = vadd.f32 %v1393, %v1604
      %v1606 = vpop.f32.mrb[0].mxu0
      %v1607 = vpop.f32.mrb[0].mxu0
      %v1608 = vpop.f32.mrb[0].mxu0
      %1609 = vdwg.mxu0
      %v1614 = vlaneseq
      %v1615 = vshrl.u32 %v1614, 7
      %v1616 = vsub.s32 0, %v1615
      %v1617 = vrot.slane %v1344, %v1616
      %v1618 = vlaneseq
      %v1619 = vshrl.u32 %v1618, 7
      %v1620 = vsub.s32 0, %v1619
      %v1621 = vrot.slane %v1345, %v1620
      %v1622 = vlaneseq
      %v1623 = vshrl.u32 %v1622, 7
      %v1624 = vsub.s32 0, %v1623
      %v1625 = vrot.slane %v1346, %v1624
      %v1626 = vlaneseq
      %v1627 = vshrl.u32 %v1626, 7
      %v1628 = vsub.s32 0, %v1627
      %v1629 = vrot.slane %v1347, %v1628
      %v1638 = vunpack.c.l.b16 %v1328
      %v1639 = vunpack.c.l.b16 %v1329
      %v1640 = vunpack.c.l.b16 %v1330
      %v1641 = vunpack.c.l.b16 %v1331
      %v1642 = vpack.c.b16 %v1639, %v1638
      %v1643 = vpack.c.b16 %v1641, %v1640
      %1646 = vmatprep.subr.bf16.mxu0 0
      %1647 = vmatpush1.bf16.msra.mxu0 %v1642
      %1648 = vmatprep.subr.bf16.mxu0 0
      %1649 = vmatpush1.bf16.msra.mxu0 %v1643
      %1650 = vmatprep.subr.bf16.mxu0 0
      %1651 = vmatpush1.bf16.msra.mxu0 0
      %1652 = vmatprep.subr.bf16.mxu0 0
      %1653 = vmatpush1.bf16.msra.mxu0 0
      %1654 = vmatprep.subr.bf16.mxu0 0
      %1655 = vmatpush1.bf16.msra.mxu0 0
      %1656 = vmatprep.subr.bf16.mxu0 0
      %1657 = vmatpush1.bf16.msra.mxu0 0
      %1658 = vmatprep.subr.bf16.mxu0 0
      %1659 = vmatpush1.bf16.msra.mxu0 0
      %1660 = vmatprep.subr.bf16.mxu0 0
      %1661 = vmatpush1.bf16.msra.mxu0 0
      %1662 = vmatprep.subr.bf16.mxu0 0
      %1663 = vmatpush1.bf16.msra.mxu0 0
      %1664 = vmatprep.subr.bf16.mxu0 0
      %1665 = vmatpush1.bf16.msra.mxu0 0
      %1666 = vmatprep.subr.bf16.mxu0 0
      %1667 = vmatpush1.bf16.msra.mxu0 0
      %1668 = vmatprep.subr.bf16.mxu0 0
      %1669 = vmatpush1.bf16.msra.mxu0 0
      %1670 = vmatprep.subr.bf16.mxu0 0
      %1671 = vmatpush1.bf16.msra.mxu0 0
      %1672 = vmatprep.subr.bf16.mxu0 0
      %1673 = vmatpush1.bf16.msra.mxu0 0
      %1674 = vmatprep.subr.bf16.mxu0 0
      %1675 = vmatpush1.bf16.msra.mxu0 0
      %1676 = vmatprep.subr.bf16.mxu0 0
      %1677 = vmatpush1.bf16.msra.mxu0 0
      %1678 = vmatprep.mubr.bf16.mxu0 0
      %1679 = vmatmul.mubr.bf16.gmra.mrb[0].mxu0 %v1412
      %v1680 = vpop.f32.mrb[0].mxu0
      %v1681 = vadd.f32 %v1617, %v1680
      %v1682 = vpop.f32.mrb[0].mxu0
      %v1683 = vpop.f32.mrb[0].mxu0
      %v1684 = vpop.f32.mrb[0].mxu0
      %1685 = vdwg.mxu0
      %v1690 = vunpack.c.l.b16 %v1332
      %v1691 = vunpack.c.l.b16 %v1333
      %v1692 = vunpack.c.l.b16 %v1334
      %v1693 = vunpack.c.l.b16 %v1335
      %v1694 = vpack.c.b16 %v1691, %v1690
      %v1695 = vpack.c.b16 %v1693, %v1692
      %1698 = vmatprep.subr.bf16.mxu0 0
      %1699 = vmatpush1.bf16.msra.mxu0 %v1694
      %1700 = vmatprep.subr.bf16.mxu0 0
      %1701 = vmatpush1.bf16.msra.mxu0 %v1695
      %1702 = vmatprep.subr.bf16.mxu0 0
      %1703 = vmatpush1.bf16.msra.mxu0 0
      %1704 = vmatprep.subr.bf16.mxu0 0
      %1705 = vmatpush1.bf16.msra.mxu0 0
      %1706 = vmatprep.subr.bf16.mxu0 0
      %1707 = vmatpush1.bf16.msra.mxu0 0
      %1708 = vmatprep.subr.bf16.mxu0 0
      %1709 = vmatpush1.bf16.msra.mxu0 0
      %1710 = vmatprep.subr.bf16.mxu0 0
      %1711 = vmatpush1.bf16.msra.mxu0 0
      %1712 = vmatprep.subr.bf16.mxu0 0
      %1713 = vmatpush1.bf16.msra.mxu0 0
      %1714 = vmatprep.subr.bf16.mxu0 0
      %1715 = vmatpush1.bf16.msra.mxu0 0
      %1716 = vmatprep.subr.bf16.mxu0 0
      %1717 = vmatpush1.bf16.msra.mxu0 0
      %1718 = vmatprep.subr.bf16.mxu0 0
      %1719 = vmatpush1.bf16.msra.mxu0 0
      %1720 = vmatprep.subr.bf16.mxu0 0
      %1721 = vmatpush1.bf16.msra.mxu0 0
      %1722 = vmatprep.subr.bf16.mxu0 0
      %1723 = vmatpush1.bf16.msra.mxu0 0
      %1724 = vmatprep.subr.bf16.mxu0 0
      %1725 = vmatpush1.bf16.msra.mxu0 0
      %1726 = vmatprep.subr.bf16.mxu0 0
      %1727 = vmatpush1.bf16.msra.mxu0 0
      %1728 = vmatprep.subr.bf16.mxu0 0
      %1729 = vmatpush1.bf16.msra.mxu0 0
      %1730 = vmatprep.mubr.bf16.mxu0 0
      %1731 = vmatmul.mubr.bf16.gmra.mrb[0].mxu0 %v1412
      %v1732 = vpop.f32.mrb[0].mxu0
      %v1733 = vadd.f32 %v1621, %v1732
      %v1734 = vpop.f32.mrb[0].mxu0
      %v1735 = vpop.f32.mrb[0].mxu0
      %v1736 = vpop.f32.mrb[0].mxu0
      %1737 = vdwg.mxu0
      %v1742 = vunpack.c.l.b16 %v1336
      %v1743 = vunpack.c.l.b16 %v1337
      %v1744 = vunpack.c.l.b16 %v1338
      %v1745 = vunpack.c.l.b16 %v1339
      %v1746 = vpack.c.b16 %v1743, %v1742
      %v1747 = vpack.c.b16 %v1745, %v1744
      %1750 = vmatprep.subr.bf16.mxu0 0
      %1751 = vmatpush1.bf16.msra.mxu0 %v1746
      %1752 = vmatprep.subr.bf16.mxu0 0
      %1753 = vmatpush1.bf16.msra.mxu0 %v1747
      %1754 = vmatprep.subr.bf16.mxu0 0
      %1755 = vmatpush1.bf16.msra.mxu0 0
      %1756 = vmatprep.subr.bf16.mxu0 0
      %1757 = vmatpush1.bf16.msra.mxu0 0
      %1758 = vmatprep.subr.bf16.mxu0 0
      %1759 = vmatpush1.bf16.msra.mxu0 0
      %1760 = vmatprep.subr.bf16.mxu0 0
      %1761 = vmatpush1.bf16.msra.mxu0 0
      %1762 = vmatprep.subr.bf16.mxu0 0
      %1763 = vmatpush1.bf16.msra.mxu0 0
      %1764 = vmatprep.subr.bf16.mxu0 0
      %1765 = vmatpush1.bf16.msra.mxu0 0
      %1766 = vmatprep.subr.bf16.mxu0 0
      %1767 = vmatpush1.bf16.msra.mxu0 0
      %1768 = vmatprep.subr.bf16.mxu0 0
      %1769 = vmatpush1.bf16.msra.mxu0 0
      %1770 = vmatprep.subr.bf16.mxu0 0
      %1771 = vmatpush1.bf16.msra.mxu0 0
      %1772 = vmatprep.subr.bf16.mxu0 0
      %1773 = vmatpush1.bf16.msra.mxu0 0
      %1774 = vmatprep.subr.bf16.mxu0 0
      %1775 = vmatpush1.bf16.msra.mxu0 0
      %1776 = vmatprep.subr.bf16.mxu0 0
      %1777 = vmatpush1.bf16.msra.mxu0 0
      %1778 = vmatprep.subr.bf16.mxu0 0
      %1779 = vmatpush1.bf16.msra.mxu0 0
      %1780 = vmatprep.subr.bf16.mxu0 0
      %1781 = vmatpush1.bf16.msra.mxu0 0
      %1782 = vmatprep.mubr.bf16.mxu0 0
      %1783 = vmatmul.mubr.bf16.gmra.mrb[0].mxu0 %v1412
      %v1784 = vpop.f32.mrb[0].mxu0
      %v1785 = vadd.f32 %v1625, %v1784
      %v1786 = vpop.f32.mrb[0].mxu0
      %v1787 = vpop.f32.mrb[0].mxu0
      %v1788 = vpop.f32.mrb[0].mxu0
      %1789 = vdwg.mxu0
      %v1794 = vunpack.c.l.b16 %v1340
      %v1795 = vunpack.c.l.b16 %v1341
      %v1796 = vunpack.c.l.b16 %v1342
      %v1797 = vunpack.c.l.b16 %v1343
      %v1798 = vpack.c.b16 %v1795, %v1794
      %v1799 = vpack.c.b16 %v1797, %v1796
      %1802 = vmatprep.subr.bf16.mxu0 0
      %1803 = vmatpush1.bf16.msra.mxu0 %v1798
      %1804 = vmatprep.subr.bf16.mxu0 0
      %1805 = vmatpush1.bf16.msra.mxu0 %v1799
      %1806 = vmatprep.subr.bf16.mxu0 0
      %1807 = vmatpush1.bf16.msra.mxu0 0
      %1808 = vmatprep.subr.bf16.mxu0 0
      %1809 = vmatpush1.bf16.msra.mxu0 0
      %1810 = vmatprep.subr.bf16.mxu0 0
      %1811 = vmatpush1.bf16.msra.mxu0 0
      %1812 = vmatprep.subr.bf16.mxu0 0
      %1813 = vmatpush1.bf16.msra.mxu0 0
      %1814 = vmatprep.subr.bf16.mxu0 0
      %1815 = vmatpush1.bf16.msra.mxu0 0
      %1816 = vmatprep.subr.bf16.mxu0 0
      %1817 = vmatpush1.bf16.msra.mxu0 0
      %1818 = vmatprep.subr.bf16.mxu0 0
      %1819 = vmatpush1.bf16.msra.mxu0 0
      %1820 = vmatprep.subr.bf16.mxu0 0
      %1821 = vmatpush1.bf16.msra.mxu0 0
      %1822 = vmatprep.subr.bf16.mxu0 0
      %1823 = vmatpush1.bf16.msra.mxu0 0
      %1824 = vmatprep.subr.bf16.mxu0 0
      %1825 = vmatpush1.bf16.msra.mxu0 0
      %1826 = vmatprep.subr.bf16.mxu0 0
      %1827 = vmatpush1.bf16.msra.mxu0 0
      %1828 = vmatprep.subr.bf16.mxu0 0
      %1829 = vmatpush1.bf16.msra.mxu0 0
      %1830 = vmatprep.subr.bf16.mxu0 0
      %1831 = vmatpush1.bf16.msra.mxu0 0
      %1832 = vmatprep.subr.bf16.mxu0 0
      %1833 = vmatpush1.bf16.msra.mxu0 0
      %1834 = vmatprep.mubr.bf16.mxu0 0
      %1835 = vmatmul.mubr.bf16.gmra.mrb[0].mxu0 %v1412
      %v1836 = vpop.f32.mrb[0].mxu0
      %v1837 = vadd.f32 %v1629, %v1836
      %v1838 = vpop.f32.mrb[0].mxu0
      %v1839 = vpop.f32.mrb[0].mxu0
      %v1840 = vpop.f32.mrb[0].mxu0
      %1841 = vdwg.mxu0
      %v1846 = vlaneseq
      %v1847 = vshrl.u32 %v1846, 7
      %v1848 = vsub.s32 0, %v1847
      %v1849 = vrot.slane %v1364, %v1848
      %v1850 = vlaneseq
      %v1851 = vshrl.u32 %v1850, 7
      %v1852 = vsub.s32 0, %v1851
      %v1853 = vrot.slane %v1365, %v1852
      %v1854 = vlaneseq
      %v1855 = vshrl.u32 %v1854, 7
      %v1856 = vsub.s32 0, %v1855
      %v1857 = vrot.slane %v1366, %v1856
      %v1858 = vlaneseq
      %v1859 = vshrl.u32 %v1858, 7
      %v1860 = vsub.s32 0, %v1859
      %v1861 = vrot.slane %v1367, %v1860
      %v1870 = vunpack.c.l.b16 %v1348
      %v1871 = vunpack.c.l.b16 %v1349
      %v1872 = vunpack.c.l.b16 %v1350
      %v1873 = vunpack.c.l.b16 %v1351
      %v1874 = vpack.c.b16 %v1871, %v1870
      %v1875 = vpack.c.b16 %v1873, %v1872
      %1878 = vmatprep.subr.bf16.mxu0 0
      %1879 = vmatpush1.bf16.msra.mxu0 %v1874
      %1880 = vmatprep.subr.bf16.mxu0 0
      %1881 = vmatpush1.bf16.msra.mxu0 %v1875
      %1882 = vmatprep.subr.bf16.mxu0 0
      %1883 = vmatpush1.bf16.msra.mxu0 0
      %1884 = vmatprep.subr.bf16.mxu0 0
      %1885 = vmatpush1.bf16.msra.mxu0 0
      %1886 = vmatprep.subr.bf16.mxu0 0
      %1887 = vmatpush1.bf16.msra.mxu0 0
      %1888 = vmatprep.subr.bf16.mxu0 0
      %1889 = vmatpush1.bf16.msra.mxu0 0
      %1890 = vmatprep.subr.bf16.mxu0 0
      %1891 = vmatpush1.bf16.msra.mxu0 0
      %1892 = vmatprep.subr.bf16.mxu0 0
      %1893 = vmatpush1.bf16.msra.mxu0 0
      %1894 = vmatprep.subr.bf16.mxu0 0
      %1895 = vmatpush1.bf16.msra.mxu0 0
      %1896 = vmatprep.subr.bf16.mxu0 0
      %1897 = vmatpush1.bf16.msra.mxu0 0
      %1898 = vmatprep.subr.bf16.mxu0 0
      %1899 = vmatpush1.bf16.msra.mxu0 0
      %1900 = vmatprep.subr.bf16.mxu0 0
      %1901 = vmatpush1.bf16.msra.mxu0 0
      %1902 = vmatprep.subr.bf16.mxu0 0
      %1903 = vmatpush1.bf16.msra.mxu0 0
      %1904 = vmatprep.subr.bf16.mxu0 0
      %1905 = vmatpush1.bf16.msra.mxu0 0
      %1906 = vmatprep.subr.bf16.mxu0 0
      %1907 = vmatpush1.bf16.msra.mxu0 0
      %1908 = vmatprep.subr.bf16.mxu0 0
      %1909 = vmatpush1.bf16.msra.mxu0 0
      %1910 = vmatprep.mubr.bf16.mxu0 0
      %1911 = vmatmul.mubr.bf16.gmra.mrb[0].mxu0 %v1412
      %v1912 = vpop.f32.mrb[0].mxu0
      %v1913 = vadd.f32 %v1849, %v1912
      %v1914 = vpop.f32.mrb[0].mxu0
      %v1915 = vpop.f32.mrb[0].mxu0
      %v1916 = vpop.f32.mrb[0].mxu0
      %1917 = vdwg.mxu0
      %v1922 = vunpack.c.l.b16 %v1352
      %v1923 = vunpack.c.l.b16 %v1353
      %v1924 = vunpack.c.l.b16 %v1354
      %v1925 = vunpack.c.l.b16 %v1355
      %v1926 = vpack.c.b16 %v1923, %v1922
      %v1927 = vpack.c.b16 %v1925, %v1924
      %1930 = vmatprep.subr.bf16.mxu0 0
      %1931 = vmatpush1.bf16.msra.mxu0 %v1926
      %1932 = vmatprep.subr.bf16.mxu0 0
      %1933 = vmatpush1.bf16.msra.mxu0 %v1927
      %1934 = vmatprep.subr.bf16.mxu0 0
      %1935 = vmatpush1.bf16.msra.mxu0 0
      %1936 = vmatprep.subr.bf16.mxu0 0
      %1937 = vmatpush1.bf16.msra.mxu0 0
      %1938 = vmatprep.subr.bf16.mxu0 0
      %1939 = vmatpush1.bf16.msra.mxu0 0
      %1940 = vmatprep.subr.bf16.mxu0 0
      %1941 = vmatpush1.bf16.msra.mxu0 0
      %1942 = vmatprep.subr.bf16.mxu0 0
      %1943 = vmatpush1.bf16.msra.mxu0 0
      %1944 = vmatprep.subr.bf16.mxu0 0
      %1945 = vmatpush1.bf16.msra.mxu0 0
      %1946 = vmatprep.subr.bf16.mxu0 0
      %1947 = vmatpush1.bf16.msra.mxu0 0
      %1948 = vmatprep.subr.bf16.mxu0 0
      %1949 = vmatpush1.bf16.msra.mxu0 0
      %1950 = vmatprep.subr.bf16.mxu0 0
      %1951 = vmatpush1.bf16.msra.mxu0 0
      %1952 = vmatprep.subr.bf16.mxu0 0
      %1953 = vmatpush1.bf16.msra.mxu0 0
      %1954 = vmatprep.subr.bf16.mxu0 0
      %1955 = vmatpush1.bf16.msra.mxu0 0
      %1956 = vmatprep.subr.bf16.mxu0 0
      %1957 = vmatpush1.bf16.msra.mxu0 0
      %1958 = vmatprep.subr.bf16.mxu0 0
      %1959 = vmatpush1.bf16.msra.mxu0 0
      %1960 = vmatprep.subr.bf16.mxu0 0
      %1961 = vmatpush1.bf16.msra.mxu0 0
      %1962 = vmatprep.mubr.bf16.mxu0 0
      %1963 = vmatmul.mubr.bf16.gmra.mrb[0].mxu0 %v1412
      %v1964 = vpop.f32.mrb[0].mxu0
      %v1965 = vadd.f32 %v1853, %v1964
      %v1966 = vpop.f32.mrb[0].mxu0
      %v1967 = vpop.f32.mrb[0].mxu0
      %v1968 = vpop.f32.mrb[0].mxu0
      %1969 = vdwg.mxu0
      %v1974 = vunpack.c.l.b16 %v1356
      %v1975 = vunpack.c.l.b16 %v1357
      %v1976 = vunpack.c.l.b16 %v1358
      %v1977 = vunpack.c.l.b16 %v1359
      %v1978 = vpack.c.b16 %v1975, %v1974
      %v1979 = vpack.c.b16 %v1977, %v1976
      %1982 = vmatprep.subr.bf16.mxu0 0
      %1983 = vmatpush1.bf16.msra.mxu0 %v1978
      %1984 = vmatprep.subr.bf16.mxu0 0
      %1985 = vmatpush1.bf16.msra.mxu0 %v1979
      %1986 = vmatprep.subr.bf16.mxu0 0
      %1987 = vmatpush1.bf16.msra.mxu0 0
      %1988 = vmatprep.subr.bf16.mxu0 0
      %1989 = vmatpush1.bf16.msra.mxu0 0
      %1990 = vmatprep.subr.bf16.mxu0 0
      %1991 = vmatpush1.bf16.msra.mxu0 0
      %1992 = vmatprep.subr.bf16.mxu0 0
      %1993 = vmatpush1.bf16.msra.mxu0 0
      %1994 = vmatprep.subr.bf16.mxu0 0
      %1995 = vmatpush1.bf16.msra.mxu0 0
      %1996 = vmatprep.subr.bf16.mxu0 0
      %1997 = vmatpush1.bf16.msra.mxu0 0
      %1998 = vmatprep.subr.bf16.mxu0 0
      %1999 = vmatpush1.bf16.msra.mxu0 0
      %2000 = vmatprep.subr.bf16.mxu0 0
      %2001 = vmatpush1.bf16.msra.mxu0 0
      %2002 = vmatprep.subr.bf16.mxu0 0
      %2003 = vmatpush1.bf16.msra.mxu0 0
      %2004 = vmatprep.subr.bf16.mxu0 0
      %2005 = vmatpush1.bf16.msra.mxu0 0
      %2006 = vmatprep.subr.bf16.mxu0 0
      %2007 = vmatpush1.bf16.msra.mxu0 0
      %2008 = vmatprep.subr.bf16.mxu0 0
      %2009 = vmatpush1.bf16.msra.mxu0 0
      %2010 = vmatprep.subr.bf16.mxu0 0
      %2011 = vmatpush1.bf16.msra.mxu0 0
      %2012 = vmatprep.subr.bf16.mxu0 0
      %2013 = vmatpush1.bf16.msra.mxu0 0
      %2014 = vmatprep.mubr.bf16.mxu0 0
      %2015 = vmatmul.mubr.bf16.gmra.mrb[0].mxu0 %v1412
      %v2016 = vpop.f32.mrb[0].mxu0
      %v2017 = vadd.f32 %v1857, %v2016
      %v2018 = vpop.f32.mrb[0].mxu0
      %v2019 = vpop.f32.mrb[0].mxu0
      %v2020 = vpop.f32.mrb[0].mxu0
      %2021 = vdwg.mxu0
      %v2026 = vunpack.c.l.b16 %v1360
      %v2027 = vunpack.c.l.b16 %v1361
      %v2028 = vunpack.c.l.b16 %v1362
      %v2029 = vunpack.c.l.b16 %v1363
      %v2030 = vpack.c.b16 %v2027, %v2026
      %v2031 = vpack.c.b16 %v2029, %v2028
      %2034 = vmatprep.subr.bf16.mxu0 0
      %2035 = vmatpush1.bf16.msra.mxu0 %v2030
      %2036 = vmatprep.subr.bf16.mxu0 0
      %2037 = vmatpush1.bf16.msra.mxu0 %v2031
      %2038 = vmatprep.subr.bf16.mxu0 0
      %2039 = vmatpush1.bf16.msra.mxu0 0
      %2040 = vmatprep.subr.bf16.mxu0 0
      %2041 = vmatpush1.bf16.msra.mxu0 0
      %2042 = vmatprep.subr.bf16.mxu0 0
      %2043 = vmatpush1.bf16.msra.mxu0 0
      %2044 = vmatprep.subr.bf16.mxu0 0
      %2045 = vmatpush1.bf16.msra.mxu0 0
      %2046 = vmatprep.subr.bf16.mxu0 0
      %2047 = vmatpush1.bf16.msra.mxu0 0
      %2048 = vmatprep.subr.bf16.mxu0 0
      %2049 = vmatpush1.bf16.msra.mxu0 0
      %2050 = vmatprep.subr.bf16.mxu0 0
      %2051 = vmatpush1.bf16.msra.mxu0 0
      %2052 = vmatprep.subr.bf16.mxu0 0
      %2053 = vmatpush1.bf16.msra.mxu0 0
      %2054 = vmatprep.subr.bf16.mxu0 0
      %2055 = vmatpush1.bf16.msra.mxu0 0
      %2056 = vmatprep.subr.bf16.mxu0 0
      %2057 = vmatpush1.bf16.msra.mxu0 0
      %2058 = vmatprep.subr.bf16.mxu0 0
      %2059 = vmatpush1.bf16.msra.mxu0 0
      %2060 = vmatprep.subr.bf16.mxu0 0
      %2061 = vmatpush1.bf16.msra.mxu0 0
      %2062 = vmatprep.subr.bf16.mxu0 0
      %2063 = vmatpush1.bf16.msra.mxu0 0
      %2064 = vmatprep.subr.bf16.mxu0 0
      %2065 = vmatpush1.bf16.msra.mxu0 0
      %2066 = vmatprep.mubr.bf16.mxu0 0
      %2067 = vmatmul.mubr.bf16.gmra.mrb[0].mxu0 %v1412
      %v2068 = vpop.f32.mrb[0].mxu0
      %v2069 = vadd.f32 %v1861, %v2068
      %v2070 = vpop.f32.mrb[0].mxu0
      %v2071 = vpop.f32.mrb[0].mxu0
      %v2072 = vpop.f32.mrb[0].mxu0
      %2073 = vdwg.mxu0
      %v2074 = vpack.c.bf16 %v1449, %v1449
      %v2075 = vpack.c.bf16 %v1501, %v1501
      %v2076 = vpack.c.bf16 %v1553, %v1553
      %v2077 = vpack.c.bf16 %v1605, %v1605
      %v2078 = vpack.c.bf16 %v1681, %v1681
      %v2079 = vpack.c.bf16 %v1733, %v1733
      %v2080 = vpack.c.bf16 %v1785, %v1785
      %v2081 = vpack.c.bf16 %v1837, %v1837
      %vm2082 = vcmask 64512
      %v2084 = vsel %vm2082, %v2074, 0
      %v2087 = vsel %vm2082, %v2078, 0
      %2089 = vmatprep.subr.bf16.mxu0 0
      %2090 = vmatpush1.bf16.xpose.msra.mxu0 %v2087
      %2091 = vmatprep.subr.bf16.mxu0 0
      %2092 = vmatpush1.bf16.xpose.msra.mxu0 0
      %2093 = vmatprep.subr.bf16.mxu0 0
      %2094 = vmatpush1.bf16.xpose.msra.mxu0 0
      %2095 = vmatprep.subr.bf16.mxu0 0
      %2096 = vmatpush1.bf16.xpose.msra.mxu0 0
      %2097 = vmatprep.subr.bf16.mxu0 0
      %2098 = vmatpush1.bf16.xpose.msra.mxu0 0
      %2099 = vmatprep.subr.bf16.mxu0 0
      %2100 = vmatpush1.bf16.xpose.msra.mxu0 0
      %2101 = vmatprep.subr.bf16.mxu0 0
      %2102 = vmatpush1.bf16.xpose.msra.mxu0 0
      %2103 = vmatprep.subr.bf16.mxu0 0
      %2104 = vmatpush1.bf16.xpose.msra.mxu0 0
      %2105 = vmatprep.subr.bf16.mxu0 0
      %2106 = vmatpush1.bf16.xpose.msra.mxu0 0
      %2107 = vmatprep.subr.bf16.mxu0 0
      %2108 = vmatpush1.bf16.xpose.msra.mxu0 0
      %2109 = vmatprep.subr.bf16.mxu0 0
      %2110 = vmatpush1.bf16.xpose.msra.mxu0 0
      %2111 = vmatprep.subr.bf16.mxu0 0
      %2112 = vmatpush1.bf16.xpose.msra.mxu0 0
      %2113 = vmatprep.subr.bf16.mxu0 0
      %2114 = vmatpush1.bf16.xpose.msra.mxu0 0
      %2115 = vmatprep.subr.bf16.mxu0 0
      %2116 = vmatpush1.bf16.xpose.msra.mxu0 0
      %2117 = vmatprep.subr.bf16.mxu0 0
      %2118 = vmatpush1.bf16.xpose.msra.mxu0 0
      %2119 = vmatprep.subr.bf16.mxu0 0
      %2120 = vmatpush1.bf16.xpose.msra.mxu0 0
      %2121 = vmatprep.mubr.bf16.mxu0 0
      %2122 = vmatmul.mubr.bf16.gmra.mrb[0].mxu0 %v2084
      %v2123 = vpop.f32.mrb[0].mxu0
      %v2124 = vadd.f32 0.0, %v2123
      %v2125 = vpop.f32.mrb[0].mxu0
      %v2126 = vpop.f32.mrb[0].mxu0
      %v2127 = vpop.f32.mrb[0].mxu0
      %2128 = vdwg.mxu0
      %v2130 = vsel %vm2082, %v2075, 0
      %v2133 = vsel %vm2082, %v2079, 0
      %2135 = vmatprep.subr.bf16.mxu0 0
      %2136 = vmatpush1.bf16.xpose.msra.mxu0 %v2133
      %2137 = vmatprep.subr.bf16.mxu0 0
      %2138 = vmatpush1.bf16.xpose.msra.mxu0 0
      %2139 = vmatprep.subr.bf16.mxu0 0
      %2140 = vmatpush1.bf16.xpose.msra.mxu0 0
      %2141 = vmatprep.subr.bf16.mxu0 0
      %2142 = vmatpush1.bf16.xpose.msra.mxu0 0
      %2143 = vmatprep.subr.bf16.mxu0 0
      %2144 = vmatpush1.bf16.xpose.msra.mxu0 0
      %2145 = vmatprep.subr.bf16.mxu0 0
      %2146 = vmatpush1.bf16.xpose.msra.mxu0 0
      %2147 = vmatprep.subr.bf16.mxu0 0
      %2148 = vmatpush1.bf16.xpose.msra.mxu0 0
      %2149 = vmatprep.subr.bf16.mxu0 0
      %2150 = vmatpush1.bf16.xpose.msra.mxu0 0
      %2151 = vmatprep.subr.bf16.mxu0 0
      %2152 = vmatpush1.bf16.xpose.msra.mxu0 0
      %2153 = vmatprep.subr.bf16.mxu0 0
      %2154 = vmatpush1.bf16.xpose.msra.mxu0 0
      %2155 = vmatprep.subr.bf16.mxu0 0
      %2156 = vmatpush1.bf16.xpose.msra.mxu0 0
      %2157 = vmatprep.subr.bf16.mxu0 0
      %2158 = vmatpush1.bf16.xpose.msra.mxu0 0
      %2159 = vmatprep.subr.bf16.mxu0 0
      %2160 = vmatpush1.bf16.xpose.msra.mxu0 0
      %2161 = vmatprep.subr.bf16.mxu0 0
      %2162 = vmatpush1.bf16.xpose.msra.mxu0 0
      %2163 = vmatprep.subr.bf16.mxu0 0
      %2164 = vmatpush1.bf16.xpose.msra.mxu0 0
      %2165 = vmatprep.subr.bf16.mxu0 0
      %2166 = vmatpush1.bf16.xpose.msra.mxu0 0
      %2167 = vmatprep.mubr.bf16.mxu0 0
      %2168 = vmatmul.mubr.bf16.gmra.mrb[0].mxu0 %v2130
      %v2169 = vpop.f32.mrb[0].mxu0
      %v2170 = vadd.f32 0.0, %v2169
      %v2171 = vpop.f32.mrb[0].mxu0
      %v2172 = vpop.f32.mrb[0].mxu0
      %v2173 = vpop.f32.mrb[0].mxu0
      %2174 = vdwg.mxu0
      %v2176 = vsel %vm2082, %v2076, 0
      %v2179 = vsel %vm2082, %v2080, 0
      %2181 = vmatprep.subr.bf16.mxu0 0
      %2182 = vmatpush1.bf16.xpose.msra.mxu0 %v2179
      %2183 = vmatprep.subr.bf16.mxu0 0
      %2184 = vmatpush1.bf16.xpose.msra.mxu0 0
      %2185 = vmatprep.subr.bf16.mxu0 0
      %2186 = vmatpush1.bf16.xpose.msra.mxu0 0
      %2187 = vmatprep.subr.bf16.mxu0 0
      %2188 = vmatpush1.bf16.xpose.msra.mxu0 0
      %2189 = vmatprep.subr.bf16.mxu0 0
      %2190 = vmatpush1.bf16.xpose.msra.mxu0 0
      %2191 = vmatprep.subr.bf16.mxu0 0
      %2192 = vmatpush1.bf16.xpose.msra.mxu0 0
      %2193 = vmatprep.subr.bf16.mxu0 0
      %2194 = vmatpush1.bf16.xpose.msra.mxu0 0
      %2195 = vmatprep.subr.bf16.mxu0 0
      %2196 = vmatpush1.bf16.xpose.msra.mxu0 0
      %2197 = vmatprep.subr.bf16.mxu0 0
      %2198 = vmatpush1.bf16.xpose.msra.mxu0 0
      %2199 = vmatprep.subr.bf16.mxu0 0
      %2200 = vmatpush1.bf16.xpose.msra.mxu0 0
      %2201 = vmatprep.subr.bf16.mxu0 0
      %2202 = vmatpush1.bf16.xpose.msra.mxu0 0
      %2203 = vmatprep.subr.bf16.mxu0 0
      %2204 = vmatpush1.bf16.xpose.msra.mxu0 0
      %2205 = vmatprep.subr.bf16.mxu0 0
      %2206 = vmatpush1.bf16.xpose.msra.mxu0 0
      %2207 = vmatprep.subr.bf16.mxu0 0
      %2208 = vmatpush1.bf16.xpose.msra.mxu0 0
      %2209 = vmatprep.subr.bf16.mxu0 0
      %2210 = vmatpush1.bf16.xpose.msra.mxu0 0
      %2211 = vmatprep.subr.bf16.mxu0 0
      %2212 = vmatpush1.bf16.xpose.msra.mxu0 0
      %2213 = vmatprep.mubr.bf16.mxu0 0
      %2214 = vmatmul.mubr.bf16.gmra.mrb[0].mxu0 %v2176
      %v2215 = vpop.f32.mrb[0].mxu0
      %v2216 = vadd.f32 0.0, %v2215
      %v2217 = vpop.f32.mrb[0].mxu0
      %v2218 = vpop.f32.mrb[0].mxu0
      %v2219 = vpop.f32.mrb[0].mxu0
      %2220 = vdwg.mxu0
      %v2222 = vsel %vm2082, %v2077, 0
      %v2225 = vsel %vm2082, %v2081, 0
      %2227 = vmatprep.subr.bf16.mxu0 0
      %2228 = vmatpush1.bf16.xpose.msra.mxu0 %v2225
      %2229 = vmatprep.subr.bf16.mxu0 0
      %2230 = vmatpush1.bf16.xpose.msra.mxu0 0
      %2231 = vmatprep.subr.bf16.mxu0 0
      %2232 = vmatpush1.bf16.xpose.msra.mxu0 0
      %2233 = vmatprep.subr.bf16.mxu0 0
      %2234 = vmatpush1.bf16.xpose.msra.mxu0 0
      %2235 = vmatprep.subr.bf16.mxu0 0
      %2236 = vmatpush1.bf16.xpose.msra.mxu0 0
      %2237 = vmatprep.subr.bf16.mxu0 0
      %2238 = vmatpush1.bf16.xpose.msra.mxu0 0
      %2239 = vmatprep.subr.bf16.mxu0 0
      %2240 = vmatpush1.bf16.xpose.msra.mxu0 0
      %2241 = vmatprep.subr.bf16.mxu0 0
      %2242 = vmatpush1.bf16.xpose.msra.mxu0 0
      %2243 = vmatprep.subr.bf16.mxu0 0
      %2244 = vmatpush1.bf16.xpose.msra.mxu0 0
      %2245 = vmatprep.subr.bf16.mxu0 0
      %2246 = vmatpush1.bf16.xpose.msra.mxu0 0
      %2247 = vmatprep.subr.bf16.mxu0 0
      %2248 = vmatpush1.bf16.xpose.msra.mxu0 0
      %2249 = vmatprep.subr.bf16.mxu0 0
      %2250 = vmatpush1.bf16.xpose.msra.mxu0 0
      %2251 = vmatprep.subr.bf16.mxu0 0
      %2252 = vmatpush1.bf16.xpose.msra.mxu0 0
      %2253 = vmatprep.subr.bf16.mxu0 0
      %2254 = vmatpush1.bf16.xpose.msra.mxu0 0
      %2255 = vmatprep.subr.bf16.mxu0 0
      %2256 = vmatpush1.bf16.xpose.msra.mxu0 0
      %2257 = vmatprep.subr.bf16.mxu0 0
      %2258 = vmatpush1.bf16.xpose.msra.mxu0 0
      %2259 = vmatprep.mubr.bf16.mxu0 0
      %2260 = vmatmul.mubr.bf16.gmra.mrb[0].mxu0 %v2222
      %v2261 = vpop.f32.mrb[0].mxu0
      %v2262 = vadd.f32 0.0, %v2261
      %v2263 = vpop.f32.mrb[0].mxu0
      %v2264 = vpop.f32.mrb[0].mxu0
      %v2265 = vpop.f32.mrb[0].mxu0
      %2266 = vdwg.mxu0
      %v2267 = vmul.f32 %v2124, 0.35355338
      %v2268 = vmul.f32 %v2170, 0.35355338
      %v2269 = vmul.f32 %v2216, 0.35355338
      %v2270 = vmul.f32 %v2262, 0.35355338
      %v2271 = vsel %vm2082, %v2267, -inf
      %2272 = vmax.xlane.f32.xlu0 %v2271
      %v2273 = vpop.xlane.xlu0 %2272
      %v2274 = vsel %vm2082, %v2268, -inf
      %2275 = vmax.xlane.f32.xlu0 %v2274
      %v2276 = vpop.xlane.xlu0 %2275
      %v2277 = vsel %vm2082, %v2269, -inf
      %2278 = vmax.xlane.f32.xlu0 %v2277
      %v2279 = vpop.xlane.xlu0 %2278
      %v2280 = vsel %vm2082, %v2270, -inf
      %2281 = vmax.xlane.f32.xlu0 %v2280
      %v2282 = vpop.xlane.xlu0 %2281
      %v2283 = vsub.f32 %v2267, %v2273
      %v2284 = vsub.f32 %v2268, %v2276
      %v2285 = vsub.f32 %v2269, %v2279
      %v2286 = vsub.f32 %v2270, %v2282
      %v2287 = vmul.f32 %v2283, 1.442695
      %v2288 = vpow.pop %v2287
      %v2289 = vmul.f32 %v2284, 1.442695
      %v2290 = vpow.pop %v2289
      %v2291 = vmul.f32 %v2285, 1.442695
      %v2292 = vpow.pop %v2291
      %v2293 = vmul.f32 %v2286, 1.442695
      %v2294 = vpow.pop %v2293
      %v2295 = vsel %vm2082, %v2288, 0.0
      %2296 = vadd.xlane.f32.xlu0 %v2295
      %v2297 = vpop.xlane.xlu0 %2296
      %v2298 = vsel %vm2082, %v2290, 0.0
      %2299 = vadd.xlane.f32.xlu0 %v2298
      %v2300 = vpop.xlane.xlu0 %2299
      %v2301 = vsel %vm2082, %v2292, 0.0
      %2302 = vadd.xlane.f32.xlu0 %v2301
      %v2303 = vpop.xlane.xlu0 %2302
      %v2304 = vsel %vm2082, %v2294, 0.0
      %2305 = vadd.xlane.f32.xlu0 %v2304
      %v2306 = vpop.xlane.xlu0 %2305
      %v2307 = vrcp.pop %v2297
      %v2308 = vrcp.pop %v2300
      %v2309 = vrcp.pop %v2303
      %v2310 = vrcp.pop %v2306
      %v2311 = vmul.f32 %v2288, %v2307
      %v2312 = vmul.f32 %v2290, %v2308
      %v2313 = vmul.f32 %v2292, %v2309
      %v2314 = vmul.f32 %v2294, %v2310
      %v2315 = vpack.c.bf16 %v2311, %v2311
      %v2316 = vpack.c.bf16 %v2312, %v2312
      %v2317 = vpack.c.bf16 %v2313, %v2313
      %v2318 = vpack.c.bf16 %v2314, %v2314
      %v2319 = vpack.c.bf16 %v1913, %v1913
      %v2320 = vpack.c.bf16 %v1965, %v1965
      %v2321 = vpack.c.bf16 %v2017, %v2017
      %v2322 = vpack.c.bf16 %v2069, %v2069
      %v2324 = vsel %vm2082, %v2315, 0
      %vm2326 = vcmask 1043456
      %v2328 = vsel %vm2326, %v2319, 0
      %2330 = vmatprep.subr.bf16.mxu0 0
      %2331 = vmatpush1.bf16.msra.mxu0 %v2328
      %2332 = vmatprep.subr.bf16.mxu0 0
      %2333 = vmatpush1.bf16.msra.mxu0 0
      %2334 = vmatprep.subr.bf16.mxu0 0
      %2335 = vmatpush1.bf16.msra.mxu0 0
      %2336 = vmatprep.subr.bf16.mxu0 0
      %2337 = vmatpush1.bf16.msra.mxu0 0
      %2338 = vmatprep.subr.bf16.mxu0 0
      %2339 = vmatpush1.bf16.msra.mxu0 0
      %2340 = vmatprep.subr.bf16.mxu0 0
      %2341 = vmatpush1.bf16.msra.mxu0 0
      %2342 = vmatprep.subr.bf16.mxu0 0
      %2343 = vmatpush1.bf16.msra.mxu0 0
      %2344 = vmatprep.subr.bf16.mxu0 0
      %2345 = vmatpush1.bf16.msra.mxu0 0
      %2346 = vmatprep.subr.bf16.mxu0 0
      %2347 = vmatpush1.bf16.msra.mxu0 0
      %2348 = vmatprep.subr.bf16.mxu0 0
      %2349 = vmatpush1.bf16.msra.mxu0 0
      %2350 = vmatprep.subr.bf16.mxu0 0
      %2351 = vmatpush1.bf16.msra.mxu0 0
      %2352 = vmatprep.subr.bf16.mxu0 0
      %2353 = vmatpush1.bf16.msra.mxu0 0
      %2354 = vmatprep.subr.bf16.mxu0 0
      %2355 = vmatpush1.bf16.msra.mxu0 0
      %2356 = vmatprep.subr.bf16.mxu0 0
      %2357 = vmatpush1.bf16.msra.mxu0 0
      %2358 = vmatprep.subr.bf16.mxu0 0
      %2359 = vmatpush1.bf16.msra.mxu0 0
      %2360 = vmatprep.subr.bf16.mxu0 0
      %2361 = vmatpush1.bf16.msra.mxu0 0
      %2362 = vmatprep.mubr.bf16.mxu0 0
      %2363 = vmatmul.mubr.bf16.gmra.mrb[0].mxu0 %v2324
      %v2364 = vpop.f32.mrb[0].mxu0
      %v2365 = vadd.f32 0.0, %v2364
      %v2366 = vpop.f32.mrb[0].mxu0
      %v2367 = vpop.f32.mrb[0].mxu0
      %v2368 = vpop.f32.mrb[0].mxu0
      %2369 = vdwg.mxu0
      %v2371 = vsel %vm2082, %v2316, 0
      %v2374 = vsel %vm2326, %v2320, 0
      %2376 = vmatprep.subr.bf16.mxu0 0
      %2377 = vmatpush1.bf16.msra.mxu0 %v2374
      %2378 = vmatprep.subr.bf16.mxu0 0
      %2379 = vmatpush1.bf16.msra.mxu0 0
      %2380 = vmatprep.subr.bf16.mxu0 0
      %2381 = vmatpush1.bf16.msra.mxu0 0
      %2382 = vmatprep.subr.bf16.mxu0 0
      %2383 = vmatpush1.bf16.msra.mxu0 0
      %2384 = vmatprep.subr.bf16.mxu0 0
      %2385 = vmatpush1.bf16.msra.mxu0 0
      %2386 = vmatprep.subr.bf16.mxu0 0
      %2387 = vmatpush1.bf16.msra.mxu0 0
      %2388 = vmatprep.subr.bf16.mxu0 0
      %2389 = vmatpush1.bf16.msra.mxu0 0
      %2390 = vmatprep.subr.bf16.mxu0 0
      %2391 = vmatpush1.bf16.msra.mxu0 0
      %2392 = vmatprep.subr.bf16.mxu0 0
      %2393 = vmatpush1.bf16.msra.mxu0 0
      %2394 = vmatprep.subr.bf16.mxu0 0
      %2395 = vmatpush1.bf16.msra.mxu0 0
      %2396 = vmatprep.subr.bf16.mxu0 0
      %2397 = vmatpush1.bf16.msra.mxu0 0
      %2398 = vmatprep.subr.bf16.mxu0 0
      %2399 = vmatpush1.bf16.msra.mxu0 0
      %2400 = vmatprep.subr.bf16.mxu0 0
      %2401 = vmatpush1.bf16.msra.mxu0 0
      %2402 = vmatprep.subr.bf16.mxu0 0
      %2403 = vmatpush1.bf16.msra.mxu0 0
      %2404 = vmatprep.subr.bf16.mxu0 0
      %2405 = vmatpush1.bf16.msra.mxu0 0
      %2406 = vmatprep.subr.bf16.mxu0 0
      %2407 = vmatpush1.bf16.msra.mxu0 0
      %2408 = vmatprep.mubr.bf16.mxu0 0
      %2409 = vmatmul.mubr.bf16.gmra.mrb[0].mxu0 %v2371
      %v2410 = vpop.f32.mrb[0].mxu0
      %v2411 = vadd.f32 0.0, %v2410
      %v2412 = vpop.f32.mrb[0].mxu0
      %v2413 = vpop.f32.mrb[0].mxu0
      %v2414 = vpop.f32.mrb[0].mxu0
      %2415 = vdwg.mxu0
      %v2417 = vsel %vm2082, %v2317, 0
      %v2420 = vsel %vm2326, %v2321, 0
      %2422 = vmatprep.subr.bf16.mxu0 0
      %2423 = vmatpush1.bf16.msra.mxu0 %v2420
      %2424 = vmatprep.subr.bf16.mxu0 0
      %2425 = vmatpush1.bf16.msra.mxu0 0
      %2426 = vmatprep.subr.bf16.mxu0 0
      %2427 = vmatpush1.bf16.msra.mxu0 0
      %2428 = vmatprep.subr.bf16.mxu0 0
      %2429 = vmatpush1.bf16.msra.mxu0 0
      %2430 = vmatprep.subr.bf16.mxu0 0
      %2431 = vmatpush1.bf16.msra.mxu0 0
      %2432 = vmatprep.subr.bf16.mxu0 0
      %2433 = vmatpush1.bf16.msra.mxu0 0
      %2434 = vmatprep.subr.bf16.mxu0 0
      %2435 = vmatpush1.bf16.msra.mxu0 0
      %2436 = vmatprep.subr.bf16.mxu0 0
      %2437 = vmatpush1.bf16.msra.mxu0 0
      %2438 = vmatprep.subr.bf16.mxu0 0
      %2439 = vmatpush1.bf16.msra.mxu0 0
      %2440 = vmatprep.subr.bf16.mxu0 0
      %2441 = vmatpush1.bf16.msra.mxu0 0
      %2442 = vmatprep.subr.bf16.mxu0 0
      %2443 = vmatpush1.bf16.msra.mxu0 0
      %2444 = vmatprep.subr.bf16.mxu0 0
      %2445 = vmatpush1.bf16.msra.mxu0 0
      %2446 = vmatprep.subr.bf16.mxu0 0
      %2447 = vmatpush1.bf16.msra.mxu0 0
      %2448 = vmatprep.subr.bf16.mxu0 0
      %2449 = vmatpush1.bf16.msra.mxu0 0
      %2450 = vmatprep.subr.bf16.mxu0 0
      %2451 = vmatpush1.bf16.msra.mxu0 0
      %2452 = vmatprep.subr.bf16.mxu0 0
      %2453 = vmatpush1.bf16.msra.mxu0 0
      %2454 = vmatprep.mubr.bf16.mxu0 0
      %2455 = vmatmul.mubr.bf16.gmra.mrb[0].mxu0 %v2417
      %v2456 = vpop.f32.mrb[0].mxu0
      %v2457 = vadd.f32 0.0, %v2456
      %v2458 = vpop.f32.mrb[0].mxu0
      %v2459 = vpop.f32.mrb[0].mxu0
      %v2460 = vpop.f32.mrb[0].mxu0
      %2461 = vdwg.mxu0
      %v2463 = vsel %vm2082, %v2318, 0
      %v2466 = vsel %vm2326, %v2322, 0
      %2468 = vmatprep.subr.bf16.mxu0 0
      %2469 = vmatpush1.bf16.msra.mxu0 %v2466
      %2470 = vmatprep.subr.bf16.mxu0 0
      %2471 = vmatpush1.bf16.msra.mxu0 0
      %2472 = vmatprep.subr.bf16.mxu0 0
      %2473 = vmatpush1.bf16.msra.mxu0 0
      %2474 = vmatprep.subr.bf16.mxu0 0
      %2475 = vmatpush1.bf16.msra.mxu0 0
      %2476 = vmatprep.subr.bf16.mxu0 0
      %2477 = vmatpush1.bf16.msra.mxu0 0
      %2478 = vmatprep.subr.bf16.mxu0 0
      %2479 = vmatpush1.bf16.msra.mxu0 0
      %2480 = vmatprep.subr.bf16.mxu0 0
      %2481 = vmatpush1.bf16.msra.mxu0 0
      %2482 = vmatprep.subr.bf16.mxu0 0
      %2483 = vmatpush1.bf16.msra.mxu0 0
      %2484 = vmatprep.subr.bf16.mxu0 0
      %2485 = vmatpush1.bf16.msra.mxu0 0
      %2486 = vmatprep.subr.bf16.mxu0 0
      %2487 = vmatpush1.bf16.msra.mxu0 0
      %2488 = vmatprep.subr.bf16.mxu0 0
      %2489 = vmatpush1.bf16.msra.mxu0 0
      %2490 = vmatprep.subr.bf16.mxu0 0
      %2491 = vmatpush1.bf16.msra.mxu0 0
      %2492 = vmatprep.subr.bf16.mxu0 0
      %2493 = vmatpush1.bf16.msra.mxu0 0
      %2494 = vmatprep.subr.bf16.mxu0 0
      %2495 = vmatpush1.bf16.msra.mxu0 0
      %2496 = vmatprep.subr.bf16.mxu0 0
      %2497 = vmatpush1.bf16.msra.mxu0 0
      %2498 = vmatprep.subr.bf16.mxu0 0
      %2499 = vmatpush1.bf16.msra.mxu0 0
      %2500 = vmatprep.mubr.bf16.mxu0 0
      %2501 = vmatmul.mubr.bf16.gmra.mrb[0].mxu0 %v2463
      %v2502 = vpop.f32.mrb[0].mxu0
      %v2503 = vadd.f32 0.0, %v2502
      %v2504 = vpop.f32.mrb[0].mxu0
      %v2505 = vpop.f32.mrb[0].mxu0
      %v2506 = vpop.f32.mrb[0].mxu0
      %2507 = vdwg.mxu0
      %v2508 = vpack.c.bf16 %v2365, %v2365
      %v2509 = vpack.c.bf16 %v2411, %v2411
      %v2510 = vpack.c.bf16 %v2457, %v2457
      %v2511 = vpack.c.bf16 %v2503, %v2503
      %v2513 = vsel %vm2082, %v2508, 0
      %v2516 = vsel %vm2326, %v1368, 0
      %2518 = vmatprep.subr.bf16.mxu0 0
      %2519 = vmatpush1.bf16.msra.mxu0 %v2516
      %2520 = vmatprep.subr.bf16.mxu0 0
      %2521 = vmatpush1.bf16.msra.mxu0 0
      %2522 = vmatprep.subr.bf16.mxu0 0
      %2523 = vmatpush1.bf16.msra.mxu0 0
      %2524 = vmatprep.subr.bf16.mxu0 0
      %2525 = vmatpush1.bf16.msra.mxu0 0
      %2526 = vmatprep.subr.bf16.mxu0 0
      %2527 = vmatpush1.bf16.msra.mxu0 0
      %2528 = vmatprep.subr.bf16.mxu0 0
      %2529 = vmatpush1.bf16.msra.mxu0 0
      %2530 = vmatprep.subr.bf16.mxu0 0
      %2531 = vmatpush1.bf16.msra.mxu0 0
      %2532 = vmatprep.subr.bf16.mxu0 0
      %2533 = vmatpush1.bf16.msra.mxu0 0
      %2534 = vmatprep.subr.bf16.mxu0 0
      %2535 = vmatpush1.bf16.msra.mxu0 0
      %2536 = vmatprep.subr.bf16.mxu0 0
      %2537 = vmatpush1.bf16.msra.mxu0 0
      %2538 = vmatprep.subr.bf16.mxu0 0
      %2539 = vmatpush1.bf16.msra.mxu0 0
      %2540 = vmatprep.subr.bf16.mxu0 0
      %2541 = vmatpush1.bf16.msra.mxu0 0
      %2542 = vmatprep.subr.bf16.mxu0 0
      %2543 = vmatpush1.bf16.msra.mxu0 0
      %2544 = vmatprep.subr.bf16.mxu0 0
      %2545 = vmatpush1.bf16.msra.mxu0 0
      %2546 = vmatprep.subr.bf16.mxu0 0
      %2547 = vmatpush1.bf16.msra.mxu0 0
      %2548 = vmatprep.subr.bf16.mxu0 0
      %2549 = vmatpush1.bf16.msra.mxu0 0
      %2550 = vmatprep.mubr.bf16.mxu0 0
      %2551 = vmatmul.mubr.bf16.gmra.mrb[0].mxu0 %v2513
      %v2552 = vpop.f32.mrb[0].mxu0
      %v2553 = vadd.f32 0.0, %v2552
      %v2554 = vpop.f32.mrb[0].mxu0
      %v2555 = vpop.f32.mrb[0].mxu0
      %v2556 = vpop.f32.mrb[0].mxu0
      %2557 = vdwg.mxu0
      %v2559 = vsel %vm2082, %v2509, 0
      %v2562 = vsel %vm2326, %v1369, 0
      %2564 = vmatprep.subr.bf16.mxu0 0
      %2565 = vmatpush1.bf16.msra.mxu0 %v2562
      %2566 = vmatprep.subr.bf16.mxu0 0
      %2567 = vmatpush1.bf16.msra.mxu0 0
      %2568 = vmatprep.subr.bf16.mxu0 0
      %2569 = vmatpush1.bf16.msra.mxu0 0
      %2570 = vmatprep.subr.bf16.mxu0 0
      %2571 = vmatpush1.bf16.msra.mxu0 0
      %2572 = vmatprep.subr.bf16.mxu0 0
      %2573 = vmatpush1.bf16.msra.mxu0 0
      %2574 = vmatprep.subr.bf16.mxu0 0
      %2575 = vmatpush1.bf16.msra.mxu0 0
      %2576 = vmatprep.subr.bf16.mxu0 0
      %2577 = vmatpush1.bf16.msra.mxu0 0
      %2578 = vmatprep.subr.bf16.mxu0 0
      %2579 = vmatpush1.bf16.msra.mxu0 0
      %2580 = vmatprep.subr.bf16.mxu0 0
      %2581 = vmatpush1.bf16.msra.mxu0 0
      %2582 = vmatprep.subr.bf16.mxu0 0
      %2583 = vmatpush1.bf16.msra.mxu0 0
      %2584 = vmatprep.subr.bf16.mxu0 0
      %2585 = vmatpush1.bf16.msra.mxu0 0
      %2586 = vmatprep.subr.bf16.mxu0 0
      %2587 = vmatpush1.bf16.msra.mxu0 0
      %2588 = vmatprep.subr.bf16.mxu0 0
      %2589 = vmatpush1.bf16.msra.mxu0 0
      %2590 = vmatprep.subr.bf16.mxu0 0
      %2591 = vmatpush1.bf16.msra.mxu0 0
      %2592 = vmatprep.subr.bf16.mxu0 0
      %2593 = vmatpush1.bf16.msra.mxu0 0
      %2594 = vmatprep.subr.bf16.mxu0 0
      %2595 = vmatpush1.bf16.msra.mxu0 0
      %2596 = vmatprep.mubr.bf16.mxu0 0
      %2597 = vmatmul.mubr.bf16.gmra.mrb[0].mxu0 %v2559
      %v2598 = vpop.f32.mrb[0].mxu0
      %v2599 = vadd.f32 0.0, %v2598
      %v2600 = vpop.f32.mrb[0].mxu0
      %v2601 = vpop.f32.mrb[0].mxu0
      %v2602 = vpop.f32.mrb[0].mxu0
      %2603 = vdwg.mxu0
      %v2605 = vsel %vm2082, %v2510, 0
      %v2608 = vsel %vm2326, %v1370, 0
      %2610 = vmatprep.subr.bf16.mxu0 0
      %2611 = vmatpush1.bf16.msra.mxu0 %v2608
      %2612 = vmatprep.subr.bf16.mxu0 0
      %2613 = vmatpush1.bf16.msra.mxu0 0
      %2614 = vmatprep.subr.bf16.mxu0 0
      %2615 = vmatpush1.bf16.msra.mxu0 0
      %2616 = vmatprep.subr.bf16.mxu0 0
      %2617 = vmatpush1.bf16.msra.mxu0 0
      %2618 = vmatprep.subr.bf16.mxu0 0
      %2619 = vmatpush1.bf16.msra.mxu0 0
      %2620 = vmatprep.subr.bf16.mxu0 0
      %2621 = vmatpush1.bf16.msra.mxu0 0
      %2622 = vmatprep.subr.bf16.mxu0 0
      %2623 = vmatpush1.bf16.msra.mxu0 0
      %2624 = vmatprep.subr.bf16.mxu0 0
      %2625 = vmatpush1.bf16.msra.mxu0 0
      %2626 = vmatprep.subr.bf16.mxu0 0
      %2627 = vmatpush1.bf16.msra.mxu0 0
      %2628 = vmatprep.subr.bf16.mxu0 0
      %2629 = vmatpush1.bf16.msra.mxu0 0
      %2630 = vmatprep.subr.bf16.mxu0 0
      %2631 = vmatpush1.bf16.msra.mxu0 0
      %2632 = vmatprep.subr.bf16.mxu0 0
      %2633 = vmatpush1.bf16.msra.mxu0 0
      %2634 = vmatprep.subr.bf16.mxu0 0
      %2635 = vmatpush1.bf16.msra.mxu0 0
      %2636 = vmatprep.subr.bf16.mxu0 0
      %2637 = vmatpush1.bf16.msra.mxu0 0
      %2638 = vmatprep.subr.bf16.mxu0 0
      %2639 = vmatpush1.bf16.msra.mxu0 0
      %2640 = vmatprep.subr.bf16.mxu0 0
      %2641 = vmatpush1.bf16.msra.mxu0 0
      %2642 = vmatprep.mubr.bf16.mxu0 0
      %2643 = vmatmul.mubr.bf16.gmra.mrb[0].mxu0 %v2605
      %v2644 = vpop.f32.mrb[0].mxu0
      %v2645 = vadd.f32 0.0, %v2644
      %v2646 = vpop.f32.mrb[0].mxu0
      %v2647 = vpop.f32.mrb[0].mxu0
      %v2648 = vpop.f32.mrb[0].mxu0
      %2649 = vdwg.mxu0
      %v2651 = vsel %vm2082, %v2511, 0
      %v2654 = vsel %vm2326, %v1371, 0
      %2656 = vmatprep.subr.bf16.mxu0 0
      %2657 = vmatpush1.bf16.msra.mxu0 %v2654
      %2658 = vmatprep.subr.bf16.mxu0 0
      %2659 = vmatpush1.bf16.msra.mxu0 0
      %2660 = vmatprep.subr.bf16.mxu0 0
      %2661 = vmatpush1.bf16.msra.mxu0 0
      %2662 = vmatprep.subr.bf16.mxu0 0
      %2663 = vmatpush1.bf16.msra.mxu0 0
      %2664 = vmatprep.subr.bf16.mxu0 0
      %2665 = vmatpush1.bf16.msra.mxu0 0
      %2666 = vmatprep.subr.bf16.mxu0 0
      %2667 = vmatpush1.bf16.msra.mxu0 0
      %2668 = vmatprep.subr.bf16.mxu0 0
      %2669 = vmatpush1.bf16.msra.mxu0 0
      %2670 = vmatprep.subr.bf16.mxu0 0
      %2671 = vmatpush1.bf16.msra.mxu0 0
      %2672 = vmatprep.subr.bf16.mxu0 0
      %2673 = vmatpush1.bf16.msra.mxu0 0
      %2674 = vmatprep.subr.bf16.mxu0 0
      %2675 = vmatpush1.bf16.msra.mxu0 0
      %2676 = vmatprep.subr.bf16.mxu0 0
      %2677 = vmatpush1.bf16.msra.mxu0 0
      %2678 = vmatprep.subr.bf16.mxu0 0
      %2679 = vmatpush1.bf16.msra.mxu0 0
      %2680 = vmatprep.subr.bf16.mxu0 0
      %2681 = vmatpush1.bf16.msra.mxu0 0
      %2682 = vmatprep.subr.bf16.mxu0 0
      %2683 = vmatpush1.bf16.msra.mxu0 0
      %2684 = vmatprep.subr.bf16.mxu0 0
      %2685 = vmatpush1.bf16.msra.mxu0 0
      %2686 = vmatprep.subr.bf16.mxu0 0
      %2687 = vmatpush1.bf16.msra.mxu0 0
      %2688 = vmatprep.mubr.bf16.mxu0 0
      %2689 = vmatmul.mubr.bf16.gmra.mrb[0].mxu0 %v2651
      %v2690 = vpop.f32.mrb[0].mxu0
      %v2691 = vadd.f32 0.0, %v2690
      %v2692 = vpop.f32.mrb[0].mxu0
      %v2693 = vpop.f32.mrb[0].mxu0
      %v2694 = vpop.f32.mrb[0].mxu0
      %2695 = vdwg.mxu0
      %v2696 = vsel %vm1410, %v2553, 0.0
      %v2697 = vsel %vm1410, %v2599, 0.0
      %v2698 = vadd.f32 %v2696, %v2697
      %v2699 = vsel %vm1410, %v2645, 0.0
      %v2700 = vadd.f32 %v2698, %v2699
      %v2701 = vsel %vm1410, %v2691, 0.0
      %v2702 = vadd.f32 %v2700, %v2701
      %v2704 = vlaneseq
      %v2705 = vshrl.u32 %v2704, 7
      %v2706 = vsub.s32 0, %v2705
      %v2707 = vrot.slane %v1372, %v2706
      %v2709 = vadd.f32 %v2702, %v2707
      %v2710 = vld [vmem:[%s1235] sm:$0xf]
      %v2711 = vld [vmem:[%s1235 + $0x4] sm:$0xf]
      %v2712 = vld [vmem:[%s1235 + $0x8] sm:$0xf]
      %v2713 = vld [vmem:[%s1235 + $0xc] sm:$0xf]
      %v2714 = vld [vmem:[%s1235 + $0x10] sm:$0xf]
      %v2715 = vld [vmem:[%s1235 + $0x14] sm:$0xf]
      %v2716 = vld [vmem:[%s1235 + $0x18] sm:$0xf]
      %v2717 = vld [vmem:[%s1235 + $0x1c] sm:$0xf]
      %v2718 = vld [vmem:[%s1235 + $0x20] sm:$0xf]
      %v2719 = vld [vmem:[%s1235 + $0x24] sm:$0xf]
      %v2720 = vld [vmem:[%s1235 + $0x28] sm:$0xf]
      %v2721 = vld [vmem:[%s1235 + $0x2c] sm:$0xf]
      %v2722 = vld [vmem:[%s1235 + $0x30] sm:$0xf]
      %v2723 = vld [vmem:[%s1235 + $0x34] sm:$0xf]
      %v2724 = vld [vmem:[%s1235 + $0x38] sm:$0xf]
      %v2725 = vld [vmem:[%s1235 + $0x3c] sm:$0xf]
      %v2726 = vld [vmem:[%s1239] sm:$0x1]
      %v2727 = vld [vmem:[%s1239 + $0x1] sm:$0x1]
      %v2728 = vld [vmem:[%s1239 + $0x2] sm:$0x1]
      %v2729 = vld [vmem:[%s1239 + $0x3] sm:$0x1]
      %v2730 = vld [vmem:[%s1244] sm:$0xf]
      %v2731 = vld [vmem:[%s1244 + $0x4] sm:$0xf]
      %v2732 = vld [vmem:[%s1244 + $0x8] sm:$0xf]
      %v2733 = vld [vmem:[%s1244 + $0xc] sm:$0xf]
      %v2734 = vld [vmem:[%s1244 + $0x10] sm:$0xf]
      %v2735 = vld [vmem:[%s1244 + $0x14] sm:$0xf]
      %v2736 = vld [vmem:[%s1244 + $0x18] sm:$0xf]
      %v2737 = vld [vmem:[%s1244 + $0x1c] sm:$0xf]
      %v2738 = vld [vmem:[%s1244 + $0x20] sm:$0xf]
      %v2739 = vld [vmem:[%s1244 + $0x24] sm:$0xf]
      %v2740 = vld [vmem:[%s1244 + $0x28] sm:$0xf]
      %v2741 = vld [vmem:[%s1244 + $0x2c] sm:$0xf]
      %v2742 = vld [vmem:[%s1244 + $0x30] sm:$0xf]
      %v2743 = vld [vmem:[%s1244 + $0x34] sm:$0xf]
      %v2744 = vld [vmem:[%s1244 + $0x38] sm:$0xf]
      %v2745 = vld [vmem:[%s1244 + $0x3c] sm:$0xf]
      %v2746 = vld [vmem:[%s1248] sm:$0x1]
      %v2747 = vld [vmem:[%s1248 + $0x1] sm:$0x1]
      %v2748 = vld [vmem:[%s1248 + $0x2] sm:$0x1]
      %v2749 = vld [vmem:[%s1248 + $0x3] sm:$0x1]
      %v2750 = vld [vmem:[%s1253] sm:$0xf]
      %v2751 = vld [vmem:[%s1253 + $0x4] sm:$0xf]
      %v2752 = vld [vmem:[%s1253 + $0x8] sm:$0xf]
      %v2753 = vld [vmem:[%s1253 + $0xc] sm:$0xf]
      %v2754 = vld [vmem:[%s1253 + $0x10] sm:$0xf]
      %v2755 = vld [vmem:[%s1253 + $0x14] sm:$0xf]
      %v2756 = vld [vmem:[%s1253 + $0x18] sm:$0xf]
      %v2757 = vld [vmem:[%s1253 + $0x1c] sm:$0xf]
      %v2758 = vld [vmem:[%s1253 + $0x20] sm:$0xf]
      %v2759 = vld [vmem:[%s1253 + $0x24] sm:$0xf]
      %v2760 = vld [vmem:[%s1253 + $0x28] sm:$0xf]
      %v2761 = vld [vmem:[%s1253 + $0x2c] sm:$0xf]
      %v2762 = vld [vmem:[%s1253 + $0x30] sm:$0xf]
      %v2763 = vld [vmem:[%s1253 + $0x34] sm:$0xf]
      %v2764 = vld [vmem:[%s1253 + $0x38] sm:$0xf]
      %v2765 = vld [vmem:[%s1253 + $0x3c] sm:$0xf]
      %v2766 = vld [vmem:[%s1257] sm:$0x1]
      %v2767 = vld [vmem:[%s1257 + $0x1] sm:$0x1]
      %v2768 = vld [vmem:[%s1257 + $0x2] sm:$0x1]
      %v2769 = vld [vmem:[%s1257 + $0x3] sm:$0x1]
      %v2770 = vld [vmem:[%s1262] sm:$0xf]
      %v2771 = vld [vmem:[%s1262 + $0x4] sm:$0xf]
      %v2772 = vld [vmem:[%s1262 + $0x8] sm:$0xf]
      %v2773 = vld [vmem:[%s1262 + $0xc] sm:$0xf]
      %v2774 = vld [vmem:[%s1265] sm:$0x1]
      %v2775 = vpack.c.bf16 %v1307, %v1307
      %v2780 = vlaneseq
      %v2781 = vshrl.u32 %v2780, 7
      %v2782 = vsub.s32 0, %v2781
      %v2783 = vrot.slane %v2726, %v2782
      %v2784 = vlaneseq
      %v2785 = vshrl.u32 %v2784, 7
      %v2786 = vsub.s32 0, %v2785
      %v2787 = vrot.slane %v2727, %v2786
      %v2788 = vlaneseq
      %v2789 = vshrl.u32 %v2788, 7
      %v2790 = vsub.s32 0, %v2789
      %v2791 = vrot.slane %v2728, %v2790
      %v2792 = vlaneseq
      %v2793 = vshrl.u32 %v2792, 7
      %v2794 = vsub.s32 0, %v2793
      %v2795 = vrot.slane %v2729, %v2794
      %v2804 = vunpack.c.l.b16 %v2710
      %v2805 = vunpack.c.l.b16 %v2711
      %v2806 = vunpack.c.l.b16 %v2712
      %v2807 = vunpack.c.l.b16 %v2713
      %v2808 = vpack.c.b16 %v2805, %v2804
      %v2809 = vpack.c.b16 %v2807, %v2806
      %v2813 = vsel %vm1410, %v2775, 0
      %2815 = vmatprep.subr.bf16.mxu0 0
      %2816 = vmatpush1.bf16.msra.mxu0 %v2808
      %2817 = vmatprep.subr.bf16.mxu0 0
      %2818 = vmatpush1.bf16.msra.mxu0 %v2809
      %2819 = vmatprep.subr.bf16.mxu0 0
      %2820 = vmatpush1.bf16.msra.mxu0 0
      %2821 = vmatprep.subr.bf16.mxu0 0
      %2822 = vmatpush1.bf16.msra.mxu0 0
      %2823 = vmatprep.subr.bf16.mxu0 0
      %2824 = vmatpush1.bf16.msra.mxu0 0
      %2825 = vmatprep.subr.bf16.mxu0 0
      %2826 = vmatpush1.bf16.msra.mxu0 0
      %2827 = vmatprep.subr.bf16.mxu0 0
      %2828 = vmatpush1.bf16.msra.mxu0 0
      %2829 = vmatprep.subr.bf16.mxu0 0
      %2830 = vmatpush1.bf16.msra.mxu0 0
      %2831 = vmatprep.subr.bf16.mxu0 0
      %2832 = vmatpush1.bf16.msra.mxu0 0
      %2833 = vmatprep.subr.bf16.mxu0 0
      %2834 = vmatpush1.bf16.msra.mxu0 0
      %2835 = vmatprep.subr.bf16.mxu0 0
      %2836 = vmatpush1.bf16.msra.mxu0 0
      %2837 = vmatprep.subr.bf16.mxu0 0
      %2838 = vmatpush1.bf16.msra.mxu0 0
      %2839 = vmatprep.subr.bf16.mxu0 0
      %2840 = vmatpush1.bf16.msra.mxu0 0
      %2841 = vmatprep.subr.bf16.mxu0 0
      %2842 = vmatpush1.bf16.msra.mxu0 0
      %2843 = vmatprep.subr.bf16.mxu0 0
      %2844 = vmatpush1.bf16.msra.mxu0 0
      %2845 = vmatprep.subr.bf16.mxu0 0
      %2846 = vmatpush1.bf16.msra.mxu0 0
      %2847 = vmatprep.mubr.bf16.mxu0 0
      %2848 = vmatmul.mubr.bf16.gmra.mrb[0].mxu0 %v2813
      %v2849 = vpop.f32.mrb[0].mxu0
      %v2850 = vadd.f32 %v2783, %v2849
      %v2851 = vpop.f32.mrb[0].mxu0
      %v2852 = vpop.f32.mrb[0].mxu0
      %v2853 = vpop.f32.mrb[0].mxu0
      %2854 = vdwg.mxu0
      %v2859 = vunpack.c.l.b16 %v2714
      %v2860 = vunpack.c.l.b16 %v2715
      %v2861 = vunpack.c.l.b16 %v2716
      %v2862 = vunpack.c.l.b16 %v2717
      %v2863 = vpack.c.b16 %v2860, %v2859
      %v2864 = vpack.c.b16 %v2862, %v2861
      %2867 = vmatprep.subr.bf16.mxu0 0
      %2868 = vmatpush1.bf16.msra.mxu0 %v2863
      %2869 = vmatprep.subr.bf16.mxu0 0
      %2870 = vmatpush1.bf16.msra.mxu0 %v2864
      %2871 = vmatprep.subr.bf16.mxu0 0
      %2872 = vmatpush1.bf16.msra.mxu0 0
      %2873 = vmatprep.subr.bf16.mxu0 0
      %2874 = vmatpush1.bf16.msra.mxu0 0
      %2875 = vmatprep.subr.bf16.mxu0 0
      %2876 = vmatpush1.bf16.msra.mxu0 0
      %2877 = vmatprep.subr.bf16.mxu0 0
      %2878 = vmatpush1.bf16.msra.mxu0 0
      %2879 = vmatprep.subr.bf16.mxu0 0
      %2880 = vmatpush1.bf16.msra.mxu0 0
      %2881 = vmatprep.subr.bf16.mxu0 0
      %2882 = vmatpush1.bf16.msra.mxu0 0
      %2883 = vmatprep.subr.bf16.mxu0 0
      %2884 = vmatpush1.bf16.msra.mxu0 0
      %2885 = vmatprep.subr.bf16.mxu0 0
      %2886 = vmatpush1.bf16.msra.mxu0 0
      %2887 = vmatprep.subr.bf16.mxu0 0
      %2888 = vmatpush1.bf16.msra.mxu0 0
      %2889 = vmatprep.subr.bf16.mxu0 0
      %2890 = vmatpush1.bf16.msra.mxu0 0
      %2891 = vmatprep.subr.bf16.mxu0 0
      %2892 = vmatpush1.bf16.msra.mxu0 0
      %2893 = vmatprep.subr.bf16.mxu0 0
      %2894 = vmatpush1.bf16.msra.mxu0 0
      %2895 = vmatprep.subr.bf16.mxu0 0
      %2896 = vmatpush1.bf16.msra.mxu0 0
      %2897 = vmatprep.subr.bf16.mxu0 0
      %2898 = vmatpush1.bf16.msra.mxu0 0
      %2899 = vmatprep.mubr.bf16.mxu0 0
      %2900 = vmatmul.mubr.bf16.gmra.mrb[0].mxu0 %v2813
      %v2901 = vpop.f32.mrb[0].mxu0
      %v2902 = vadd.f32 %v2787, %v2901
      %v2903 = vpop.f32.mrb[0].mxu0
      %v2904 = vpop.f32.mrb[0].mxu0
      %v2905 = vpop.f32.mrb[0].mxu0
      %2906 = vdwg.mxu0
      %v2911 = vunpack.c.l.b16 %v2718
      %v2912 = vunpack.c.l.b16 %v2719
      %v2913 = vunpack.c.l.b16 %v2720
      %v2914 = vunpack.c.l.b16 %v2721
      %v2915 = vpack.c.b16 %v2912, %v2911
      %v2916 = vpack.c.b16 %v2914, %v2913
      %2919 = vmatprep.subr.bf16.mxu0 0
      %2920 = vmatpush1.bf16.msra.mxu0 %v2915
      %2921 = vmatprep.subr.bf16.mxu0 0
      %2922 = vmatpush1.bf16.msra.mxu0 %v2916
      %2923 = vmatprep.subr.bf16.mxu0 0
      %2924 = vmatpush1.bf16.msra.mxu0 0
      %2925 = vmatprep.subr.bf16.mxu0 0
      %2926 = vmatpush1.bf16.msra.mxu0 0
      %2927 = vmatprep.subr.bf16.mxu0 0
      %2928 = vmatpush1.bf16.msra.mxu0 0
      %2929 = vmatprep.subr.bf16.mxu0 0
      %2930 = vmatpush1.bf16.msra.mxu0 0
      %2931 = vmatprep.subr.bf16.mxu0 0
      %2932 = vmatpush1.bf16.msra.mxu0 0
      %2933 = vmatprep.subr.bf16.mxu0 0
      %2934 = vmatpush1.bf16.msra.mxu0 0
      %2935 = vmatprep.subr.bf16.mxu0 0
      %2936 = vmatpush1.bf16.msra.mxu0 0
      %2937 = vmatprep.subr.bf16.mxu0 0
      %2938 = vmatpush1.bf16.msra.mxu0 0
      %2939 = vmatprep.subr.bf16.mxu0 0
      %2940 = vmatpush1.bf16.msra.mxu0 0
      %2941 = vmatprep.subr.bf16.mxu0 0
      %2942 = vmatpush1.bf16.msra.mxu0 0
      %2943 = vmatprep.subr.bf16.mxu0 0
      %2944 = vmatpush1.bf16.msra.mxu0 0
      %2945 = vmatprep.subr.bf16.mxu0 0
      %2946 = vmatpush1.bf16.msra.mxu0 0
      %2947 = vmatprep.subr.bf16.mxu0 0
      %2948 = vmatpush1.bf16.msra.mxu0 0
      %2949 = vmatprep.subr.bf16.mxu0 0
      %2950 = vmatpush1.bf16.msra.mxu0 0
      %2951 = vmatprep.mubr.bf16.mxu0 0
      %2952 = vmatmul.mubr.bf16.gmra.mrb[0].mxu0 %v2813
      %v2953 = vpop.f32.mrb[0].mxu0
      %v2954 = vadd.f32 %v2791, %v2953
      %v2955 = vpop.f32.mrb[0].mxu0
      %v2956 = vpop.f32.mrb[0].mxu0
      %v2957 = vpop.f32.mrb[0].mxu0
      %2958 = vdwg.mxu0
      %v2963 = vunpack.c.l.b16 %v2722
      %v2964 = vunpack.c.l.b16 %v2723
      %v2965 = vunpack.c.l.b16 %v2724
      %v2966 = vunpack.c.l.b16 %v2725
      %v2967 = vpack.c.b16 %v2964, %v2963
      %v2968 = vpack.c.b16 %v2966, %v2965
      %2971 = vmatprep.subr.bf16.mxu0 0
      %2972 = vmatpush1.bf16.msra.mxu0 %v2967
      %2973 = vmatprep.subr.bf16.mxu0 0
      %2974 = vmatpush1.bf16.msra.mxu0 %v2968
      %2975 = vmatprep.subr.bf16.mxu0 0
      %2976 = vmatpush1.bf16.msra.mxu0 0
      %2977 = vmatprep.subr.bf16.mxu0 0
      %2978 = vmatpush1.bf16.msra.mxu0 0
      %2979 = vmatprep.subr.bf16.mxu0 0
      %2980 = vmatpush1.bf16.msra.mxu0 0
      %2981 = vmatprep.subr.bf16.mxu0 0
      %2982 = vmatpush1.bf16.msra.mxu0 0
      %2983 = vmatprep.subr.bf16.mxu0 0
      %2984 = vmatpush1.bf16.msra.mxu0 0
      %2985 = vmatprep.subr.bf16.mxu0 0
      %2986 = vmatpush1.bf16.msra.mxu0 0
      %2987 = vmatprep.subr.bf16.mxu0 0
      %2988 = vmatpush1.bf16.msra.mxu0 0
      %2989 = vmatprep.subr.bf16.mxu0 0
      %2990 = vmatpush1.bf16.msra.mxu0 0
      %2991 = vmatprep.subr.bf16.mxu0 0
      %2992 = vmatpush1.bf16.msra.mxu0 0
      %2993 = vmatprep.subr.bf16.mxu0 0
      %2994 = vmatpush1.bf16.msra.mxu0 0
      %2995 = vmatprep.subr.bf16.mxu0 0
      %2996 = vmatpush1.bf16.msra.mxu0 0
      %2997 = vmatprep.subr.bf16.mxu0 0
      %2998 = vmatpush1.bf16.msra.mxu0 0
      %2999 = vmatprep.subr.bf16.mxu0 0
      %3000 = vmatpush1.bf16.msra.mxu0 0
      %3001 = vmatprep.subr.bf16.mxu0 0
      %3002 = vmatpush1.bf16.msra.mxu0 0
      %3003 = vmatprep.mubr.bf16.mxu0 0
      %3004 = vmatmul.mubr.bf16.gmra.mrb[0].mxu0 %v2813
      %v3005 = vpop.f32.mrb[0].mxu0
      %v3006 = vadd.f32 %v2795, %v3005
      %v3007 = vpop.f32.mrb[0].mxu0
      %v3008 = vpop.f32.mrb[0].mxu0
      %v3009 = vpop.f32.mrb[0].mxu0
      %3010 = vdwg.mxu0
      %v3015 = vlaneseq
      %v3016 = vshrl.u32 %v3015, 7
      %v3017 = vsub.s32 0, %v3016
      %v3018 = vrot.slane %v2746, %v3017
      %v3019 = vlaneseq
      %v3020 = vshrl.u32 %v3019, 7
      %v3021 = vsub.s32 0, %v3020
      %v3022 = vrot.slane %v2747, %v3021
      %v3023 = vlaneseq
      %v3024 = vshrl.u32 %v3023, 7
      %v3025 = vsub.s32 0, %v3024
      %v3026 = vrot.slane %v2748, %v3025
      %v3027 = vlaneseq
      %v3028 = vshrl.u32 %v3027, 7
      %v3029 = vsub.s32 0, %v3028
      %v3030 = vrot.slane %v2749, %v3029
      %v3039 = vunpack.c.l.b16 %v2730
      %v3040 = vunpack.c.l.b16 %v2731
      %v3041 = vunpack.c.l.b16 %v2732
      %v3042 = vunpack.c.l.b16 %v2733
      %v3043 = vpack.c.b16 %v3040, %v3039
      %v3044 = vpack.c.b16 %v3042, %v3041
      %3047 = vmatprep.subr.bf16.mxu0 0
      %3048 = vmatpush1.bf16.msra.mxu0 %v3043
      %3049 = vmatprep.subr.bf16.mxu0 0
      %3050 = vmatpush1.bf16.msra.mxu0 %v3044
      %3051 = vmatprep.subr.bf16.mxu0 0
      %3052 = vmatpush1.bf16.msra.mxu0 0
      %3053 = vmatprep.subr.bf16.mxu0 0
      %3054 = vmatpush1.bf16.msra.mxu0 0
      %3055 = vmatprep.subr.bf16.mxu0 0
      %3056 = vmatpush1.bf16.msra.mxu0 0
      %3057 = vmatprep.subr.bf16.mxu0 0
      %3058 = vmatpush1.bf16.msra.mxu0 0
      %3059 = vmatprep.subr.bf16.mxu0 0
      %3060 = vmatpush1.bf16.msra.mxu0 0
      %3061 = vmatprep.subr.bf16.mxu0 0
      %3062 = vmatpush1.bf16.msra.mxu0 0
      %3063 = vmatprep.subr.bf16.mxu0 0
      %3064 = vmatpush1.bf16.msra.mxu0 0
      %3065 = vmatprep.subr.bf16.mxu0 0
      %3066 = vmatpush1.bf16.msra.mxu0 0
      %3067 = vmatprep.subr.bf16.mxu0 0
      %3068 = vmatpush1.bf16.msra.mxu0 0
      %3069 = vmatprep.subr.bf16.mxu0 0
      %3070 = vmatpush1.bf16.msra.mxu0 0
      %3071 = vmatprep.subr.bf16.mxu0 0
      %3072 = vmatpush1.bf16.msra.mxu0 0
      %3073 = vmatprep.subr.bf16.mxu0 0
      %3074 = vmatpush1.bf16.msra.mxu0 0
      %3075 = vmatprep.subr.bf16.mxu0 0
      %3076 = vmatpush1.bf16.msra.mxu0 0
      %3077 = vmatprep.subr.bf16.mxu0 0
      %3078 = vmatpush1.bf16.msra.mxu0 0
      %3079 = vmatprep.mubr.bf16.mxu0 0
      %3080 = vmatmul.mubr.bf16.gmra.mrb[0].mxu0 %v1412
      %v3081 = vpop.f32.mrb[0].mxu0
      %v3082 = vadd.f32 %v3018, %v3081
      %v3083 = vpop.f32.mrb[0].mxu0
      %v3084 = vpop.f32.mrb[0].mxu0
      %v3085 = vpop.f32.mrb[0].mxu0
      %3086 = vdwg.mxu0
      %v3091 = vunpack.c.l.b16 %v2734
      %v3092 = vunpack.c.l.b16 %v2735
      %v3093 = vunpack.c.l.b16 %v2736
      %v3094 = vunpack.c.l.b16 %v2737
      %v3095 = vpack.c.b16 %v3092, %v3091
      %v3096 = vpack.c.b16 %v3094, %v3093
      %3099 = vmatprep.subr.bf16.mxu0 0
      %3100 = vmatpush1.bf16.msra.mxu0 %v3095
      %3101 = vmatprep.subr.bf16.mxu0 0
      %3102 = vmatpush1.bf16.msra.mxu0 %v3096
      %3103 = vmatprep.subr.bf16.mxu0 0
      %3104 = vmatpush1.bf16.msra.mxu0 0
      %3105 = vmatprep.subr.bf16.mxu0 0
      %3106 = vmatpush1.bf16.msra.mxu0 0
      %3107 = vmatprep.subr.bf16.mxu0 0
      %3108 = vmatpush1.bf16.msra.mxu0 0
      %3109 = vmatprep.subr.bf16.mxu0 0
      %3110 = vmatpush1.bf16.msra.mxu0 0
      %3111 = vmatprep.subr.bf16.mxu0 0
      %3112 = vmatpush1.bf16.msra.mxu0 0
      %3113 = vmatprep.subr.bf16.mxu0 0
      %3114 = vmatpush1.bf16.msra.mxu0 0
      %3115 = vmatprep.subr.bf16.mxu0 0
      %3116 = vmatpush1.bf16.msra.mxu0 0
      %3117 = vmatprep.subr.bf16.mxu0 0
      %3118 = vmatpush1.bf16.msra.mxu0 0
      %3119 = vmatprep.subr.bf16.mxu0 0
      %3120 = vmatpush1.bf16.msra.mxu0 0
      %3121 = vmatprep.subr.bf16.mxu0 0
      %3122 = vmatpush1.bf16.msra.mxu0 0
      %3123 = vmatprep.subr.bf16.mxu0 0
      %3124 = vmatpush1.bf16.msra.mxu0 0
      %3125 = vmatprep.subr.bf16.mxu0 0
      %3126 = vmatpush1.bf16.msra.mxu0 0
      %3127 = vmatprep.subr.bf16.mxu0 0
      %3128 = vmatpush1.bf16.msra.mxu0 0
      %3129 = vmatprep.subr.bf16.mxu0 0
      %3130 = vmatpush1.bf16.msra.mxu0 0
      %3131 = vmatprep.mubr.bf16.mxu0 0
      %3132 = vmatmul.mubr.bf16.gmra.mrb[0].mxu0 %v1412
      %v3133 = vpop.f32.mrb[0].mxu0
      %v3134 = vadd.f32 %v3022, %v3133
      %v3135 = vpop.f32.mrb[0].mxu0
      %v3136 = vpop.f32.mrb[0].mxu0
      %v3137 = vpop.f32.mrb[0].mxu0
      %3138 = vdwg.mxu0
      %v3143 = vunpack.c.l.b16 %v2738
      %v3144 = vunpack.c.l.b16 %v2739
      %v3145 = vunpack.c.l.b16 %v2740
      %v3146 = vunpack.c.l.b16 %v2741
      %v3147 = vpack.c.b16 %v3144, %v3143
      %v3148 = vpack.c.b16 %v3146, %v3145
      %3151 = vmatprep.subr.bf16.mxu0 0
      %3152 = vmatpush1.bf16.msra.mxu0 %v3147
      %3153 = vmatprep.subr.bf16.mxu0 0
      %3154 = vmatpush1.bf16.msra.mxu0 %v3148
      %3155 = vmatprep.subr.bf16.mxu0 0
      %3156 = vmatpush1.bf16.msra.mxu0 0
      %3157 = vmatprep.subr.bf16.mxu0 0
      %3158 = vmatpush1.bf16.msra.mxu0 0
      %3159 = vmatprep.subr.bf16.mxu0 0
      %3160 = vmatpush1.bf16.msra.mxu0 0
      %3161 = vmatprep.subr.bf16.mxu0 0
      %3162 = vmatpush1.bf16.msra.mxu0 0
      %3163 = vmatprep.subr.bf16.mxu0 0
      %3164 = vmatpush1.bf16.msra.mxu0 0
      %3165 = vmatprep.subr.bf16.mxu0 0
      %3166 = vmatpush1.bf16.msra.mxu0 0
      %3167 = vmatprep.subr.bf16.mxu0 0
      %3168 = vmatpush1.bf16.msra.mxu0 0
      %3169 = vmatprep.subr.bf16.mxu0 0
      %3170 = vmatpush1.bf16.msra.mxu0 0
      %3171 = vmatprep.subr.bf16.mxu0 0
      %3172 = vmatpush1.bf16.msra.mxu0 0
      %3173 = vmatprep.subr.bf16.mxu0 0
      %3174 = vmatpush1.bf16.msra.mxu0 0
      %3175 = vmatprep.subr.bf16.mxu0 0
      %3176 = vmatpush1.bf16.msra.mxu0 0
      %3177 = vmatprep.subr.bf16.mxu0 0
      %3178 = vmatpush1.bf16.msra.mxu0 0
      %3179 = vmatprep.subr.bf16.mxu0 0
      %3180 = vmatpush1.bf16.msra.mxu0 0
      %3181 = vmatprep.subr.bf16.mxu0 0
      %3182 = vmatpush1.bf16.msra.mxu0 0
      %3183 = vmatprep.mubr.bf16.mxu0 0
      %3184 = vmatmul.mubr.bf16.gmra.mrb[0].mxu0 %v1412
      %v3185 = vpop.f32.mrb[0].mxu0
      %v3186 = vadd.f32 %v3026, %v3185
      %v3187 = vpop.f32.mrb[0].mxu0
      %v3188 = vpop.f32.mrb[0].mxu0
      %v3189 = vpop.f32.mrb[0].mxu0
      %3190 = vdwg.mxu0
      %v3195 = vunpack.c.l.b16 %v2742
      %v3196 = vunpack.c.l.b16 %v2743
      %v3197 = vunpack.c.l.b16 %v2744
      %v3198 = vunpack.c.l.b16 %v2745
      %v3199 = vpack.c.b16 %v3196, %v3195
      %v3200 = vpack.c.b16 %v3198, %v3197
      %3203 = vmatprep.subr.bf16.mxu0 0
      %3204 = vmatpush1.bf16.msra.mxu0 %v3199
      %3205 = vmatprep.subr.bf16.mxu0 0
      %3206 = vmatpush1.bf16.msra.mxu0 %v3200
      %3207 = vmatprep.subr.bf16.mxu0 0
      %3208 = vmatpush1.bf16.msra.mxu0 0
      %3209 = vmatprep.subr.bf16.mxu0 0
      %3210 = vmatpush1.bf16.msra.mxu0 0
      %3211 = vmatprep.subr.bf16.mxu0 0
      %3212 = vmatpush1.bf16.msra.mxu0 0
      %3213 = vmatprep.subr.bf16.mxu0 0
      %3214 = vmatpush1.bf16.msra.mxu0 0
      %3215 = vmatprep.subr.bf16.mxu0 0
      %3216 = vmatpush1.bf16.msra.mxu0 0
      %3217 = vmatprep.subr.bf16.mxu0 0
      %3218 = vmatpush1.bf16.msra.mxu0 0
      %3219 = vmatprep.subr.bf16.mxu0 0
      %3220 = vmatpush1.bf16.msra.mxu0 0
      %3221 = vmatprep.subr.bf16.mxu0 0
      %3222 = vmatpush1.bf16.msra.mxu0 0
      %3223 = vmatprep.subr.bf16.mxu0 0
      %3224 = vmatpush1.bf16.msra.mxu0 0
      %3225 = vmatprep.subr.bf16.mxu0 0
      %3226 = vmatpush1.bf16.msra.mxu0 0
      %3227 = vmatprep.subr.bf16.mxu0 0
      %3228 = vmatpush1.bf16.msra.mxu0 0
      %3229 = vmatprep.subr.bf16.mxu0 0
      %3230 = vmatpush1.bf16.msra.mxu0 0
      %3231 = vmatprep.subr.bf16.mxu0 0
      %3232 = vmatpush1.bf16.msra.mxu0 0
      %3233 = vmatprep.subr.bf16.mxu0 0
      %3234 = vmatpush1.bf16.msra.mxu0 0
      %3235 = vmatprep.mubr.bf16.mxu0 0
      %3236 = vmatmul.mubr.bf16.gmra.mrb[0].mxu0 %v1412
      %v3237 = vpop.f32.mrb[0].mxu0
      %v3238 = vadd.f32 %v3030, %v3237
      %v3239 = vpop.f32.mrb[0].mxu0
      %v3240 = vpop.f32.mrb[0].mxu0
      %v3241 = vpop.f32.mrb[0].mxu0
      %3242 = vdwg.mxu0
      %v3247 = vlaneseq
      %v3248 = vshrl.u32 %v3247, 7
      %v3249 = vsub.s32 0, %v3248
      %v3250 = vrot.slane %v2766, %v3249
      %v3251 = vlaneseq
      %v3252 = vshrl.u32 %v3251, 7
      %v3253 = vsub.s32 0, %v3252
      %v3254 = vrot.slane %v2767, %v3253
      %v3255 = vlaneseq
      %v3256 = vshrl.u32 %v3255, 7
      %v3257 = vsub.s32 0, %v3256
      %v3258 = vrot.slane %v2768, %v3257
      %v3259 = vlaneseq
      %v3260 = vshrl.u32 %v3259, 7
      %v3261 = vsub.s32 0, %v3260
      %v3262 = vrot.slane %v2769, %v3261
      %v3271 = vunpack.c.l.b16 %v2750
      %v3272 = vunpack.c.l.b16 %v2751
      %v3273 = vunpack.c.l.b16 %v2752
      %v3274 = vunpack.c.l.b16 %v2753
      %v3275 = vpack.c.b16 %v3272, %v3271
      %v3276 = vpack.c.b16 %v3274, %v3273
      %3279 = vmatprep.subr.bf16.mxu0 0
      %3280 = vmatpush1.bf16.msra.mxu0 %v3275
      %3281 = vmatprep.subr.bf16.mxu0 0
      %3282 = vmatpush1.bf16.msra.mxu0 %v3276
      %3283 = vmatprep.subr.bf16.mxu0 0
      %3284 = vmatpush1.bf16.msra.mxu0 0
      %3285 = vmatprep.subr.bf16.mxu0 0
      %3286 = vmatpush1.bf16.msra.mxu0 0
      %3287 = vmatprep.subr.bf16.mxu0 0
      %3288 = vmatpush1.bf16.msra.mxu0 0
      %3289 = vmatprep.subr.bf16.mxu0 0
      %3290 = vmatpush1.bf16.msra.mxu0 0
      %3291 = vmatprep.subr.bf16.mxu0 0
      %3292 = vmatpush1.bf16.msra.mxu0 0
      %3293 = vmatprep.subr.bf16.mxu0 0
      %3294 = vmatpush1.bf16.msra.mxu0 0
      %3295 = vmatprep.subr.bf16.mxu0 0
      %3296 = vmatpush1.bf16.msra.mxu0 0
      %3297 = vmatprep.subr.bf16.mxu0 0
      %3298 = vmatpush1.bf16.msra.mxu0 0
      %3299 = vmatprep.subr.bf16.mxu0 0
      %3300 = vmatpush1.bf16.msra.mxu0 0
      %3301 = vmatprep.subr.bf16.mxu0 0
      %3302 = vmatpush1.bf16.msra.mxu0 0
      %3303 = vmatprep.subr.bf16.mxu0 0
      %3304 = vmatpush1.bf16.msra.mxu0 0
      %3305 = vmatprep.subr.bf16.mxu0 0
      %3306 = vmatpush1.bf16.msra.mxu0 0
      %3307 = vmatprep.subr.bf16.mxu0 0
      %3308 = vmatpush1.bf16.msra.mxu0 0
      %3309 = vmatprep.subr.bf16.mxu0 0
      %3310 = vmatpush1.bf16.msra.mxu0 0
      %3311 = vmatprep.mubr.bf16.mxu0 0
      %3312 = vmatmul.mubr.bf16.gmra.mrb[0].mxu0 %v1412
      %v3313 = vpop.f32.mrb[0].mxu0
      %v3314 = vadd.f32 %v3250, %v3313
      %v3315 = vpop.f32.mrb[0].mxu0
      %v3316 = vpop.f32.mrb[0].mxu0
      %v3317 = vpop.f32.mrb[0].mxu0
      %3318 = vdwg.mxu0
      %v3323 = vunpack.c.l.b16 %v2754
      %v3324 = vunpack.c.l.b16 %v2755
      %v3325 = vunpack.c.l.b16 %v2756
      %v3326 = vunpack.c.l.b16 %v2757
      %v3327 = vpack.c.b16 %v3324, %v3323
      %v3328 = vpack.c.b16 %v3326, %v3325
      %3331 = vmatprep.subr.bf16.mxu0 0
      %3332 = vmatpush1.bf16.msra.mxu0 %v3327
      %3333 = vmatprep.subr.bf16.mxu0 0
      %3334 = vmatpush1.bf16.msra.mxu0 %v3328
      %3335 = vmatprep.subr.bf16.mxu0 0
      %3336 = vmatpush1.bf16.msra.mxu0 0
      %3337 = vmatprep.subr.bf16.mxu0 0
      %3338 = vmatpush1.bf16.msra.mxu0 0
      %3339 = vmatprep.subr.bf16.mxu0 0
      %3340 = vmatpush1.bf16.msra.mxu0 0
      %3341 = vmatprep.subr.bf16.mxu0 0
      %3342 = vmatpush1.bf16.msra.mxu0 0
      %3343 = vmatprep.subr.bf16.mxu0 0
      %3344 = vmatpush1.bf16.msra.mxu0 0
      %3345 = vmatprep.subr.bf16.mxu0 0
      %3346 = vmatpush1.bf16.msra.mxu0 0
      %3347 = vmatprep.subr.bf16.mxu0 0
      %3348 = vmatpush1.bf16.msra.mxu0 0
      %3349 = vmatprep.subr.bf16.mxu0 0
      %3350 = vmatpush1.bf16.msra.mxu0 0
      %3351 = vmatprep.subr.bf16.mxu0 0
      %3352 = vmatpush1.bf16.msra.mxu0 0
      %3353 = vmatprep.subr.bf16.mxu0 0
      %3354 = vmatpush1.bf16.msra.mxu0 0
      %3355 = vmatprep.subr.bf16.mxu0 0
      %3356 = vmatpush1.bf16.msra.mxu0 0
      %3357 = vmatprep.subr.bf16.mxu0 0
      %3358 = vmatpush1.bf16.msra.mxu0 0
      %3359 = vmatprep.subr.bf16.mxu0 0
      %3360 = vmatpush1.bf16.msra.mxu0 0
      %3361 = vmatprep.subr.bf16.mxu0 0
      %3362 = vmatpush1.bf16.msra.mxu0 0
      %3363 = vmatprep.mubr.bf16.mxu0 0
      %3364 = vmatmul.mubr.bf16.gmra.mrb[0].mxu0 %v1412
      %v3365 = vpop.f32.mrb[0].mxu0
      %v3366 = vadd.f32 %v3254, %v3365
      %v3367 = vpop.f32.mrb[0].mxu0
      %v3368 = vpop.f32.mrb[0].mxu0
      %v3369 = vpop.f32.mrb[0].mxu0
      %3370 = vdwg.mxu0
      %v3375 = vunpack.c.l.b16 %v2758
      %v3376 = vunpack.c.l.b16 %v2759
      %v3377 = vunpack.c.l.b16 %v2760
      %v3378 = vunpack.c.l.b16 %v2761
      %v3379 = vpack.c.b16 %v3376, %v3375
      %v3380 = vpack.c.b16 %v3378, %v3377
      %3383 = vmatprep.subr.bf16.mxu0 0
      %3384 = vmatpush1.bf16.msra.mxu0 %v3379
      %3385 = vmatprep.subr.bf16.mxu0 0
      %3386 = vmatpush1.bf16.msra.mxu0 %v3380
      %3387 = vmatprep.subr.bf16.mxu0 0
      %3388 = vmatpush1.bf16.msra.mxu0 0
      %3389 = vmatprep.subr.bf16.mxu0 0
      %3390 = vmatpush1.bf16.msra.mxu0 0
      %3391 = vmatprep.subr.bf16.mxu0 0
      %3392 = vmatpush1.bf16.msra.mxu0 0
      %3393 = vmatprep.subr.bf16.mxu0 0
      %3394 = vmatpush1.bf16.msra.mxu0 0
      %3395 = vmatprep.subr.bf16.mxu0 0
      %3396 = vmatpush1.bf16.msra.mxu0 0
      %3397 = vmatprep.subr.bf16.mxu0 0
      %3398 = vmatpush1.bf16.msra.mxu0 0
      %3399 = vmatprep.subr.bf16.mxu0 0
      %3400 = vmatpush1.bf16.msra.mxu0 0
      %3401 = vmatprep.subr.bf16.mxu0 0
      %3402 = vmatpush1.bf16.msra.mxu0 0
      %3403 = vmatprep.subr.bf16.mxu0 0
      %3404 = vmatpush1.bf16.msra.mxu0 0
      %3405 = vmatprep.subr.bf16.mxu0 0
      %3406 = vmatpush1.bf16.msra.mxu0 0
      %3407 = vmatprep.subr.bf16.mxu0 0
      %3408 = vmatpush1.bf16.msra.mxu0 0
      %3409 = vmatprep.subr.bf16.mxu0 0
      %3410 = vmatpush1.bf16.msra.mxu0 0
      %3411 = vmatprep.subr.bf16.mxu0 0
      %3412 = vmatpush1.bf16.msra.mxu0 0
      %3413 = vmatprep.subr.bf16.mxu0 0
      %3414 = vmatpush1.bf16.msra.mxu0 0
      %3415 = vmatprep.mubr.bf16.mxu0 0
      %3416 = vmatmul.mubr.bf16.gmra.mrb[0].mxu0 %v1412
      %v3417 = vpop.f32.mrb[0].mxu0
      %v3418 = vadd.f32 %v3258, %v3417
      %v3419 = vpop.f32.mrb[0].mxu0
      %v3420 = vpop.f32.mrb[0].mxu0
      %v3421 = vpop.f32.mrb[0].mxu0
      %3422 = vdwg.mxu0
      %v3427 = vunpack.c.l.b16 %v2762
      %v3428 = vunpack.c.l.b16 %v2763
      %v3429 = vunpack.c.l.b16 %v2764
      %v3430 = vunpack.c.l.b16 %v2765
      %v3431 = vpack.c.b16 %v3428, %v3427
      %v3432 = vpack.c.b16 %v3430, %v3429
      %3435 = vmatprep.subr.bf16.mxu0 0
      %3436 = vmatpush1.bf16.msra.mxu0 %v3431
      %3437 = vmatprep.subr.bf16.mxu0 0
      %3438 = vmatpush1.bf16.msra.mxu0 %v3432
      %3439 = vmatprep.subr.bf16.mxu0 0
      %3440 = vmatpush1.bf16.msra.mxu0 0
      %3441 = vmatprep.subr.bf16.mxu0 0
      %3442 = vmatpush1.bf16.msra.mxu0 0
      %3443 = vmatprep.subr.bf16.mxu0 0
      %3444 = vmatpush1.bf16.msra.mxu0 0
      %3445 = vmatprep.subr.bf16.mxu0 0
      %3446 = vmatpush1.bf16.msra.mxu0 0
      %3447 = vmatprep.subr.bf16.mxu0 0
      %3448 = vmatpush1.bf16.msra.mxu0 0
      %3449 = vmatprep.subr.bf16.mxu0 0
      %3450 = vmatpush1.bf16.msra.mxu0 0
      %3451 = vmatprep.subr.bf16.mxu0 0
      %3452 = vmatpush1.bf16.msra.mxu0 0
      %3453 = vmatprep.subr.bf16.mxu0 0
      %3454 = vmatpush1.bf16.msra.mxu0 0
      %3455 = vmatprep.subr.bf16.mxu0 0
      %3456 = vmatpush1.bf16.msra.mxu0 0
      %3457 = vmatprep.subr.bf16.mxu0 0
      %3458 = vmatpush1.bf16.msra.mxu0 0
      %3459 = vmatprep.subr.bf16.mxu0 0
      %3460 = vmatpush1.bf16.msra.mxu0 0
      %3461 = vmatprep.subr.bf16.mxu0 0
      %3462 = vmatpush1.bf16.msra.mxu0 0
      %3463 = vmatprep.subr.bf16.mxu0 0
      %3464 = vmatpush1.bf16.msra.mxu0 0
      %3465 = vmatprep.subr.bf16.mxu0 0
      %3466 = vmatpush1.bf16.msra.mxu0 0
      %3467 = vmatprep.mubr.bf16.mxu0 0
      %3468 = vmatmul.mubr.bf16.gmra.mrb[0].mxu0 %v1412
      %v3469 = vpop.f32.mrb[0].mxu0
      %v3470 = vadd.f32 %v3262, %v3469
      %v3471 = vpop.f32.mrb[0].mxu0
      %v3472 = vpop.f32.mrb[0].mxu0
      %v3473 = vpop.f32.mrb[0].mxu0
      %3474 = vdwg.mxu0
      %v3475 = vpack.c.bf16 %v2850, %v2850
      %v3476 = vpack.c.bf16 %v2902, %v2902
      %v3477 = vpack.c.bf16 %v2954, %v2954
      %v3478 = vpack.c.bf16 %v3006, %v3006
      %v3479 = vpack.c.bf16 %v3082, %v3082
      %v3480 = vpack.c.bf16 %v3134, %v3134
      %v3481 = vpack.c.bf16 %v3186, %v3186
      %v3482 = vpack.c.bf16 %v3238, %v3238
      %v3484 = vsel %vm2082, %v3475, 0
      %v3487 = vsel %vm2082, %v3479, 0
      %3489 = vmatprep.subr.bf16.mxu0 0
      %3490 = vmatpush1.bf16.xpose.msra.mxu0 %v3487
      %3491 = vmatprep.subr.bf16.mxu0 0
      %3492 = vmatpush1.bf16.xpose.msra.mxu0 0
      %3493 = vmatprep.subr.bf16.mxu0 0
      %3494 = vmatpush1.bf16.xpose.msra.mxu0 0
      %3495 = vmatprep.subr.bf16.mxu0 0
      %3496 = vmatpush1.bf16.xpose.msra.mxu0 0
      %3497 = vmatprep.subr.bf16.mxu0 0
      %3498 = vmatpush1.bf16.xpose.msra.mxu0 0
      %3499 = vmatprep.subr.bf16.mxu0 0
      %3500 = vmatpush1.bf16.xpose.msra.mxu0 0
      %3501 = vmatprep.subr.bf16.mxu0 0
      %3502 = vmatpush1.bf16.xpose.msra.mxu0 0
      %3503 = vmatprep.subr.bf16.mxu0 0
      %3504 = vmatpush1.bf16.xpose.msra.mxu0 0
      %3505 = vmatprep.subr.bf16.mxu0 0
      %3506 = vmatpush1.bf16.xpose.msra.mxu0 0
      %3507 = vmatprep.subr.bf16.mxu0 0
      %3508 = vmatpush1.bf16.xpose.msra.mxu0 0
      %3509 = vmatprep.subr.bf16.mxu0 0
      %3510 = vmatpush1.bf16.xpose.msra.mxu0 0
      %3511 = vmatprep.subr.bf16.mxu0 0
      %3512 = vmatpush1.bf16.xpose.msra.mxu0 0
      %3513 = vmatprep.subr.bf16.mxu0 0
      %3514 = vmatpush1.bf16.xpose.msra.mxu0 0
      %3515 = vmatprep.subr.bf16.mxu0 0
      %3516 = vmatpush1.bf16.xpose.msra.mxu0 0
      %3517 = vmatprep.subr.bf16.mxu0 0
      %3518 = vmatpush1.bf16.xpose.msra.mxu0 0
      %3519 = vmatprep.subr.bf16.mxu0 0
      %3520 = vmatpush1.bf16.xpose.msra.mxu0 0
      %3521 = vmatprep.mubr.bf16.mxu0 0
      %3522 = vmatmul.mubr.bf16.gmra.mrb[0].mxu0 %v3484
      %v3523 = vpop.f32.mrb[0].mxu0
      %v3524 = vadd.f32 0.0, %v3523
      %v3525 = vpop.f32.mrb[0].mxu0
      %v3526 = vpop.f32.mrb[0].mxu0
      %v3527 = vpop.f32.mrb[0].mxu0
      %3528 = vdwg.mxu0
      %v3530 = vsel %vm2082, %v3476, 0
      %v3533 = vsel %vm2082, %v3480, 0
      %3535 = vmatprep.subr.bf16.mxu0 0
      %3536 = vmatpush1.bf16.xpose.msra.mxu0 %v3533
      %3537 = vmatprep.subr.bf16.mxu0 0
      %3538 = vmatpush1.bf16.xpose.msra.mxu0 0
      %3539 = vmatprep.subr.bf16.mxu0 0
      %3540 = vmatpush1.bf16.xpose.msra.mxu0 0
      %3541 = vmatprep.subr.bf16.mxu0 0
      %3542 = vmatpush1.bf16.xpose.msra.mxu0 0
      %3543 = vmatprep.subr.bf16.mxu0 0
      %3544 = vmatpush1.bf16.xpose.msra.mxu0 0
      %3545 = vmatprep.subr.bf16.mxu0 0
      %3546 = vmatpush1.bf16.xpose.msra.mxu0 0
      %3547 = vmatprep.subr.bf16.mxu0 0
      %3548 = vmatpush1.bf16.xpose.msra.mxu0 0
      %3549 = vmatprep.subr.bf16.mxu0 0
      %3550 = vmatpush1.bf16.xpose.msra.mxu0 0
      %3551 = vmatprep.subr.bf16.mxu0 0
      %3552 = vmatpush1.bf16.xpose.msra.mxu0 0
      %3553 = vmatprep.subr.bf16.mxu0 0
      %3554 = vmatpush1.bf16.xpose.msra.mxu0 0
      %3555 = vmatprep.subr.bf16.mxu0 0
      %3556 = vmatpush1.bf16.xpose.msra.mxu0 0
      %3557 = vmatprep.subr.bf16.mxu0 0
      %3558 = vmatpush1.bf16.xpose.msra.mxu0 0
      %3559 = vmatprep.subr.bf16.mxu0 0
      %3560 = vmatpush1.bf16.xpose.msra.mxu0 0
      %3561 = vmatprep.subr.bf16.mxu0 0
      %3562 = vmatpush1.bf16.xpose.msra.mxu0 0
      %3563 = vmatprep.subr.bf16.mxu0 0
      %3564 = vmatpush1.bf16.xpose.msra.mxu0 0
      %3565 = vmatprep.subr.bf16.mxu0 0
      %3566 = vmatpush1.bf16.xpose.msra.mxu0 0
      %3567 = vmatprep.mubr.bf16.mxu0 0
      %3568 = vmatmul.mubr.bf16.gmra.mrb[0].mxu0 %v3530
      %v3569 = vpop.f32.mrb[0].mxu0
      %v3570 = vadd.f32 0.0, %v3569
      %v3571 = vpop.f32.mrb[0].mxu0
      %v3572 = vpop.f32.mrb[0].mxu0
      %v3573 = vpop.f32.mrb[0].mxu0
      %3574 = vdwg.mxu0
      %v3576 = vsel %vm2082, %v3477, 0
      %v3579 = vsel %vm2082, %v3481, 0
      %3581 = vmatprep.subr.bf16.mxu0 0
      %3582 = vmatpush1.bf16.xpose.msra.mxu0 %v3579
      %3583 = vmatprep.subr.bf16.mxu0 0
      %3584 = vmatpush1.bf16.xpose.msra.mxu0 0
      %3585 = vmatprep.subr.bf16.mxu0 0
      %3586 = vmatpush1.bf16.xpose.msra.mxu0 0
      %3587 = vmatprep.subr.bf16.mxu0 0
      %3588 = vmatpush1.bf16.xpose.msra.mxu0 0
      %3589 = vmatprep.subr.bf16.mxu0 0
      %3590 = vmatpush1.bf16.xpose.msra.mxu0 0
      %3591 = vmatprep.subr.bf16.mxu0 0
      %3592 = vmatpush1.bf16.xpose.msra.mxu0 0
      %3593 = vmatprep.subr.bf16.mxu0 0
      %3594 = vmatpush1.bf16.xpose.msra.mxu0 0
      %3595 = vmatprep.subr.bf16.mxu0 0
      %3596 = vmatpush1.bf16.xpose.msra.mxu0 0
      %3597 = vmatprep.subr.bf16.mxu0 0
      %3598 = vmatpush1.bf16.xpose.msra.mxu0 0
      %3599 = vmatprep.subr.bf16.mxu0 0
      %3600 = vmatpush1.bf16.xpose.msra.mxu0 0
      %3601 = vmatprep.subr.bf16.mxu0 0
      %3602 = vmatpush1.bf16.xpose.msra.mxu0 0
      %3603 = vmatprep.subr.bf16.mxu0 0
      %3604 = vmatpush1.bf16.xpose.msra.mxu0 0
      %3605 = vmatprep.subr.bf16.mxu0 0
      %3606 = vmatpush1.bf16.xpose.msra.mxu0 0
      %3607 = vmatprep.subr.bf16.mxu0 0
      %3608 = vmatpush1.bf16.xpose.msra.mxu0 0
      %3609 = vmatprep.subr.bf16.mxu0 0
      %3610 = vmatpush1.bf16.xpose.msra.mxu0 0
      %3611 = vmatprep.subr.bf16.mxu0 0
      %3612 = vmatpush1.bf16.xpose.msra.mxu0 0
      %3613 = vmatprep.mubr.bf16.mxu0 0
      %3614 = vmatmul.mubr.bf16.gmra.mrb[0].mxu0 %v3576
      %v3615 = vpop.f32.mrb[0].mxu0
      %v3616 = vadd.f32 0.0, %v3615
      %v3617 = vpop.f32.mrb[0].mxu0
      %v3618 = vpop.f32.mrb[0].mxu0
      %v3619 = vpop.f32.mrb[0].mxu0
      %3620 = vdwg.mxu0
      %v3622 = vsel %vm2082, %v3478, 0
      %v3625 = vsel %vm2082, %v3482, 0
      %3627 = vmatprep.subr.bf16.mxu0 0
      %3628 = vmatpush1.bf16.xpose.msra.mxu0 %v3625
      %3629 = vmatprep.subr.bf16.mxu0 0
      %3630 = vmatpush1.bf16.xpose.msra.mxu0 0
      %3631 = vmatprep.subr.bf16.mxu0 0
      %3632 = vmatpush1.bf16.xpose.msra.mxu0 0
      %3633 = vmatprep.subr.bf16.mxu0 0
      %3634 = vmatpush1.bf16.xpose.msra.mxu0 0
      %3635 = vmatprep.subr.bf16.mxu0 0
      %3636 = vmatpush1.bf16.xpose.msra.mxu0 0
      %3637 = vmatprep.subr.bf16.mxu0 0
      %3638 = vmatpush1.bf16.xpose.msra.mxu0 0
      %3639 = vmatprep.subr.bf16.mxu0 0
      %3640 = vmatpush1.bf16.xpose.msra.mxu0 0
      %3641 = vmatprep.subr.bf16.mxu0 0
      %3642 = vmatpush1.bf16.xpose.msra.mxu0 0
      %3643 = vmatprep.subr.bf16.mxu0 0
      %3644 = vmatpush1.bf16.xpose.msra.mxu0 0
      %3645 = vmatprep.subr.bf16.mxu0 0
      %3646 = vmatpush1.bf16.xpose.msra.mxu0 0
      %3647 = vmatprep.subr.bf16.mxu0 0
      %3648 = vmatpush1.bf16.xpose.msra.mxu0 0
      %3649 = vmatprep.subr.bf16.mxu0 0
      %3650 = vmatpush1.bf16.xpose.msra.mxu0 0
      %3651 = vmatprep.subr.bf16.mxu0 0
      %3652 = vmatpush1.bf16.xpose.msra.mxu0 0
      %3653 = vmatprep.subr.bf16.mxu0 0
      %3654 = vmatpush1.bf16.xpose.msra.mxu0 0
      %3655 = vmatprep.subr.bf16.mxu0 0
      %3656 = vmatpush1.bf16.xpose.msra.mxu0 0
      %3657 = vmatprep.subr.bf16.mxu0 0
      %3658 = vmatpush1.bf16.xpose.msra.mxu0 0
      %3659 = vmatprep.mubr.bf16.mxu0 0
      %3660 = vmatmul.mubr.bf16.gmra.mrb[0].mxu0 %v3622
      %v3661 = vpop.f32.mrb[0].mxu0
      %v3662 = vadd.f32 0.0, %v3661
      %v3663 = vpop.f32.mrb[0].mxu0
      %v3664 = vpop.f32.mrb[0].mxu0
      %v3665 = vpop.f32.mrb[0].mxu0
      %3666 = vdwg.mxu0
      %v3667 = vmul.f32 %v3524, 0.35355338
      %v3668 = vmul.f32 %v3570, 0.35355338
      %v3669 = vmul.f32 %v3616, 0.35355338
      %v3670 = vmul.f32 %v3662, 0.35355338
      %v3671 = vsel %vm2082, %v3667, -inf
      %3672 = vmax.xlane.f32.xlu0 %v3671
      %v3673 = vpop.xlane.xlu0 %3672
      %v3674 = vsel %vm2082, %v3668, -inf
      %3675 = vmax.xlane.f32.xlu0 %v3674
      %v3676 = vpop.xlane.xlu0 %3675
      %v3677 = vsel %vm2082, %v3669, -inf
      %3678 = vmax.xlane.f32.xlu0 %v3677
      %v3679 = vpop.xlane.xlu0 %3678
      %v3680 = vsel %vm2082, %v3670, -inf
      %3681 = vmax.xlane.f32.xlu0 %v3680
      %v3682 = vpop.xlane.xlu0 %3681
      %v3683 = vsub.f32 %v3667, %v3673
      %v3684 = vsub.f32 %v3668, %v3676
      %v3685 = vsub.f32 %v3669, %v3679
      %v3686 = vsub.f32 %v3670, %v3682
      %v3687 = vmul.f32 %v3683, 1.442695
      %v3688 = vpow.pop %v3687
      %v3689 = vmul.f32 %v3684, 1.442695
      %v3690 = vpow.pop %v3689
      %v3691 = vmul.f32 %v3685, 1.442695
      %v3692 = vpow.pop %v3691
      %v3693 = vmul.f32 %v3686, 1.442695
      %v3694 = vpow.pop %v3693
      %v3695 = vsel %vm2082, %v3688, 0.0
      %3696 = vadd.xlane.f32.xlu0 %v3695
      %v3697 = vpop.xlane.xlu0 %3696
      %v3698 = vsel %vm2082, %v3690, 0.0
      %3699 = vadd.xlane.f32.xlu0 %v3698
      %v3700 = vpop.xlane.xlu0 %3699
      %v3701 = vsel %vm2082, %v3692, 0.0
      %3702 = vadd.xlane.f32.xlu0 %v3701
      %v3703 = vpop.xlane.xlu0 %3702
      %v3704 = vsel %vm2082, %v3694, 0.0
      %3705 = vadd.xlane.f32.xlu0 %v3704
      %v3706 = vpop.xlane.xlu0 %3705
      %v3707 = vrcp.pop %v3697
      %v3708 = vrcp.pop %v3700
      %v3709 = vrcp.pop %v3703
      %v3710 = vrcp.pop %v3706
      %v3711 = vmul.f32 %v3688, %v3707
      %v3712 = vmul.f32 %v3690, %v3708
      %v3713 = vmul.f32 %v3692, %v3709
      %v3714 = vmul.f32 %v3694, %v3710
      %v3715 = vpack.c.bf16 %v3711, %v3711
      %v3716 = vpack.c.bf16 %v3712, %v3712
      %v3717 = vpack.c.bf16 %v3713, %v3713
      %v3718 = vpack.c.bf16 %v3714, %v3714
      %v3719 = vpack.c.bf16 %v3314, %v3314
      %v3720 = vpack.c.bf16 %v3366, %v3366
      %v3721 = vpack.c.bf16 %v3418, %v3418
      %v3722 = vpack.c.bf16 %v3470, %v3470
      %v3724 = vsel %vm2082, %v3715, 0
      %v3727 = vsel %vm2326, %v3719, 0
      %3729 = vmatprep.subr.bf16.mxu0 0
      %3730 = vmatpush1.bf16.msra.mxu0 %v3727
      %3731 = vmatprep.subr.bf16.mxu0 0
      %3732 = vmatpush1.bf16.msra.mxu0 0
      %3733 = vmatprep.subr.bf16.mxu0 0
      %3734 = vmatpush1.bf16.msra.mxu0 0
      %3735 = vmatprep.subr.bf16.mxu0 0
      %3736 = vmatpush1.bf16.msra.mxu0 0
      %3737 = vmatprep.subr.bf16.mxu0 0
      %3738 = vmatpush1.bf16.msra.mxu0 0
      %3739 = vmatprep.subr.bf16.mxu0 0
      %3740 = vmatpush1.bf16.msra.mxu0 0
      %3741 = vmatprep.subr.bf16.mxu0 0
      %3742 = vmatpush1.bf16.msra.mxu0 0
      %3743 = vmatprep.subr.bf16.mxu0 0
      %3744 = vmatpush1.bf16.msra.mxu0 0
      %3745 = vmatprep.subr.bf16.mxu0 0
      %3746 = vmatpush1.bf16.msra.mxu0 0
      %3747 = vmatprep.subr.bf16.mxu0 0
      %3748 = vmatpush1.bf16.msra.mxu0 0
      %3749 = vmatprep.subr.bf16.mxu0 0
      %3750 = vmatpush1.bf16.msra.mxu0 0
      %3751 = vmatprep.subr.bf16.mxu0 0
      %3752 = vmatpush1.bf16.msra.mxu0 0
      %3753 = vmatprep.subr.bf16.mxu0 0
      %3754 = vmatpush1.bf16.msra.mxu0 0
      %3755 = vmatprep.subr.bf16.mxu0 0
      %3756 = vmatpush1.bf16.msra.mxu0 0
      %3757 = vmatprep.subr.bf16.mxu0 0
      %3758 = vmatpush1.bf16.msra.mxu0 0
      %3759 = vmatprep.subr.bf16.mxu0 0
      %3760 = vmatpush1.bf16.msra.mxu0 0
      %3761 = vmatprep.mubr.bf16.mxu0 0
      %3762 = vmatmul.mubr.bf16.gmra.mrb[0].mxu0 %v3724
      %v3763 = vpop.f32.mrb[0].mxu0
      %v3764 = vadd.f32 0.0, %v3763
      %v3765 = vpop.f32.mrb[0].mxu0
      %v3766 = vpop.f32.mrb[0].mxu0
      %v3767 = vpop.f32.mrb[0].mxu0
      %3768 = vdwg.mxu0
      %v3770 = vsel %vm2082, %v3716, 0
      %v3773 = vsel %vm2326, %v3720, 0
      %3775 = vmatprep.subr.bf16.mxu0 0
      %3776 = vmatpush1.bf16.msra.mxu0 %v3773
      %3777 = vmatprep.subr.bf16.mxu0 0
      %3778 = vmatpush1.bf16.msra.mxu0 0
      %3779 = vmatprep.subr.bf16.mxu0 0
      %3780 = vmatpush1.bf16.msra.mxu0 0
      %3781 = vmatprep.subr.bf16.mxu0 0
      %3782 = vmatpush1.bf16.msra.mxu0 0
      %3783 = vmatprep.subr.bf16.mxu0 0
      %3784 = vmatpush1.bf16.msra.mxu0 0
      %3785 = vmatprep.subr.bf16.mxu0 0
      %3786 = vmatpush1.bf16.msra.mxu0 0
      %3787 = vmatprep.subr.bf16.mxu0 0
      %3788 = vmatpush1.bf16.msra.mxu0 0
      %3789 = vmatprep.subr.bf16.mxu0 0
      %3790 = vmatpush1.bf16.msra.mxu0 0
      %3791 = vmatprep.subr.bf16.mxu0 0
      %3792 = vmatpush1.bf16.msra.mxu0 0
      %3793 = vmatprep.subr.bf16.mxu0 0
      %3794 = vmatpush1.bf16.msra.mxu0 0
      %3795 = vmatprep.subr.bf16.mxu0 0
      %3796 = vmatpush1.bf16.msra.mxu0 0
      %3797 = vmatprep.subr.bf16.mxu0 0
      %3798 = vmatpush1.bf16.msra.mxu0 0
      %3799 = vmatprep.subr.bf16.mxu0 0
      %3800 = vmatpush1.bf16.msra.mxu0 0
      %3801 = vmatprep.subr.bf16.mxu0 0
      %3802 = vmatpush1.bf16.msra.mxu0 0
      %3803 = vmatprep.subr.bf16.mxu0 0
      %3804 = vmatpush1.bf16.msra.mxu0 0
      %3805 = vmatprep.subr.bf16.mxu0 0
      %3806 = vmatpush1.bf16.msra.mxu0 0
      %3807 = vmatprep.mubr.bf16.mxu0 0
      %3808 = vmatmul.mubr.bf16.gmra.mrb[0].mxu0 %v3770
      %v3809 = vpop.f32.mrb[0].mxu0
      %v3810 = vadd.f32 0.0, %v3809
      %v3811 = vpop.f32.mrb[0].mxu0
      %v3812 = vpop.f32.mrb[0].mxu0
      %v3813 = vpop.f32.mrb[0].mxu0
      %3814 = vdwg.mxu0
      %v3816 = vsel %vm2082, %v3717, 0
      %v3819 = vsel %vm2326, %v3721, 0
      %3821 = vmatprep.subr.bf16.mxu0 0
      %3822 = vmatpush1.bf16.msra.mxu0 %v3819
      %3823 = vmatprep.subr.bf16.mxu0 0
      %3824 = vmatpush1.bf16.msra.mxu0 0
      %3825 = vmatprep.subr.bf16.mxu0 0
      %3826 = vmatpush1.bf16.msra.mxu0 0
      %3827 = vmatprep.subr.bf16.mxu0 0
      %3828 = vmatpush1.bf16.msra.mxu0 0
      %3829 = vmatprep.subr.bf16.mxu0 0
      %3830 = vmatpush1.bf16.msra.mxu0 0
      %3831 = vmatprep.subr.bf16.mxu0 0
      %3832 = vmatpush1.bf16.msra.mxu0 0
      %3833 = vmatprep.subr.bf16.mxu0 0
      %3834 = vmatpush1.bf16.msra.mxu0 0
      %3835 = vmatprep.subr.bf16.mxu0 0
      %3836 = vmatpush1.bf16.msra.mxu0 0
      %3837 = vmatprep.subr.bf16.mxu0 0
      %3838 = vmatpush1.bf16.msra.mxu0 0
      %3839 = vmatprep.subr.bf16.mxu0 0
      %3840 = vmatpush1.bf16.msra.mxu0 0
      %3841 = vmatprep.subr.bf16.mxu0 0
      %3842 = vmatpush1.bf16.msra.mxu0 0
      %3843 = vmatprep.subr.bf16.mxu0 0
      %3844 = vmatpush1.bf16.msra.mxu0 0
      %3845 = vmatprep.subr.bf16.mxu0 0
      %3846 = vmatpush1.bf16.msra.mxu0 0
      %3847 = vmatprep.subr.bf16.mxu0 0
      %3848 = vmatpush1.bf16.msra.mxu0 0
      %3849 = vmatprep.subr.bf16.mxu0 0
      %3850 = vmatpush1.bf16.msra.mxu0 0
      %3851 = vmatprep.subr.bf16.mxu0 0
      %3852 = vmatpush1.bf16.msra.mxu0 0
      %3853 = vmatprep.mubr.bf16.mxu0 0
      %3854 = vmatmul.mubr.bf16.gmra.mrb[0].mxu0 %v3816
      %v3855 = vpop.f32.mrb[0].mxu0
      %v3856 = vadd.f32 0.0, %v3855
      %v3857 = vpop.f32.mrb[0].mxu0
      %v3858 = vpop.f32.mrb[0].mxu0
      %v3859 = vpop.f32.mrb[0].mxu0
      %3860 = vdwg.mxu0
      %v3862 = vsel %vm2082, %v3718, 0
      %v3865 = vsel %vm2326, %v3722, 0
      %3867 = vmatprep.subr.bf16.mxu0 0
      %3868 = vmatpush1.bf16.msra.mxu0 %v3865
      %3869 = vmatprep.subr.bf16.mxu0 0
      %3870 = vmatpush1.bf16.msra.mxu0 0
      %3871 = vmatprep.subr.bf16.mxu0 0
      %3872 = vmatpush1.bf16.msra.mxu0 0
      %3873 = vmatprep.subr.bf16.mxu0 0
      %3874 = vmatpush1.bf16.msra.mxu0 0
      %3875 = vmatprep.subr.bf16.mxu0 0
      %3876 = vmatpush1.bf16.msra.mxu0 0
      %3877 = vmatprep.subr.bf16.mxu0 0
      %3878 = vmatpush1.bf16.msra.mxu0 0
      %3879 = vmatprep.subr.bf16.mxu0 0
      %3880 = vmatpush1.bf16.msra.mxu0 0
      %3881 = vmatprep.subr.bf16.mxu0 0
      %3882 = vmatpush1.bf16.msra.mxu0 0
      %3883 = vmatprep.subr.bf16.mxu0 0
      %3884 = vmatpush1.bf16.msra.mxu0 0
      %3885 = vmatprep.subr.bf16.mxu0 0
      %3886 = vmatpush1.bf16.msra.mxu0 0
      %3887 = vmatprep.subr.bf16.mxu0 0
      %3888 = vmatpush1.bf16.msra.mxu0 0
      %3889 = vmatprep.subr.bf16.mxu0 0
      %3890 = vmatpush1.bf16.msra.mxu0 0
      %3891 = vmatprep.subr.bf16.mxu0 0
      %3892 = vmatpush1.bf16.msra.mxu0 0
      %3893 = vmatprep.subr.bf16.mxu0 0
      %3894 = vmatpush1.bf16.msra.mxu0 0
      %3895 = vmatprep.subr.bf16.mxu0 0
      %3896 = vmatpush1.bf16.msra.mxu0 0
      %3897 = vmatprep.subr.bf16.mxu0 0
      %3898 = vmatpush1.bf16.msra.mxu0 0
      %3899 = vmatprep.mubr.bf16.mxu0 0
      %3900 = vmatmul.mubr.bf16.gmra.mrb[0].mxu0 %v3862
      %v3901 = vpop.f32.mrb[0].mxu0
      %v3902 = vadd.f32 0.0, %v3901
      %v3903 = vpop.f32.mrb[0].mxu0
      %v3904 = vpop.f32.mrb[0].mxu0
      %v3905 = vpop.f32.mrb[0].mxu0
      %3906 = vdwg.mxu0
      %v3907 = vpack.c.bf16 %v3764, %v3764
      %v3908 = vpack.c.bf16 %v3810, %v3810
      %v3909 = vpack.c.bf16 %v3856, %v3856
      %v3910 = vpack.c.bf16 %v3902, %v3902
      %v3912 = vsel %vm2082, %v3907, 0
      %v3915 = vsel %vm2326, %v2770, 0
      %3917 = vmatprep.subr.bf16.mxu0 0
      %3918 = vmatpush1.bf16.msra.mxu0 %v3915
      %3919 = vmatprep.subr.bf16.mxu0 0
      %3920 = vmatpush1.bf16.msra.mxu0 0
      %3921 = vmatprep.subr.bf16.mxu0 0
      %3922 = vmatpush1.bf16.msra.mxu0 0
      %3923 = vmatprep.subr.bf16.mxu0 0
      %3924 = vmatpush1.bf16.msra.mxu0 0
      %3925 = vmatprep.subr.bf16.mxu0 0
      %3926 = vmatpush1.bf16.msra.mxu0 0
      %3927 = vmatprep.subr.bf16.mxu0 0
      %3928 = vmatpush1.bf16.msra.mxu0 0
      %3929 = vmatprep.subr.bf16.mxu0 0
      %3930 = vmatpush1.bf16.msra.mxu0 0
      %3931 = vmatprep.subr.bf16.mxu0 0
      %3932 = vmatpush1.bf16.msra.mxu0 0
      %3933 = vmatprep.subr.bf16.mxu0 0
      %3934 = vmatpush1.bf16.msra.mxu0 0
      %3935 = vmatprep.subr.bf16.mxu0 0
      %3936 = vmatpush1.bf16.msra.mxu0 0
      %3937 = vmatprep.subr.bf16.mxu0 0
      %3938 = vmatpush1.bf16.msra.mxu0 0
      %3939 = vmatprep.subr.bf16.mxu0 0
      %3940 = vmatpush1.bf16.msra.mxu0 0
      %3941 = vmatprep.subr.bf16.mxu0 0
      %3942 = vmatpush1.bf16.msra.mxu0 0
      %3943 = vmatprep.subr.bf16.mxu0 0
      %3944 = vmatpush1.bf16.msra.mxu0 0
      %3945 = vmatprep.subr.bf16.mxu0 0
      %3946 = vmatpush1.bf16.msra.mxu0 0
      %3947 = vmatprep.subr.bf16.mxu0 0
      %3948 = vmatpush1.bf16.msra.mxu0 0
      %3949 = vmatprep.mubr.bf16.mxu0 0
      %3950 = vmatmul.mubr.bf16.gmra.mrb[0].mxu0 %v3912
      %v3951 = vpop.f32.mrb[0].mxu0
      %v3952 = vadd.f32 0.0, %v3951
      %v3953 = vpop.f32.mrb[0].mxu0
      %v3954 = vpop.f32.mrb[0].mxu0
      %v3955 = vpop.f32.mrb[0].mxu0
      %3956 = vdwg.mxu0
      %v3958 = vsel %vm2082, %v3908, 0
      %v3961 = vsel %vm2326, %v2771, 0
      %3963 = vmatprep.subr.bf16.mxu0 0
      %3964 = vmatpush1.bf16.msra.mxu0 %v3961
      %3965 = vmatprep.subr.bf16.mxu0 0
      %3966 = vmatpush1.bf16.msra.mxu0 0
      %3967 = vmatprep.subr.bf16.mxu0 0
      %3968 = vmatpush1.bf16.msra.mxu0 0
      %3969 = vmatprep.subr.bf16.mxu0 0
      %3970 = vmatpush1.bf16.msra.mxu0 0
      %3971 = vmatprep.subr.bf16.mxu0 0
      %3972 = vmatpush1.bf16.msra.mxu0 0
      %3973 = vmatprep.subr.bf16.mxu0 0
      %3974 = vmatpush1.bf16.msra.mxu0 0
      %3975 = vmatprep.subr.bf16.mxu0 0
      %3976 = vmatpush1.bf16.msra.mxu0 0
      %3977 = vmatprep.subr.bf16.mxu0 0
      %3978 = vmatpush1.bf16.msra.mxu0 0
      %3979 = vmatprep.subr.bf16.mxu0 0
      %3980 = vmatpush1.bf16.msra.mxu0 0
      %3981 = vmatprep.subr.bf16.mxu0 0
      %3982 = vmatpush1.bf16.msra.mxu0 0
      %3983 = vmatprep.subr.bf16.mxu0 0
      %3984 = vmatpush1.bf16.msra.mxu0 0
      %3985 = vmatprep.subr.bf16.mxu0 0
      %3986 = vmatpush1.bf16.msra.mxu0 0
      %3987 = vmatprep.subr.bf16.mxu0 0
      %3988 = vmatpush1.bf16.msra.mxu0 0
      %3989 = vmatprep.subr.bf16.mxu0 0
      %3990 = vmatpush1.bf16.msra.mxu0 0
      %3991 = vmatprep.subr.bf16.mxu0 0
      %3992 = vmatpush1.bf16.msra.mxu0 0
      %3993 = vmatprep.subr.bf16.mxu0 0
      %3994 = vmatpush1.bf16.msra.mxu0 0
      %3995 = vmatprep.mubr.bf16.mxu0 0
      %3996 = vmatmul.mubr.bf16.gmra.mrb[0].mxu0 %v3958
      %v3997 = vpop.f32.mrb[0].mxu0
      %v3998 = vadd.f32 0.0, %v3997
      %v3999 = vpop.f32.mrb[0].mxu0
      %v4000 = vpop.f32.mrb[0].mxu0
      %v4001 = vpop.f32.mrb[0].mxu0
      %4002 = vdwg.mxu0
      %v4004 = vsel %vm2082, %v3909, 0
      %v4007 = vsel %vm2326, %v2772, 0
      %4009 = vmatprep.subr.bf16.mxu0 0
      %4010 = vmatpush1.bf16.msra.mxu0 %v4007
      %4011 = vmatprep.subr.bf16.mxu0 0
      %4012 = vmatpush1.bf16.msra.mxu0 0
      %4013 = vmatprep.subr.bf16.mxu0 0
      %4014 = vmatpush1.bf16.msra.mxu0 0
      %4015 = vmatprep.subr.bf16.mxu0 0
      %4016 = vmatpush1.bf16.msra.mxu0 0
      %4017 = vmatprep.subr.bf16.mxu0 0
      %4018 = vmatpush1.bf16.msra.mxu0 0
      %4019 = vmatprep.subr.bf16.mxu0 0
      %4020 = vmatpush1.bf16.msra.mxu0 0
      %4021 = vmatprep.subr.bf16.mxu0 0
      %4022 = vmatpush1.bf16.msra.mxu0 0
      %4023 = vmatprep.subr.bf16.mxu0 0
      %4024 = vmatpush1.bf16.msra.mxu0 0
      %4025 = vmatprep.subr.bf16.mxu0 0
      %4026 = vmatpush1.bf16.msra.mxu0 0
      %4027 = vmatprep.subr.bf16.mxu0 0
      %4028 = vmatpush1.bf16.msra.mxu0 0
      %4029 = vmatprep.subr.bf16.mxu0 0
      %4030 = vmatpush1.bf16.msra.mxu0 0
      %4031 = vmatprep.subr.bf16.mxu0 0
      %4032 = vmatpush1.bf16.msra.mxu0 0
      %4033 = vmatprep.subr.bf16.mxu0 0
      %4034 = vmatpush1.bf16.msra.mxu0 0
      %4035 = vmatprep.subr.bf16.mxu0 0
      %4036 = vmatpush1.bf16.msra.mxu0 0
      %4037 = vmatprep.subr.bf16.mxu0 0
      %4038 = vmatpush1.bf16.msra.mxu0 0
      %4039 = vmatprep.subr.bf16.mxu0 0
      %4040 = vmatpush1.bf16.msra.mxu0 0
      %4041 = vmatprep.mubr.bf16.mxu0 0
      %4042 = vmatmul.mubr.bf16.gmra.mrb[0].mxu0 %v4004
      %v4043 = vpop.f32.mrb[0].mxu0
      %v4044 = vadd.f32 0.0, %v4043
      %v4045 = vpop.f32.mrb[0].mxu0
      %v4046 = vpop.f32.mrb[0].mxu0
      %v4047 = vpop.f32.mrb[0].mxu0
      %4048 = vdwg.mxu0
      %v4050 = vsel %vm2082, %v3910, 0
      %v4053 = vsel %vm2326, %v2773, 0
      %4055 = vmatprep.subr.bf16.mxu0 0
      %4056 = vmatpush1.bf16.msra.mxu0 %v4053
      %4057 = vmatprep.subr.bf16.mxu0 0
      %4058 = vmatpush1.bf16.msra.mxu0 0
      %4059 = vmatprep.subr.bf16.mxu0 0
      %4060 = vmatpush1.bf16.msra.mxu0 0
      %4061 = vmatprep.subr.bf16.mxu0 0
      %4062 = vmatpush1.bf16.msra.mxu0 0
      %4063 = vmatprep.subr.bf16.mxu0 0
      %4064 = vmatpush1.bf16.msra.mxu0 0
      %4065 = vmatprep.subr.bf16.mxu0 0
      %4066 = vmatpush1.bf16.msra.mxu0 0
      %4067 = vmatprep.subr.bf16.mxu0 0
      %4068 = vmatpush1.bf16.msra.mxu0 0
      %4069 = vmatprep.subr.bf16.mxu0 0
      %4070 = vmatpush1.bf16.msra.mxu0 0
      %4071 = vmatprep.subr.bf16.mxu0 0
      %4072 = vmatpush1.bf16.msra.mxu0 0
      %4073 = vmatprep.subr.bf16.mxu0 0
      %4074 = vmatpush1.bf16.msra.mxu0 0
      %4075 = vmatprep.subr.bf16.mxu0 0
      %4076 = vmatpush1.bf16.msra.mxu0 0
      %4077 = vmatprep.subr.bf16.mxu0 0
      %4078 = vmatpush1.bf16.msra.mxu0 0
      %4079 = vmatprep.subr.bf16.mxu0 0
      %4080 = vmatpush1.bf16.msra.mxu0 0
      %4081 = vmatprep.subr.bf16.mxu0 0
      %4082 = vmatpush1.bf16.msra.mxu0 0
      %4083 = vmatprep.subr.bf16.mxu0 0
      %4084 = vmatpush1.bf16.msra.mxu0 0
      %4085 = vmatprep.subr.bf16.mxu0 0
      %4086 = vmatpush1.bf16.msra.mxu0 0
      %4087 = vmatprep.mubr.bf16.mxu0 0
      %4088 = vmatmul.mubr.bf16.gmra.mrb[0].mxu0 %v4050
      %v4089 = vpop.f32.mrb[0].mxu0
      %v4090 = vadd.f32 0.0, %v4089
      %v4091 = vpop.f32.mrb[0].mxu0
      %v4092 = vpop.f32.mrb[0].mxu0
      %v4093 = vpop.f32.mrb[0].mxu0
      %4094 = vdwg.mxu0
      %v4095 = vsel %vm1410, %v3952, 0.0
      %v4096 = vsel %vm1410, %v3998, 0.0
      %v4097 = vadd.f32 %v4095, %v4096
      %v4098 = vsel %vm1410, %v4044, 0.0
      %v4099 = vadd.f32 %v4097, %v4098
      %v4100 = vsel %vm1410, %v4090, 0.0
      %v4101 = vadd.f32 %v4099, %v4100
      %v4103 = vlaneseq
      %v4104 = vshrl.u32 %v4103, 7
      %v4105 = vsub.s32 0, %v4104
      %v4106 = vrot.slane %v2774, %v4105
      %v4108 = vadd.f32 %v4101, %v4106
      %v4109 = vadd.f32 %v1305, %v2709
      %v4110 = vadd.f32 %v4109, %v4108
      %v4111 = vld [vmem:[%s1268] sm:$0x1]
      %v4112 = vld [vmem:[%s1271] sm:$0x1]
      %v4113 = vsel %vm1410, %v4110, 0.0
      %4114 = vadd.xlane.f32.xlu0 %v4113
      %v4115 = vpop.xlane.xlu0 %4114
      %v4116 = vrcp.pop 32.0
      %v4117 = vmul.f32 %v4115, %v4116
      %v4118 = vsub.f32 %v4110, %v4117
      %v4119 = vmul.f32 %v4118, %v4118
      %v4120 = vsel %vm1410, %v4119, 0.0
      %4121 = vadd.xlane.f32.xlu0 %v4120
      %v4122 = vpop.xlane.xlu0 %4121
      %v4123 = vmul.f32 %v4122, %v4116
      %v4124 = vadd.f32 %v4123, 1e-06
      %v4125 = vrsqrt.pop %v4124
      %v4126 = vmul.f32 %v4118, %v4125
      %v4128 = vlaneseq
      %v4129 = vshrl.u32 %v4128, 7
      %v4130 = vsub.s32 0, %v4129
      %v4131 = vrot.slane %v4111, %v4130
      %v4133 = vmul.f32 %v4126, %v4131
      %v4135 = vlaneseq
      %v4136 = vshrl.u32 %v4135, 7
      %v4137 = vsub.s32 0, %v4136
      %v4138 = vrot.slane %v4112, %v4137
      %v4140 = vadd.f32 %v4133, %v4138
      %v4141 = vpack.c.bf16 %v4140, %v4140
      %v4142 = vld [vmem:[%s1276] sm:$0xf]
      %v4143 = vld [vmem:[%s1276 + $0x4] sm:$0xf]
      %v4144 = vld [vmem:[%s1276 + $0x8] sm:$0xf]
      %v4145 = vld [vmem:[%s1276 + $0xc] sm:$0xf]
      %v4146 = vld [vmem:[%s1279] sm:$0x1]
      %v4148 = vlaneseq
      %v4149 = vshrl.u32 %v4148, 7
      %v4150 = vsub.s32 0, %v4149
      %v4151 = vrot.slane %v4146, %v4150
      %v4157 = vunpack.c.l.b16 %v4142
      %v4158 = vunpack.c.l.b16 %v4143
      %v4159 = vunpack.c.l.b16 %v4144
      %v4160 = vunpack.c.l.b16 %v4145
      %v4161 = vpack.c.b16 %v4158, %v4157
      %v4162 = vpack.c.b16 %v4160, %v4159
      %v4166 = vsel %vm1410, %v4141, 0
      %4168 = vmatprep.subr.bf16.mxu0 0
      %4169 = vmatpush1.bf16.msra.mxu0 %v4161
      %4170 = vmatprep.subr.bf16.mxu0 0
      %4171 = vmatpush1.bf16.msra.mxu0 %v4162
      %4172 = vmatprep.subr.bf16.mxu0 0
      %4173 = vmatpush1.bf16.msra.mxu0 0
      %4174 = vmatprep.subr.bf16.mxu0 0
      %4175 = vmatpush1.bf16.msra.mxu0 0
      %4176 = vmatprep.subr.bf16.mxu0 0
      %4177 = vmatpush1.bf16.msra.mxu0 0
      %4178 = vmatprep.subr.bf16.mxu0 0
      %4179 = vmatpush1.bf16.msra.mxu0 0
      %4180 = vmatprep.subr.bf16.mxu0 0
      %4181 = vmatpush1.bf16.msra.mxu0 0
      %4182 = vmatprep.subr.bf16.mxu0 0
      %4183 = vmatpush1.bf16.msra.mxu0 0
      %4184 = vmatprep.subr.bf16.mxu0 0
      %4185 = vmatpush1.bf16.msra.mxu0 0
      %4186 = vmatprep.subr.bf16.mxu0 0
      %4187 = vmatpush1.bf16.msra.mxu0 0
      %4188 = vmatprep.subr.bf16.mxu0 0
      %4189 = vmatpush1.bf16.msra.mxu0 0
      %4190 = vmatprep.subr.bf16.mxu0 0
      %4191 = vmatpush1.bf16.msra.mxu0 0
      %4192 = vmatprep.subr.bf16.mxu0 0
      %4193 = vmatpush1.bf16.msra.mxu0 0
      %4194 = vmatprep.subr.bf16.mxu0 0
      %4195 = vmatpush1.bf16.msra.mxu0 0
      %4196 = vmatprep.subr.bf16.mxu0 0
      %4197 = vmatpush1.bf16.msra.mxu0 0
      %4198 = vmatprep.subr.bf16.mxu0 0
      %4199 = vmatpush1.bf16.msra.mxu0 0
      %4200 = vmatprep.mubr.bf16.mxu0 0
      %4201 = vmatmul.mubr.bf16.gmra.mrb[0].mxu0 %v4166
      %v4202 = vpop.f32.mrb[0].mxu0
      %v4203 = vadd.f32 %v4151, %v4202
      %v4204 = vpop.f32.mrb[0].mxu0
      %v4205 = vpop.f32.mrb[0].mxu0
      %v4206 = vpop.f32.mrb[0].mxu0
      %4207 = vdwg.mxu0
      %v4208 = vmax.f32 %v4203, 0.0
      %v4209 = vpack.c.bf16 %v4208, %v4208
      %v4210 = vld [vmem:[%s1284] sm:$0xf]
      %v4211 = vld [vmem:[%s1284 + $0x4] sm:$0xf]
      %v4212 = vld [vmem:[%s1284 + $0x8] sm:$0xf]
      %v4213 = vld [vmem:[%s1284 + $0xc] sm:$0xf]
      %v4214 = vld [vmem:[%s1284 + $0x10] sm:$0xf]
      %v4215 = vld [vmem:[%s1284 + $0x14] sm:$0xf]
      %v4216 = vld [vmem:[%s1284 + $0x18] sm:$0xf]
      %v4217 = vld [vmem:[%s1284 + $0x1c] sm:$0xf]
      %v4218 = vld [vmem:[%s1287] sm:$0x1]
      %v4220 = vlaneseq
      %v4221 = vshrl.u32 %v4220, 7
      %v4222 = vsub.s32 0, %v4221
      %v4223 = vrot.slane %v4218, %v4222
      %v4233 = vunpack.c.l.b16 %v4210
      %v4234 = vunpack.c.l.b16 %v4211
      %v4235 = vunpack.c.l.b16 %v4212
      %v4236 = vunpack.c.l.b16 %v4213
      %v4237 = vunpack.c.l.b16 %v4214
      %v4238 = vunpack.c.l.b16 %v4215
      %v4239 = vunpack.c.l.b16 %v4216
      %v4240 = vunpack.c.l.b16 %v4217
      %v4241 = vpack.c.b16 %v4234, %v4233
      %v4242 = vpack.c.b16 %v4236, %v4235
      %v4243 = vpack.c.b16 %v4238, %v4237
      %v4244 = vpack.c.b16 %v4240, %v4239
      %vm4249 = vcmask 523264
      %v4251 = vsel %vm4249, %v4209, 0
      %4253 = vmatprep.subr.bf16.mxu0 0
      %4254 = vmatpush1.bf16.msra.mxu0 %v4241
      %4255 = vmatprep.subr.bf16.mxu0 0
      %4256 = vmatpush1.bf16.msra.mxu0 %v4242
      %4257 = vmatprep.subr.bf16.mxu0 0
      %4258 = vmatpush1.bf16.msra.mxu0 %v4243
      %4259 = vmatprep.subr.bf16.mxu0 0
      %4260 = vmatpush1.bf16.msra.mxu0 %v4244
      %4261 = vmatprep.subr.bf16.mxu0 0
      %4262 = vmatpush1.bf16.msra.mxu0 0
      %4263 = vmatprep.subr.bf16.mxu0 0
      %4264 = vmatpush1.bf16.msra.mxu0 0
      %4265 = vmatprep.subr.bf16.mxu0 0
      %4266 = vmatpush1.bf16.msra.mxu0 0
      %4267 = vmatprep.subr.bf16.mxu0 0
      %4268 = vmatpush1.bf16.msra.mxu0 0
      %4269 = vmatprep.subr.bf16.mxu0 0
      %4270 = vmatpush1.bf16.msra.mxu0 0
      %4271 = vmatprep.subr.bf16.mxu0 0
      %4272 = vmatpush1.bf16.msra.mxu0 0
      %4273 = vmatprep.subr.bf16.mxu0 0
      %4274 = vmatpush1.bf16.msra.mxu0 0
      %4275 = vmatprep.subr.bf16.mxu0 0
      %4276 = vmatpush1.bf16.msra.mxu0 0
      %4277 = vmatprep.subr.bf16.mxu0 0
      %4278 = vmatpush1.bf16.msra.mxu0 0
      %4279 = vmatprep.subr.bf16.mxu0 0
      %4280 = vmatpush1.bf16.msra.mxu0 0
      %4281 = vmatprep.subr.bf16.mxu0 0
      %4282 = vmatpush1.bf16.msra.mxu0 0
      %4283 = vmatprep.subr.bf16.mxu0 0
      %4284 = vmatpush1.bf16.msra.mxu0 0
      %4285 = vmatprep.mubr.bf16.mxu0 0
      %4286 = vmatmul.mubr.bf16.gmra.mrb[0].mxu0 %v4251
      %v4287 = vpop.f32.mrb[0].mxu0
      %v4288 = vadd.f32 %v4223, %v4287
      %v4289 = vpop.f32.mrb[0].mxu0
      %v4290 = vpop.f32.mrb[0].mxu0
      %v4291 = vpop.f32.mrb[0].mxu0
      %4292 = vdwg.mxu0
      %v4293 = vadd.f32 %v4140, %v4288
      %v4294 = vld [vmem:[%s1290] sm:$0x1]
      %v4295 = vld [vmem:[%s1293] sm:$0x1]
      %v4296 = vsel %vm1410, %v4293, 0.0
      %4297 = vadd.xlane.f32.xlu0 %v4296
      %v4298 = vpop.xlane.xlu0 %4297
      %v4299 = vmul.f32 %v4298, %v4116
      %v4300 = vsub.f32 %v4293, %v4299
      %v4301 = vmul.f32 %v4300, %v4300
      %v4302 = vsel %vm1410, %v4301, 0.0
      %4303 = vadd.xlane.f32.xlu0 %v4302
      %v4304 = vpop.xlane.xlu0 %4303
      %v4305 = vmul.f32 %v4304, %v4116
      %v4306 = vadd.f32 %v4305, 1e-06
      %v4307 = vrsqrt.pop %v4306
      %v4308 = vmul.f32 %v4300, %v4307
      %v4310 = vlaneseq
      %v4311 = vshrl.u32 %v4310, 7
      %v4312 = vsub.s32 0, %v4311
      %v4313 = vrot.slane %v4294, %v4312
      %v4315 = vmul.f32 %v4308, %v4313
      %v4317 = vlaneseq
      %v4318 = vshrl.u32 %v4317, 7
      %v4319 = vsub.s32 0, %v4318
      %v4320 = vrot.slane %v4295, %v4319
      %v4322 = vadd.f32 %v4315, %v4320
      %4323 = vst.msk [vmem:[%s1301] sm:$0xff] %vm1410, %v4322
      %p4324 = scmp.lt.s32.totalorder %s42, 1
      %s4325 = scalar_select %p4324, %s42, 1
      %p4326 = scmp.lt.s32.totalorder %s43, 1
      %s4327 = scalar_select %p4326, %s43, 1
      %s4328 = smul.addr %s4325, 2
      %s4329 = sadd.s32 %s4327, %s4328
      %s4330 = smul.addr %s4329, 8
      %s4331 = scalar_lea.vmem %s27, %s4330
      // Predicated region
      $region129: #{rcanet_forward.1} parent=127 // pred_check
        %p4332 = pneg %p773
      $region130: #{rcanet_forward.1} parent=127 // pred_check_branch
        %4334 = sbr.rel (%p4332) target = $region132
      $region131: #{rcanet_forward.1} parent=127 // pred_region
        _
      $region132: #{rcanet_forward.1} parent=127 // pred_fallthru
        _
    $region128: #{rcanet_forward.1} parent=5 // pred_fallthru
      _
    %p4335 = scmp.le.s32.totalorder 2, %s33
    // Predicated region
    $region133: #{rcanet_forward.1} parent=5 // pred_check
      %p4336 = pneg %p4335
    $region134: #{rcanet_forward.1} parent=5 // pred_check_branch
      %4338 = sbr.rel (%p4336) target = $region136
    $region135: #{rcanet_forward.1} parent=5 // pred_region
      %s4339 = ssub.s32 %s33, 2
      // Predicated region
      $region137: #{rcanet_forward.1} parent=135 // pred_check
        %p4340 = pneg %p779
      $region138: #{rcanet_forward.1} parent=135 // pred_check_branch
        %4342 = sbr.rel (%p4340) target = $region140
      $region139: #{rcanet_forward.1} parent=135 // pred_region
        %p4343 = scmp.lt.s32.totalorder %s44, 1
        %s4344 = scalar_select %p4343, %s44, 1
        %p4345 = scmp.lt.s32.totalorder %s45, 1
        %s4346 = scalar_select %p4345, %s45, 1
        %s4347 = smul.addr %s4344, 2
        %s4348 = sadd.s32 %s4346, %s4347
        %s4349 = smul.addr %s4348, 8
        %s4350 = scalar_lea.vmem %s27, %s4349
      $region140: #{rcanet_forward.1} parent=135 // pred_fallthru
        _
    $region136: #{rcanet_forward.1} parent=5 // pred_fallthru
      _
  $region6: #{rcanet_forward.1} parent=0 // loop_footer
    %s37 = sadd.s32 1, %s33
  $region7: #{rcanet_forward.1} parent=0 // loop_footer_branch
    %32 = sbr.rel target = $region3
  $region8: #{rcanet_forward.1} parent=0 // loop_exit
    _

</llo_original>
